<compile_context>
chip_gen: v7x
topology: tpu7x:2x2x1
jax: 0.10.0
libtpu: 0.0.40
codegen_flags: <defaults>
</compile_context>

<pallas_src>
import functools

import jax
import jax.numpy as jnp
from jax.experimental import pallas as pl
from jax.experimental.pallas import tpu as pltpu


# --------------------------------------------------------------------------
# Fused kernel: one grid step = the full SPADEResnetBlock for one batch elem.
# Every tensor inside is channel-major (C, H*W).
# --------------------------------------------------------------------------
def _spade_resblock_kernel(x_ref, seg_ref, mask_ref, w_sh_ref, w_gb_ref,
                           b_gb_ref, w0_ref, w1_ref, *rest,
                           H, W, fin, fmid, fout, eps, learned_shortcut):
    if learned_shortcut:
        w_s_ref, out_ref = rest
    else:
        (out_ref,) = rest

    HW = H * W
    f32 = jnp.float32
    bf16 = jnp.bfloat16

    # conv tap k = dy*3+dx reads flat spatial position p + shifts[k]
    shifts = [(dy - 1) * W + (dx - 1) for dy in range(3) for dx in range(3)]

    def shifted(v, k):
        """Shifted view of v:(C, HW) for 3x3/pad=1 conv tap k.
        Lane roll + precomputed border mask emulates the zero padding."""
        s = shifts[k]
        t = v if s == 0 else jnp.roll(v, -s, axis=1)
        if k != 4:                                  # centre tap: no mask
            t = t * mask_ref[k]                     # (1, HW) bf16 broadcast
        return t

    def conv3x3(v, w_aug_ref):
        """3x3 conv, padding=1.  v:(Cin, HW) f32; w_aug:(Cout, 9*Cin+1) bf16
        whose last column is the bias (matched by an appended ones row)."""
        vb = v.astype(bf16)
        rows = [shifted(vb, k) for k in range(9)]
        rows.append(jnp.ones((1, HW), bf16))
        im2col = jnp.concatenate(rows, axis=0)      # (9*Cin + 1, HW) bf16
        return jnp.dot(w_aug_ref[...], im2col, preferred_element_type=f32)

    def instance_norm(v):                           # biased var, like PyTorch
        mean = jnp.mean(v, axis=1, keepdims=True)
        var = jnp.mean(jnp.square(v - mean), axis=1, keepdims=True)
        return (v - mean) * jax.lax.rsqrt(var + eps)

    # ---- all three SPADEs share seg: one fused mlp_shared conv + ReLU -----
    seg = seg_ref[0]                                # (snc, HW) f32
    actv = jnp.maximum(conv3x3(seg, w_sh_ref), 0.0).astype(bf16)  # (n*128, HW)

    # ---- gamma||beta of all SPADEs: 9 shifted matmuls (K=384), accumulated;
    #      the (HW, 9*nhidden) im2col is never materialised ------------------
    n_gb = b_gb_ref.shape[0]
    gb = jnp.broadcast_to(b_gb_ref[...], (n_gb, HW))        # start from bias
    for k in range(9):
        gb = gb + jnp.dot(w_gb_ref[k], shifted(actv, k),
                          preferred_element_type=f32)       # (n_gb, HW) f32

    def spade(v, row, c):
        gamma = gb[row:row + c, :]
        beta = gb[row + c:row + 2 * c, :]
        return instance_norm(v) * (1.0 + gamma) + beta

    def lrelu(v):
        return jnp.where(v >= 0.0, v, 0.2 * v)

    x = x_ref[0]                                    # (fin, HW) f32

    # main branch: conv_1(lrelu(norm_1(conv_0(lrelu(norm_0(x, seg))), seg)))
    h = conv3x3(lrelu(spade(x, 0, fin)), w0_ref)                 # (fmid, HW)
    h = conv3x3(lrelu(spade(h, 2 * fin, fmid)), w1_ref)          # (fout, HW)

    # shortcut: conv_s(norm_s(x, seg)) (1x1, no bias, no activation) / identity
    if learned_shortcut:
        hs = spade(x, 2 * fin + 2 * fmid, fin)
        x_s = jnp.dot(w_s_ref[...], hs.astype(bf16),
                      preferred_element_type=f32)            # (fout, HW)
    else:
        x_s = x

    # residual add fused before the single lane-dense (fout, HW) store
    out_ref[0] = (x_s + h).astype(out_ref.dtype)


# --------------------------------------------------------------------------
# Wrapper glue: layout-only reshapes + weight packing; hot path stays Pallas.
# --------------------------------------------------------------------------
def _full_spec(arr):
    zeros = (0,) * arr.ndim
    return pl.BlockSpec(arr.shape, lambda n, _z=zeros: _z)


def _conv_weight_aug(w_hwio, b):
    """(3,3,Cin,Cout) HWIO + (Cout,) bias -> (Cout, 9*Cin+1) bf16.
    Row order of the contracted axis = (tap, cin); last column = bias."""
    cout = w_hwio.shape[-1]
    wm = w_hwio.reshape(-1, cout).T
    return jnp.concatenate([wm, b.reshape(cout, 1)], axis=1).astype(jnp.bfloat16)


def _edge_masks(H, W):
    """(9, 1, H*W) bf16 masks: 0 where conv tap k would read outside the image
    (replaces zero padding; avoids in-kernel integer div/mod iota math)."""
    ys, xs = jnp.meshgrid(jnp.arange(H), jnp.arange(W), indexing="ij")
    ys = ys.reshape(1, H * W)
    xs = xs.reshape(1, H * W)
    masks = []
    for dy in range(3):
        for dx in range(3):
            m = jnp.ones((1, H * W), jnp.bool_)
            if dy == 0:
                m = m & (ys >= 1)
            if dy == 2:
                m = m & (ys <= H - 2)
            if dx == 0:
                m = m & (xs >= 1)
            if dx == 2:
                m = m & (xs <= W - 2)
            masks.append(m)
    return jnp.stack(masks, axis=0).astype(jnp.bfloat16)


def _pack_weights(params, fin, fmid, fout, nhidden, learned_shortcut):
    bf16 = jnp.bfloat16
    norms = [params["norm_0"], params["norm_1"]]
    chans = [fin, fmid]
    if learned_shortcut:
        norms.append(params["norm_s"])
        chans.append(fin)
    n_spade = len(norms)

    # fused mlp_shared of all SPADEs: (n_spade*nhidden, 9*snc + 1), bias folded
    w_sh = jnp.concatenate(
        [_conv_weight_aug(p["w_sh"], p["b_sh"]) for p in norms], axis=0)

    # fused, block-diagonal, per-tap gamma||beta weights:
    # (9, n_gb, n_spade*nhidden) with rows [g0,b0 | g1,b1 | gs,bs]
    blocks, biases = [], []
    for i, (p, c) in enumerate(zip(norms, chans)):
        wg = p["w_g"].reshape(9, nhidden, c).transpose(0, 2, 1)   # (9, c, 128)
        wb = p["w_b"].reshape(9, nhidden, c).transpose(0, 2, 1)
        blk = jnp.concatenate([wg, wb], axis=1)                   # (9, 2c, 128)
        blk = jnp.pad(blk, ((0, 0), (0, 0),
                            (i * nhidden, (n_spade - 1 - i) * nhidden)))
        blocks.append(blk)
        biases += [p["b_g"], p["b_b"]]
    w_gb = jnp.concatenate(blocks, axis=1).astype(bf16)           # (9,n_gb,K)
    b_gb = jnp.concatenate(biases).reshape(-1, 1)                 # (n_gb,1) f32

    packed = [w_sh, w_gb, b_gb,
              _conv_weight_aug(params["w0"], params["b0"]),
              _conv_weight_aug(params["w1"], params["b1"])]
    if learned_shortcut:
        packed.append(params["w_s"].T.astype(bf16))               # (fout, fin)
    return packed


def spade_resnet_block(x_nchw, seg_nchw, params, *, eps=1e-5):
    """SPADEResnetBlock.forward — NCHW in / NCHW out like PyTorch."""
    N, fin, H, W = x_nchw.shape
    snc = seg_nchw.shape[1]
    # F.interpolate(seg, size=x.shape[2:], mode='nearest') is identity here.
    assert seg_nchw.shape[2:] == (H, W)
    # TODO(synk): add nearest-neighbour seg-resize glue if sizes ever differ.
    learned_shortcut = params["learned_shortcut"]
    fmid = params["b0"].shape[0]
    fout = params["b1"].shape[0]
    nhidden = params["norm_0"]["b_sh"].shape[0]
    HW = H * W

    # channel-major (C, H*W) views are pure reshapes of NCHW -- no transposes
    x_cm = x_nchw.reshape(N, fin, HW)
    seg_cm = seg_nchw.reshape(N, snc, HW)
    masks = _edge_masks(H, W)
    packed = _pack_weights(params, fin, fmid, fout, nhidden, learned_shortcut)

    inputs = [x_cm, seg_cm, masks] + packed
    in_specs = [pl.BlockSpec((1, fin, HW), lambda n: (n, 0, 0)),
                pl.BlockSpec((1, snc, HW), lambda n: (n, 0, 0))]
    in_specs += [_full_spec(a) for a in inputs[2:]]

    kern = functools.partial(
        _spade_resblock_kernel, H=H, W=W, fin=fin, fmid=fmid, fout=fout,
        eps=eps, learned_shortcut=learned_shortcut)

    # TODO(synk): for large H*W (v7x 64 MiB VMEM / per-core pipelining), add a
    # spatial row-tile grid axis with a 1-row halo instead of whole-image
    # residency; at 16x16 the whole image is a few hundred KiB of VMEM.
    out = pl.pallas_call(
        kern,
        out_shape=jax.ShapeDtypeStruct((N, fout, HW), x_nchw.dtype),
        grid=(N,),
        in_specs=in_specs,
        out_specs=pl.BlockSpec((1, fout, HW), lambda n: (n, 0, 0)),
        compiler_params=pltpu.CompilerParams(
            dimension_semantics=("parallel",)),
    )(*inputs)

    # lane-dense (fout, HW) kernel output is NCHW up to a pure reshape
    return out.reshape(N, fout, H, W)


# --------------------------------------------------------------------------
# Deterministic synthetic parameters (HWIO conv layout)
# --------------------------------------------------------------------------
def init_params(key, fin, fout, semantic_nc, nhidden=128):
    fmid = min(fin, fout)
    keys = iter(jax.random.split(key, 32))

    def conv_w(cin, cout, k):
        return 0.1 * jax.random.normal(next(keys), (k, k, cin, cout), jnp.float32)

    def bias(c):
        return 0.01 * jax.random.normal(next(keys), (c,), jnp.float32)

    def spade_p(norm_nc):
        return dict(
            w_sh=conv_w(semantic_nc, nhidden, 3), b_sh=bias(nhidden),
            w_g=conv_w(nhidden, norm_nc, 3), b_g=bias(norm_nc),
            w_b=conv_w(nhidden, norm_nc, 3), b_b=bias(norm_nc))

    p = dict(
        learned_shortcut=(fin != fout),
        norm_0=spade_p(fin),
        norm_1=spade_p(fmid),
        w0=conv_w(fin, fmid, 3), b0=bias(fmid),
        w1=conv_w(fmid, fout, 3), b1=bias(fout))
    if fin != fout:
        p["norm_s"] = spade_p(fin)
        p["w_s"] = 0.1 * jax.random.normal(next(keys), (fin, fout), jnp.float32)
    return p


# TODO(synk): spectral_norm ('spectral' in opt.norm_G) is a parameter-time
# weight re-normalization; not part of this forward config / synthetic weights.


# --------------------------------------------------------------------------
# Pure-JAX reference (XLA convs, f32 HIGHEST precision) for validation
# --------------------------------------------------------------------------
def _reference(x_nchw, seg_nchw, params, *, eps=1e-5):
    hp = jax.lax.Precision.HIGHEST

    def conv3x3(x, w, b):
        y = jax.lax.conv_general_dilated(
            x, w, window_strides=(1, 1), padding=((1, 1), (1, 1)),
            dimension_numbers=("NHWC", "HWIO", "NHWC"), precision=hp)
        return y + b

    def inorm(x):
        mean = jnp.mean(x, axis=(1, 2), keepdims=True)
        var = jnp.mean(jnp.square(x - mean), axis=(1, 2), keepdims=True)
        return (x - mean) * jax.lax.rsqrt(var + eps)

    def spade(x, seg, p):
        a = jnp.maximum(conv3x3(seg, p["w_sh"], p["b_sh"]), 0.0)
        gamma = conv3x3(a, p["w_g"], p["b_g"])
        beta = conv3x3(a, p["w_b"], p["b_b"])
        return inorm(x) * (1.0 + gamma) + beta

    def lrelu(x):
        return jnp.where(x >= 0.0, x, 0.2 * x)

    x = jnp.transpose(x_nchw, (0, 2, 3, 1))
    seg = jnp.transpose(seg_nchw, (0, 2, 3, 1))
    if params["learned_shortcut"]:
        x_s = jnp.einsum("nhwc,cd->nhwd", spade(x, seg, params["norm_s"]),
                         params["w_s"], precision=hp)
    else:
        x_s = x
    dx = conv3x3(lrelu(spade(x, seg, params["norm_0"])), params["w0"], params["b0"])
    dx = conv3x3(lrelu(spade(dx, seg, params["norm_1"])), params["w1"], params["b1"])
    return jnp.transpose(x_s + dx, (0, 3, 1, 2))


if __name__ == "__main__":
    key = jax.random.PRNGKey(0)
    N, fin, fout, H, W = 2, 4, 8, 16, 16
    semantic_nc = 3

    kx, ks, kp = jax.random.split(key, 3)
    x = jax.random.normal(kx, (N, fin, H, W), jnp.float32)       # NCHW
    seg = jax.random.normal(ks, (N, semantic_nc, H, W), jnp.float32)
    params = init_params(kp, fin, fout, semantic_nc)

    out = jax.block_until_ready(spade_resnet_block(x, seg, params))
    assert out.shape == (N, fout, H, W), out.shape
    assert bool(jnp.all(jnp.isfinite(out)))

    ref = jax.block_until_ready(_reference(x, seg, params))
    max_err = float(jnp.max(jnp.abs(out - ref)))
    # bf16 MXU operands (largest contraction: 9*128 for gamma/beta) vs a f32
    # HIGHEST-precision reference -> relaxed tolerance; bugs would be O(1).
    assert max_err < 8e-2, f"mismatch vs reference: {max_err}"
    print("KERNEL_OK")
</pallas_src>

<mosaic_0001>
module attributes {stable_mosaic.version = 11 : i64} {
  func.func @_spade_resblock_kernel(%arg0: i32, %arg1: memref<1x4x256xf32, #tpu.memory_space<vmem>>, %arg2: memref<1x3x256xf32, #tpu.memory_space<vmem>>, %arg3: memref<9x1x256xbf16, #tpu.memory_space<vmem>>, %arg4: memref<384x28xbf16, #tpu.memory_space<vmem>>, %arg5: memref<9x24x384xbf16, #tpu.memory_space<vmem>>, %arg6: memref<24x1xf32, #tpu.memory_space<vmem>>, %arg7: memref<4x37xbf16, #tpu.memory_space<vmem>>, %arg8: memref<8x37xbf16, #tpu.memory_space<vmem>>, %arg9: memref<8x4xbf16, #tpu.memory_space<vmem>>, %arg10: memref<1x8x256xf32, #tpu.memory_space<vmem>>) attributes {dimension_semantics = [#tpu.dimension_semantics<parallel>], iteration_bounds = array<i64: 2>, scalar_prefetch = 0 : i64, scratch_operands = 0 : i64, tpu.core_type = #tpu.core_type<tc>, window_params = [{transform_indices = @transform_0, window_bounds = array<i64: 1, 4, 256>}, {transform_indices = @transform_1, window_bounds = array<i64: 1, 3, 256>}, {pipeline_mode = #tpu.pipeline_mode<synchronous>, transform_indices = @transform_2, window_bounds = array<i64: 9, 1, 256>}, {pipeline_mode = #tpu.pipeline_mode<synchronous>, transform_indices = @transform_3, window_bounds = array<i64: 384, 28>}, {pipeline_mode = #tpu.pipeline_mode<synchronous>, transform_indices = @transform_4, window_bounds = array<i64: 9, 24, 384>}, {pipeline_mode = #tpu.pipeline_mode<synchronous>, transform_indices = @transform_5, window_bounds = array<i64: 24, 1>}, {pipeline_mode = #tpu.pipeline_mode<synchronous>, transform_indices = @transform_6, window_bounds = array<i64: 4, 37>}, {pipeline_mode = #tpu.pipeline_mode<synchronous>, transform_indices = @transform_7, window_bounds = array<i64: 8, 37>}, {pipeline_mode = #tpu.pipeline_mode<synchronous>, transform_indices = @transform_8, window_bounds = array<i64: 8, 4>}, {transform_indices = @transform_9, window_bounds = array<i64: 1, 8, 256>}]} {
    %c0 = arith.constant 0 : index
    %c0_0 = arith.constant 0 : index
    %c0_1 = arith.constant 0 : index
    %0 = vector.load %arg2[%c0, %c0_0, %c0_1] : memref<1x3x256xf32, #tpu.memory_space<vmem>>, vector<1x3x256xf32>
    %1 = vector.shape_cast %0 : vector<1x3x256xf32> to vector<3x256xf32>
    %2 = arith.truncf %1 : vector<3x256xf32> to vector<3x256xbf16>
    %3 = vector.extract_strided_slice %2 {offsets = [0, 239], sizes = [3, 17], strides = [1, 1]} : vector<3x256xbf16> to vector<3x17xbf16>
    %4 = vector.extract_strided_slice %2 {offsets = [0, 0], sizes = [3, 239], strides = [1, 1]} : vector<3x256xbf16> to vector<3x239xbf16>
    %5 = tpu.concatenate %3, %4 in 1 : vector<3x17xbf16>, vector<3x239xbf16> -> vector<3x256xbf16>
    %c0_2 = arith.constant 0 : index
    %c0_3 = arith.constant 0 : index
    %c0_4 = arith.constant 0 : index
    %6 = vector.load %arg3[%c0_2, %c0_3, %c0_4] : memref<9x1x256xbf16, #tpu.memory_space<vmem>>, vector<1x1x256xbf16>
    %7 = vector.shape_cast %6 : vector<1x1x256xbf16> to vector<1x256xbf16>
    %8 = vector.broadcast %7 : vector<1x256xbf16> to vector<3x256xbf16>
    %9 = arith.mulf %5, %8 : vector<3x256xbf16>
    %10 = vector.extract_strided_slice %2 {offsets = [0, 240], sizes = [3, 16], strides = [1, 1]} : vector<3x256xbf16> to vector<3x16xbf16>
    %11 = vector.extract_strided_slice %2 {offsets = [0, 0], sizes = [3, 240], strides = [1, 1]} : vector<3x256xbf16> to vector<3x240xbf16>
    %12 = tpu.concatenate %10, %11 in 1 : vector<3x16xbf16>, vector<3x240xbf16> -> vector<3x256xbf16>
    %c1 = arith.constant 1 : index
    %c0_5 = arith.constant 0 : index
    %c0_6 = arith.constant 0 : index
    %13 = vector.load %arg3[%c1, %c0_5, %c0_6] : memref<9x1x256xbf16, #tpu.memory_space<vmem>>, vector<1x1x256xbf16>
    %14 = vector.shape_cast %13 : vector<1x1x256xbf16> to vector<1x256xbf16>
    %15 = vector.broadcast %14 : vector<1x256xbf16> to vector<3x256xbf16>
    %16 = arith.mulf %12, %15 : vector<3x256xbf16>
    %17 = vector.extract_strided_slice %2 {offsets = [0, 241], sizes = [3, 15], strides = [1, 1]} : vector<3x256xbf16> to vector<3x15xbf16>
    %18 = vector.extract_strided_slice %2 {offsets = [0, 0], sizes = [3, 241], strides = [1, 1]} : vector<3x256xbf16> to vector<3x241xbf16>
    %19 = tpu.concatenate %17, %18 in 1 : vector<3x15xbf16>, vector<3x241xbf16> -> vector<3x256xbf16>
    %c2 = arith.constant 2 : index
    %c0_7 = arith.constant 0 : index
    %c0_8 = arith.constant 0 : index
    %20 = vector.load %arg3[%c2, %c0_7, %c0_8] : memref<9x1x256xbf16, #tpu.memory_space<vmem>>, vector<1x1x256xbf16>
    %21 = vector.shape_cast %20 : vector<1x1x256xbf16> to vector<1x256xbf16>
    %22 = vector.broadcast %21 : vector<1x256xbf16> to vector<3x256xbf16>
    %23 = arith.mulf %19, %22 : vector<3x256xbf16>
    %24 = vector.extract_strided_slice %2 {offsets = [0, 255], sizes = [3, 1], strides = [1, 1]} : vector<3x256xbf16> to vector<3x1xbf16>
    %25 = vector.extract_strided_slice %2 {offsets = [0, 0], sizes = [3, 255], strides = [1, 1]} : vector<3x256xbf16> to vector<3x255xbf16>
    %26 = tpu.concatenate %24, %25 in 1 : vector<3x1xbf16>, vector<3x255xbf16> -> vector<3x256xbf16>
    %c3 = arith.constant 3 : index
    %c0_9 = arith.constant 0 : index
    %c0_10 = arith.constant 0 : index
    %27 = vector.load %arg3[%c3, %c0_9, %c0_10] : memref<9x1x256xbf16, #tpu.memory_space<vmem>>, vector<1x1x256xbf16>
    %28 = vector.shape_cast %27 : vector<1x1x256xbf16> to vector<1x256xbf16>
    %29 = vector.broadcast %28 : vector<1x256xbf16> to vector<3x256xbf16>
    %30 = arith.mulf %26, %29 : vector<3x256xbf16>
    %31 = vector.extract_strided_slice %2 {offsets = [0, 1], sizes = [3, 255], strides = [1, 1]} : vector<3x256xbf16> to vector<3x255xbf16>
    %32 = vector.extract_strided_slice %2 {offsets = [0, 0], sizes = [3, 1], strides = [1, 1]} : vector<3x256xbf16> to vector<3x1xbf16>
    %33 = tpu.concatenate %31, %32 in 1 : vector<3x255xbf16>, vector<3x1xbf16> -> vector<3x256xbf16>
    %c5 = arith.constant 5 : index
    %c0_11 = arith.constant 0 : index
    %c0_12 = arith.constant 0 : index
    %34 = vector.load %arg3[%c5, %c0_11, %c0_12] : memref<9x1x256xbf16, #tpu.memory_space<vmem>>, vector<1x1x256xbf16>
    %35 = vector.shape_cast %34 : vector<1x1x256xbf16> to vector<1x256xbf16>
    %36 = vector.broadcast %35 : vector<1x256xbf16> to vector<3x256xbf16>
    %37 = arith.mulf %33, %36 : vector<3x256xbf16>
    %38 = vector.extract_strided_slice %2 {offsets = [0, 15], sizes = [3, 241], strides = [1, 1]} : vector<3x256xbf16> to vector<3x241xbf16>
    %39 = vector.extract_strided_slice %2 {offsets = [0, 0], sizes = [3, 15], strides = [1, 1]} : vector<3x256xbf16> to vector<3x15xbf16>
    %40 = tpu.concatenate %38, %39 in 1 : vector<3x241xbf16>, vector<3x15xbf16> -> vector<3x256xbf16>
    %c6 = arith.constant 6 : index
    %c0_13 = arith.constant 0 : index
    %c0_14 = arith.constant 0 : index
    %41 = vector.load %arg3[%c6, %c0_13, %c0_14] : memref<9x1x256xbf16, #tpu.memory_space<vmem>>, vector<1x1x256xbf16>
    %42 = vector.shape_cast %41 : vector<1x1x256xbf16> to vector<1x256xbf16>
    %43 = vector.broadcast %42 : vector<1x256xbf16> to vector<3x256xbf16>
    %44 = arith.mulf %40, %43 : vector<3x256xbf16>
    %45 = vector.extract_strided_slice %2 {offsets = [0, 16], sizes = [3, 240], strides = [1, 1]} : vector<3x256xbf16> to vector<3x240xbf16>
    %46 = vector.extract_strided_slice %2 {offsets = [0, 0], sizes = [3, 16], strides = [1, 1]} : vector<3x256xbf16> to vector<3x16xbf16>
    %47 = tpu.concatenate %45, %46 in 1 : vector<3x240xbf16>, vector<3x16xbf16> -> vector<3x256xbf16>
    %c7 = arith.constant 7 : index
    %c0_15 = arith.constant 0 : index
    %c0_16 = arith.constant 0 : index
    %48 = vector.load %arg3[%c7, %c0_15, %c0_16] : memref<9x1x256xbf16, #tpu.memory_space<vmem>>, vector<1x1x256xbf16>
    %49 = vector.shape_cast %48 : vector<1x1x256xbf16> to vector<1x256xbf16>
    %50 = vector.broadcast %49 : vector<1x256xbf16> to vector<3x256xbf16>
    %51 = arith.mulf %47, %50 : vector<3x256xbf16>
    %52 = vector.extract_strided_slice %2 {offsets = [0, 17], sizes = [3, 239], strides = [1, 1]} : vector<3x256xbf16> to vector<3x239xbf16>
    %53 = vector.extract_strided_slice %2 {offsets = [0, 0], sizes = [3, 17], strides = [1, 1]} : vector<3x256xbf16> to vector<3x17xbf16>
    %54 = tpu.concatenate %52, %53 in 1 : vector<3x239xbf16>, vector<3x17xbf16> -> vector<3x256xbf16>
    %c8 = arith.constant 8 : index
    %c0_17 = arith.constant 0 : index
    %c0_18 = arith.constant 0 : index
    %55 = vector.load %arg3[%c8, %c0_17, %c0_18] : memref<9x1x256xbf16, #tpu.memory_space<vmem>>, vector<1x1x256xbf16>
    %56 = vector.shape_cast %55 : vector<1x1x256xbf16> to vector<1x256xbf16>
    %57 = vector.broadcast %56 : vector<1x256xbf16> to vector<3x256xbf16>
    %58 = arith.mulf %54, %57 : vector<3x256xbf16>
    %cst = arith.constant 1.000000e+00 : bf16
    %59 = vector.broadcast %cst : bf16 to vector<1x256xbf16>
    %60 = tpu.concatenate %9, %16, %23, %30, %2, %37, %44, %51, %58, %59 in 0 : vector<3x256xbf16>, vector<3x256xbf16>, vector<3x256xbf16>, vector<3x256xbf16>, vector<3x256xbf16>, vector<3x256xbf16>, vector<3x256xbf16>, vector<3x256xbf16>, vector<3x256xbf16>, vector<1x256xbf16> -> vector<28x256xbf16>
    %c0_19 = arith.constant 0 : index
    %c0_20 = arith.constant 0 : index
    %61 = vector.load %arg4[%c0_19, %c0_20] : memref<384x28xbf16, #tpu.memory_space<vmem>>, vector<384x28xbf16>
    %cst_21 = arith.constant dense<0.000000e+00> : vector<384x256xf32>
    %62 = tpu.matmul %61, %60, %cst_21 {dimension_numbers = #tpu.dot_dimension_numbers<[1], [0], [0], [1], [0, 0, 1, 1], [], []>} : vector<384x28xbf16>, vector<28x256xbf16>, vector<384x256xf32> -> vector<384x256xf32>
    %cst_22 = arith.constant 0.000000e+00 : f32
    %63 = vector.broadcast %cst_22 : f32 to vector<384x256xf32>
    %64 = arith.maximumf %62, %63 : vector<384x256xf32>
    %65 = arith.truncf %64 : vector<384x256xf32> to vector<384x256xbf16>
    %c0_23 = arith.constant 0 : index
    %c0_24 = arith.constant 0 : index
    %66 = vector.load %arg6[%c0_23, %c0_24] : memref<24x1xf32, #tpu.memory_space<vmem>>, vector<24x1xf32>
    %67 = vector.shape_cast %66 : vector<24x1xf32> to vector<24x1xf32>
    %68 = vector.broadcast %67 : vector<24x1xf32> to vector<24x256xf32>
    %c0_25 = arith.constant 0 : index
    %c0_26 = arith.constant 0 : index
    %c0_27 = arith.constant 0 : index
    %69 = vector.load %arg5[%c0_25, %c0_26, %c0_27] : memref<9x24x384xbf16, #tpu.memory_space<vmem>>, vector<1x24x384xbf16>
    %70 = vector.shape_cast %69 : vector<1x24x384xbf16> to vector<24x384xbf16>
    %71 = vector.extract_strided_slice %65 {offsets = [0, 239], sizes = [384, 17], strides = [1, 1]} : vector<384x256xbf16> to vector<384x17xbf16>
    %72 = vector.extract_strided_slice %65 {offsets = [0, 0], sizes = [384, 239], strides = [1, 1]} : vector<384x256xbf16> to vector<384x239xbf16>
    %73 = tpu.concatenate %71, %72 in 1 : vector<384x17xbf16>, vector<384x239xbf16> -> vector<384x256xbf16>
    %c0_28 = arith.constant 0 : index
    %c0_29 = arith.constant 0 : index
    %c0_30 = arith.constant 0 : index
    %74 = vector.load %arg3[%c0_28, %c0_29, %c0_30] : memref<9x1x256xbf16, #tpu.memory_space<vmem>>, vector<1x1x256xbf16>
    %75 = vector.shape_cast %74 : vector<1x1x256xbf16> to vector<1x256xbf16>
    %76 = vector.broadcast %75 : vector<1x256xbf16> to vector<384x256xbf16>
    %77 = arith.mulf %73, %76 : vector<384x256xbf16>
    %cst_31 = arith.constant dense<0.000000e+00> : vector<24x256xf32>
    %78 = tpu.matmul %70, %77, %cst_31 {dimension_numbers = #tpu.dot_dimension_numbers<[1], [0], [0], [1], [0, 0, 1, 1], [], []>} : vector<24x384xbf16>, vector<384x256xbf16>, vector<24x256xf32> -> vector<24x256xf32>
    %79 = arith.addf %68, %78 : vector<24x256xf32>
    %c1_32 = arith.constant 1 : index
    %c0_33 = arith.constant 0 : index
    %c0_34 = arith.constant 0 : index
    %80 = vector.load %arg5[%c1_32, %c0_33, %c0_34] : memref<9x24x384xbf16, #tpu.memory_space<vmem>>, vector<1x24x384xbf16>
    %81 = vector.shape_cast %80 : vector<1x24x384xbf16> to vector<24x384xbf16>
    %82 = vector.extract_strided_slice %65 {offsets = [0, 240], sizes = [384, 16], strides = [1, 1]} : vector<384x256xbf16> to vector<384x16xbf16>
    %83 = vector.extract_strided_slice %65 {offsets = [0, 0], sizes = [384, 240], strides = [1, 1]} : vector<384x256xbf16> to vector<384x240xbf16>
    %84 = tpu.concatenate %82, %83 in 1 : vector<384x16xbf16>, vector<384x240xbf16> -> vector<384x256xbf16>
    %c1_35 = arith.constant 1 : index
    %c0_36 = arith.constant 0 : index
    %c0_37 = arith.constant 0 : index
    %85 = vector.load %arg3[%c1_35, %c0_36, %c0_37] : memref<9x1x256xbf16, #tpu.memory_space<vmem>>, vector<1x1x256xbf16>
    %86 = vector.shape_cast %85 : vector<1x1x256xbf16> to vector<1x256xbf16>
    %87 = vector.broadcast %86 : vector<1x256xbf16> to vector<384x256xbf16>
    %88 = arith.mulf %84, %87 : vector<384x256xbf16>
    %cst_38 = arith.constant dense<0.000000e+00> : vector<24x256xf32>
    %89 = tpu.matmul %81, %88, %cst_38 {dimension_numbers = #tpu.dot_dimension_numbers<[1], [0], [0], [1], [0, 0, 1, 1], [], []>} : vector<24x384xbf16>, vector<384x256xbf16>, vector<24x256xf32> -> vector<24x256xf32>
    %90 = arith.addf %79, %89 : vector<24x256xf32>
    %c2_39 = arith.constant 2 : index
    %c0_40 = arith.constant 0 : index
    %c0_41 = arith.constant 0 : index
    %91 = vector.load %arg5[%c2_39, %c0_40, %c0_41] : memref<9x24x384xbf16, #tpu.memory_space<vmem>>, vector<1x24x384xbf16>
    %92 = vector.shape_cast %91 : vector<1x24x384xbf16> to vector<24x384xbf16>
    %93 = vector.extract_strided_slice %65 {offsets = [0, 241], sizes = [384, 15], strides = [1, 1]} : vector<384x256xbf16> to vector<384x15xbf16>
    %94 = vector.extract_strided_slice %65 {offsets = [0, 0], sizes = [384, 241], strides = [1, 1]} : vector<384x256xbf16> to vector<384x241xbf16>
    %95 = tpu.concatenate %93, %94 in 1 : vector<384x15xbf16>, vector<384x241xbf16> -> vector<384x256xbf16>
    %c2_42 = arith.constant 2 : index
    %c0_43 = arith.constant 0 : index
    %c0_44 = arith.constant 0 : index
    %96 = vector.load %arg3[%c2_42, %c0_43, %c0_44] : memref<9x1x256xbf16, #tpu.memory_space<vmem>>, vector<1x1x256xbf16>
    %97 = vector.shape_cast %96 : vector<1x1x256xbf16> to vector<1x256xbf16>
    %98 = vector.broadcast %97 : vector<1x256xbf16> to vector<384x256xbf16>
    %99 = arith.mulf %95, %98 : vector<384x256xbf16>
    %cst_45 = arith.constant dense<0.000000e+00> : vector<24x256xf32>
    %100 = tpu.matmul %92, %99, %cst_45 {dimension_numbers = #tpu.dot_dimension_numbers<[1], [0], [0], [1], [0, 0, 1, 1], [], []>} : vector<24x384xbf16>, vector<384x256xbf16>, vector<24x256xf32> -> vector<24x256xf32>
    %101 = arith.addf %90, %100 : vector<24x256xf32>
    %c3_46 = arith.constant 3 : index
    %c0_47 = arith.constant 0 : index
    %c0_48 = arith.constant 0 : index
    %102 = vector.load %arg5[%c3_46, %c0_47, %c0_48] : memref<9x24x384xbf16, #tpu.memory_space<vmem>>, vector<1x24x384xbf16>
    %103 = vector.shape_cast %102 : vector<1x24x384xbf16> to vector<24x384xbf16>
    %104 = vector.extract_strided_slice %65 {offsets = [0, 255], sizes = [384, 1], strides = [1, 1]} : vector<384x256xbf16> to vector<384x1xbf16>
    %105 = vector.extract_strided_slice %65 {offsets = [0, 0], sizes = [384, 255], strides = [1, 1]} : vector<384x256xbf16> to vector<384x255xbf16>
    %106 = tpu.concatenate %104, %105 in 1 : vector<384x1xbf16>, vector<384x255xbf16> -> vector<384x256xbf16>
    %c3_49 = arith.constant 3 : index
    %c0_50 = arith.constant 0 : index
    %c0_51 = arith.constant 0 : index
    %107 = vector.load %arg3[%c3_49, %c0_50, %c0_51] : memref<9x1x256xbf16, #tpu.memory_space<vmem>>, vector<1x1x256xbf16>
    %108 = vector.shape_cast %107 : vector<1x1x256xbf16> to vector<1x256xbf16>
    %109 = vector.broadcast %108 : vector<1x256xbf16> to vector<384x256xbf16>
    %110 = arith.mulf %106, %109 : vector<384x256xbf16>
    %cst_52 = arith.constant dense<0.000000e+00> : vector<24x256xf32>
    %111 = tpu.matmul %103, %110, %cst_52 {dimension_numbers = #tpu.dot_dimension_numbers<[1], [0], [0], [1], [0, 0, 1, 1], [], []>} : vector<24x384xbf16>, vector<384x256xbf16>, vector<24x256xf32> -> vector<24x256xf32>
    %112 = arith.addf %101, %111 : vector<24x256xf32>
    %c4 = arith.constant 4 : index
    %c0_53 = arith.constant 0 : index
    %c0_54 = arith.constant 0 : index
    %113 = vector.load %arg5[%c4, %c0_53, %c0_54] : memref<9x24x384xbf16, #tpu.memory_space<vmem>>, vector<1x24x384xbf16>
    %114 = vector.shape_cast %113 : vector<1x24x384xbf16> to vector<24x384xbf16>
    %cst_55 = arith.constant dense<0.000000e+00> : vector<24x256xf32>
    %115 = tpu.matmul %114, %65, %cst_55 {dimension_numbers = #tpu.dot_dimension_numbers<[1], [0], [0], [1], [0, 0, 1, 1], [], []>} : vector<24x384xbf16>, vector<384x256xbf16>, vector<24x256xf32> -> vector<24x256xf32>
    %116 = arith.addf %112, %115 : vector<24x256xf32>
    %c5_56 = arith.constant 5 : index
    %c0_57 = arith.constant 0 : index
    %c0_58 = arith.constant 0 : index
    %117 = vector.load %arg5[%c5_56, %c0_57, %c0_58] : memref<9x24x384xbf16, #tpu.memory_space<vmem>>, vector<1x24x384xbf16>
    %118 = vector.shape_cast %117 : vector<1x24x384xbf16> to vector<24x384xbf16>
    %119 = vector.extract_strided_slice %65 {offsets = [0, 1], sizes = [384, 255], strides = [1, 1]} : vector<384x256xbf16> to vector<384x255xbf16>
    %120 = vector.extract_strided_slice %65 {offsets = [0, 0], sizes = [384, 1], strides = [1, 1]} : vector<384x256xbf16> to vector<384x1xbf16>
    %121 = tpu.concatenate %119, %120 in 1 : vector<384x255xbf16>, vector<384x1xbf16> -> vector<384x256xbf16>
    %c5_59 = arith.constant 5 : index
    %c0_60 = arith.constant 0 : index
    %c0_61 = arith.constant 0 : index
    %122 = vector.load %arg3[%c5_59, %c0_60, %c0_61] : memref<9x1x256xbf16, #tpu.memory_space<vmem>>, vector<1x1x256xbf16>
    %123 = vector.shape_cast %122 : vector<1x1x256xbf16> to vector<1x256xbf16>
    %124 = vector.broadcast %123 : vector<1x256xbf16> to vector<384x256xbf16>
    %125 = arith.mulf %121, %124 : vector<384x256xbf16>
    %cst_62 = arith.constant dense<0.000000e+00> : vector<24x256xf32>
    %126 = tpu.matmul %118, %125, %cst_62 {dimension_numbers = #tpu.dot_dimension_numbers<[1], [0], [0], [1], [0, 0, 1, 1], [], []>} : vector<24x384xbf16>, vector<384x256xbf16>, vector<24x256xf32> -> vector<24x256xf32>
    %127 = arith.addf %116, %126 : vector<24x256xf32>
    %c6_63 = arith.constant 6 : index
    %c0_64 = arith.constant 0 : index
    %c0_65 = arith.constant 0 : index
    %128 = vector.load %arg5[%c6_63, %c0_64, %c0_65] : memref<9x24x384xbf16, #tpu.memory_space<vmem>>, vector<1x24x384xbf16>
    %129 = vector.shape_cast %128 : vector<1x24x384xbf16> to vector<24x384xbf16>
    %130 = vector.extract_strided_slice %65 {offsets = [0, 15], sizes = [384, 241], strides = [1, 1]} : vector<384x256xbf16> to vector<384x241xbf16>
    %131 = vector.extract_strided_slice %65 {offsets = [0, 0], sizes = [384, 15], strides = [1, 1]} : vector<384x256xbf16> to vector<384x15xbf16>
    %132 = tpu.concatenate %130, %131 in 1 : vector<384x241xbf16>, vector<384x15xbf16> -> vector<384x256xbf16>
    %c6_66 = arith.constant 6 : index
    %c0_67 = arith.constant 0 : index
    %c0_68 = arith.constant 0 : index
    %133 = vector.load %arg3[%c6_66, %c0_67, %c0_68] : memref<9x1x256xbf16, #tpu.memory_space<vmem>>, vector<1x1x256xbf16>
    %134 = vector.shape_cast %133 : vector<1x1x256xbf16> to vector<1x256xbf16>
    %135 = vector.broadcast %134 : vector<1x256xbf16> to vector<384x256xbf16>
    %136 = arith.mulf %132, %135 : vector<384x256xbf16>
    %cst_69 = arith.constant dense<0.000000e+00> : vector<24x256xf32>
    %137 = tpu.matmul %129, %136, %cst_69 {dimension_numbers = #tpu.dot_dimension_numbers<[1], [0], [0], [1], [0, 0, 1, 1], [], []>} : vector<24x384xbf16>, vector<384x256xbf16>, vector<24x256xf32> -> vector<24x256xf32>
    %138 = arith.addf %127, %137 : vector<24x256xf32>
    %c7_70 = arith.constant 7 : index
    %c0_71 = arith.constant 0 : index
    %c0_72 = arith.constant 0 : index
    %139 = vector.load %arg5[%c7_70, %c0_71, %c0_72] : memref<9x24x384xbf16, #tpu.memory_space<vmem>>, vector<1x24x384xbf16>
    %140 = vector.shape_cast %139 : vector<1x24x384xbf16> to vector<24x384xbf16>
    %141 = vector.extract_strided_slice %65 {offsets = [0, 16], sizes = [384, 240], strides = [1, 1]} : vector<384x256xbf16> to vector<384x240xbf16>
    %142 = vector.extract_strided_slice %65 {offsets = [0, 0], sizes = [384, 16], strides = [1, 1]} : vector<384x256xbf16> to vector<384x16xbf16>
    %143 = tpu.concatenate %141, %142 in 1 : vector<384x240xbf16>, vector<384x16xbf16> -> vector<384x256xbf16>
    %c7_73 = arith.constant 7 : index
    %c0_74 = arith.constant 0 : index
    %c0_75 = arith.constant 0 : index
    %144 = vector.load %arg3[%c7_73, %c0_74, %c0_75] : memref<9x1x256xbf16, #tpu.memory_space<vmem>>, vector<1x1x256xbf16>
    %145 = vector.shape_cast %144 : vector<1x1x256xbf16> to vector<1x256xbf16>
    %146 = vector.broadcast %145 : vector<1x256xbf16> to vector<384x256xbf16>
    %147 = arith.mulf %143, %146 : vector<384x256xbf16>
    %cst_76 = arith.constant dense<0.000000e+00> : vector<24x256xf32>
    %148 = tpu.matmul %140, %147, %cst_76 {dimension_numbers = #tpu.dot_dimension_numbers<[1], [0], [0], [1], [0, 0, 1, 1], [], []>} : vector<24x384xbf16>, vector<384x256xbf16>, vector<24x256xf32> -> vector<24x256xf32>
    %149 = arith.addf %138, %148 : vector<24x256xf32>
    %c8_77 = arith.constant 8 : index
    %c0_78 = arith.constant 0 : index
    %c0_79 = arith.constant 0 : index
    %150 = vector.load %arg5[%c8_77, %c0_78, %c0_79] : memref<9x24x384xbf16, #tpu.memory_space<vmem>>, vector<1x24x384xbf16>
    %151 = vector.shape_cast %150 : vector<1x24x384xbf16> to vector<24x384xbf16>
    %152 = vector.extract_strided_slice %65 {offsets = [0, 17], sizes = [384, 239], strides = [1, 1]} : vector<384x256xbf16> to vector<384x239xbf16>
    %153 = vector.extract_strided_slice %65 {offsets = [0, 0], sizes = [384, 17], strides = [1, 1]} : vector<384x256xbf16> to vector<384x17xbf16>
    %154 = tpu.concatenate %152, %153 in 1 : vector<384x239xbf16>, vector<384x17xbf16> -> vector<384x256xbf16>
    %c8_80 = arith.constant 8 : index
    %c0_81 = arith.constant 0 : index
    %c0_82 = arith.constant 0 : index
    %155 = vector.load %arg3[%c8_80, %c0_81, %c0_82] : memref<9x1x256xbf16, #tpu.memory_space<vmem>>, vector<1x1x256xbf16>
    %156 = vector.shape_cast %155 : vector<1x1x256xbf16> to vector<1x256xbf16>
    %157 = vector.broadcast %156 : vector<1x256xbf16> to vector<384x256xbf16>
    %158 = arith.mulf %154, %157 : vector<384x256xbf16>
    %cst_83 = arith.constant dense<0.000000e+00> : vector<24x256xf32>
    %159 = tpu.matmul %151, %158, %cst_83 {dimension_numbers = #tpu.dot_dimension_numbers<[1], [0], [0], [1], [0, 0, 1, 1], [], []>} : vector<24x384xbf16>, vector<384x256xbf16>, vector<24x256xf32> -> vector<24x256xf32>
    %160 = arith.addf %149, %159 : vector<24x256xf32>
    %c0_84 = arith.constant 0 : index
    %c0_85 = arith.constant 0 : index
    %c0_86 = arith.constant 0 : index
    %161 = vector.load %arg1[%c0_84, %c0_85, %c0_86] : memref<1x4x256xf32, #tpu.memory_space<vmem>>, vector<1x4x256xf32>
    %162 = vector.shape_cast %161 : vector<1x4x256xf32> to vector<4x256xf32>
    %163 = vector.extract_strided_slice %160 {offsets = [0, 0], sizes = [4, 256], strides = [1, 1]} : vector<24x256xf32> to vector<4x256xf32>
    %164 = vector.extract_strided_slice %160 {offsets = [4, 0], sizes = [4, 256], strides = [1, 1]} : vector<24x256xf32> to vector<4x256xf32>
    %cst_87 = arith.constant dense<0.000000e+00> : vector<4xf32>
    %165 = vector.multi_reduction <add>, %162, %cst_87 [1] : vector<4x256xf32> to vector<4xf32>
    %166 = vector.shape_cast %165 : vector<4xf32> to vector<4x1xf32>
    %cst_88 = arith.constant 2.560000e+02 : f32
    %167 = vector.broadcast %cst_88 : f32 to vector<4x1xf32>
    %168 = arith.divf %166, %167 : vector<4x1xf32>
    %169 = vector.broadcast %168 : vector<4x1xf32> to vector<4x256xf32>
    %170 = arith.subf %162, %169 : vector<4x256xf32>
    %171 = arith.mulf %170, %170 : vector<4x256xf32>
    %cst_89 = arith.constant dense<0.000000e+00> : vector<4xf32>
    %172 = vector.multi_reduction <add>, %171, %cst_89 [1] : vector<4x256xf32> to vector<4xf32>
    %173 = vector.shape_cast %172 : vector<4xf32> to vector<4x1xf32>
    %cst_90 = arith.constant 2.560000e+02 : f32
    %174 = vector.broadcast %cst_90 : f32 to vector<4x1xf32>
    %175 = arith.divf %173, %174 : vector<4x1xf32>
    %176 = vector.broadcast %168 : vector<4x1xf32> to vector<4x256xf32>
    %177 = arith.subf %162, %176 : vector<4x256xf32>
    %cst_91 = arith.constant 9.99999974E-6 : f32
    %178 = vector.broadcast %cst_91 : f32 to vector<4x1xf32>
    %179 = arith.addf %175, %178 : vector<4x1xf32>
    %180 = math.rsqrt %179 : vector<4x1xf32>
    %181 = vector.broadcast %180 : vector<4x1xf32> to vector<4x256xf32>
    %182 = arith.mulf %177, %181 : vector<4x256xf32>
    %cst_92 = arith.constant 1.000000e+00 : f32
    %183 = vector.broadcast %cst_92 : f32 to vector<4x256xf32>
    %184 = arith.addf %183, %163 : vector<4x256xf32>
    %185 = arith.mulf %182, %184 : vector<4x256xf32>
    %186 = arith.addf %185, %164 : vector<4x256xf32>
    %cst_93 = arith.constant 0.000000e+00 : f32
    %187 = vector.broadcast %cst_93 : f32 to vector<4x256xf32>
    %188 = arith.cmpf oge, %186, %187 : vector<4x256xf32>
    %cst_94 = arith.constant 2.000000e-01 : f32
    %189 = vector.broadcast %cst_94 : f32 to vector<4x256xf32>
    %190 = arith.mulf %189, %186 : vector<4x256xf32>
    %191 = arith.select %188, %186, %190 : vector<4x256xi1>, vector<4x256xf32>
    %192 = arith.truncf %191 : vector<4x256xf32> to vector<4x256xbf16>
    %193 = vector.extract_strided_slice %192 {offsets = [0, 239], sizes = [4, 17], strides = [1, 1]} : vector<4x256xbf16> to vector<4x17xbf16>
    %194 = vector.extract_strided_slice %192 {offsets = [0, 0], sizes = [4, 239], strides = [1, 1]} : vector<4x256xbf16> to vector<4x239xbf16>
    %195 = tpu.concatenate %193, %194 in 1 : vector<4x17xbf16>, vector<4x239xbf16> -> vector<4x256xbf16>
    %c0_95 = arith.constant 0 : index
    %c0_96 = arith.constant 0 : index
    %c0_97 = arith.constant 0 : index
    %196 = vector.load %arg3[%c0_95, %c0_96, %c0_97] : memref<9x1x256xbf16, #tpu.memory_space<vmem>>, vector<1x1x256xbf16>
    %197 = vector.shape_cast %196 : vector<1x1x256xbf16> to vector<1x256xbf16>
    %198 = vector.broadcast %197 : vector<1x256xbf16> to vector<4x256xbf16>
    %199 = arith.mulf %195, %198 : vector<4x256xbf16>
    %200 = vector.extract_strided_slice %192 {offsets = [0, 240], sizes = [4, 16], strides = [1, 1]} : vector<4x256xbf16> to vector<4x16xbf16>
    %201 = vector.extract_strided_slice %192 {offsets = [0, 0], sizes = [4, 240], strides = [1, 1]} : vector<4x256xbf16> to vector<4x240xbf16>
    %202 = tpu.concatenate %200, %201 in 1 : vector<4x16xbf16>, vector<4x240xbf16> -> vector<4x256xbf16>
    %c1_98 = arith.constant 1 : index
    %c0_99 = arith.constant 0 : index
    %c0_100 = arith.constant 0 : index
    %203 = vector.load %arg3[%c1_98, %c0_99, %c0_100] : memref<9x1x256xbf16, #tpu.memory_space<vmem>>, vector<1x1x256xbf16>
    %204 = vector.shape_cast %203 : vector<1x1x256xbf16> to vector<1x256xbf16>
    %205 = vector.broadcast %204 : vector<1x256xbf16> to vector<4x256xbf16>
    %206 = arith.mulf %202, %205 : vector<4x256xbf16>
    %207 = vector.extract_strided_slice %192 {offsets = [0, 241], sizes = [4, 15], strides = [1, 1]} : vector<4x256xbf16> to vector<4x15xbf16>
    %208 = vector.extract_strided_slice %192 {offsets = [0, 0], sizes = [4, 241], strides = [1, 1]} : vector<4x256xbf16> to vector<4x241xbf16>
    %209 = tpu.concatenate %207, %208 in 1 : vector<4x15xbf16>, vector<4x241xbf16> -> vector<4x256xbf16>
    %c2_101 = arith.constant 2 : index
    %c0_102 = arith.constant 0 : index
    %c0_103 = arith.constant 0 : index
    %210 = vector.load %arg3[%c2_101, %c0_102, %c0_103] : memref<9x1x256xbf16, #tpu.memory_space<vmem>>, vector<1x1x256xbf16>
    %211 = vector.shape_cast %210 : vector<1x1x256xbf16> to vector<1x256xbf16>
    %212 = vector.broadcast %211 : vector<1x256xbf16> to vector<4x256xbf16>
    %213 = arith.mulf %209, %212 : vector<4x256xbf16>
    %214 = vector.extract_strided_slice %192 {offsets = [0, 255], sizes = [4, 1], strides = [1, 1]} : vector<4x256xbf16> to vector<4x1xbf16>
    %215 = vector.extract_strided_slice %192 {offsets = [0, 0], sizes = [4, 255], strides = [1, 1]} : vector<4x256xbf16> to vector<4x255xbf16>
    %216 = tpu.concatenate %214, %215 in 1 : vector<4x1xbf16>, vector<4x255xbf16> -> vector<4x256xbf16>
    %c3_104 = arith.constant 3 : index
    %c0_105 = arith.constant 0 : index
    %c0_106 = arith.constant 0 : index
    %217 = vector.load %arg3[%c3_104, %c0_105, %c0_106] : memref<9x1x256xbf16, #tpu.memory_space<vmem>>, vector<1x1x256xbf16>
    %218 = vector.shape_cast %217 : vector<1x1x256xbf16> to vector<1x256xbf16>
    %219 = vector.broadcast %218 : vector<1x256xbf16> to vector<4x256xbf16>
    %220 = arith.mulf %216, %219 : vector<4x256xbf16>
    %221 = vector.extract_strided_slice %192 {offsets = [0, 1], sizes = [4, 255], strides = [1, 1]} : vector<4x256xbf16> to vector<4x255xbf16>
    %222 = vector.extract_strided_slice %192 {offsets = [0, 0], sizes = [4, 1], strides = [1, 1]} : vector<4x256xbf16> to vector<4x1xbf16>
    %223 = tpu.concatenate %221, %222 in 1 : vector<4x255xbf16>, vector<4x1xbf16> -> vector<4x256xbf16>
    %c5_107 = arith.constant 5 : index
    %c0_108 = arith.constant 0 : index
    %c0_109 = arith.constant 0 : index
    %224 = vector.load %arg3[%c5_107, %c0_108, %c0_109] : memref<9x1x256xbf16, #tpu.memory_space<vmem>>, vector<1x1x256xbf16>
    %225 = vector.shape_cast %224 : vector<1x1x256xbf16> to vector<1x256xbf16>
    %226 = vector.broadcast %225 : vector<1x256xbf16> to vector<4x256xbf16>
    %227 = arith.mulf %223, %226 : vector<4x256xbf16>
    %228 = vector.extract_strided_slice %192 {offsets = [0, 15], sizes = [4, 241], strides = [1, 1]} : vector<4x256xbf16> to vector<4x241xbf16>
    %229 = vector.extract_strided_slice %192 {offsets = [0, 0], sizes = [4, 15], strides = [1, 1]} : vector<4x256xbf16> to vector<4x15xbf16>
    %230 = tpu.concatenate %228, %229 in 1 : vector<4x241xbf16>, vector<4x15xbf16> -> vector<4x256xbf16>
    %c6_110 = arith.constant 6 : index
    %c0_111 = arith.constant 0 : index
    %c0_112 = arith.constant 0 : index
    %231 = vector.load %arg3[%c6_110, %c0_111, %c0_112] : memref<9x1x256xbf16, #tpu.memory_space<vmem>>, vector<1x1x256xbf16>
    %232 = vector.shape_cast %231 : vector<1x1x256xbf16> to vector<1x256xbf16>
    %233 = vector.broadcast %232 : vector<1x256xbf16> to vector<4x256xbf16>
    %234 = arith.mulf %230, %233 : vector<4x256xbf16>
    %235 = vector.extract_strided_slice %192 {offsets = [0, 16], sizes = [4, 240], strides = [1, 1]} : vector<4x256xbf16> to vector<4x240xbf16>
    %236 = vector.extract_strided_slice %192 {offsets = [0, 0], sizes = [4, 16], strides = [1, 1]} : vector<4x256xbf16> to vector<4x16xbf16>
    %237 = tpu.concatenate %235, %236 in 1 : vector<4x240xbf16>, vector<4x16xbf16> -> vector<4x256xbf16>
    %c7_113 = arith.constant 7 : index
    %c0_114 = arith.constant 0 : index
    %c0_115 = arith.constant 0 : index
    %238 = vector.load %arg3[%c7_113, %c0_114, %c0_115] : memref<9x1x256xbf16, #tpu.memory_space<vmem>>, vector<1x1x256xbf16>
    %239 = vector.shape_cast %238 : vector<1x1x256xbf16> to vector<1x256xbf16>
    %240 = vector.broadcast %239 : vector<1x256xbf16> to vector<4x256xbf16>
    %241 = arith.mulf %237, %240 : vector<4x256xbf16>
    %242 = vector.extract_strided_slice %192 {offsets = [0, 17], sizes = [4, 239], strides = [1, 1]} : vector<4x256xbf16> to vector<4x239xbf16>
    %243 = vector.extract_strided_slice %192 {offsets = [0, 0], sizes = [4, 17], strides = [1, 1]} : vector<4x256xbf16> to vector<4x17xbf16>
    %244 = tpu.concatenate %242, %243 in 1 : vector<4x239xbf16>, vector<4x17xbf16> -> vector<4x256xbf16>
    %c8_116 = arith.constant 8 : index
    %c0_117 = arith.constant 0 : index
    %c0_118 = arith.constant 0 : index
    %245 = vector.load %arg3[%c8_116, %c0_117, %c0_118] : memref<9x1x256xbf16, #tpu.memory_space<vmem>>, vector<1x1x256xbf16>
    %246 = vector.shape_cast %245 : vector<1x1x256xbf16> to vector<1x256xbf16>
    %247 = vector.broadcast %246 : vector<1x256xbf16> to vector<4x256xbf16>
    %248 = arith.mulf %244, %247 : vector<4x256xbf16>
    %cst_119 = arith.constant 1.000000e+00 : bf16
    %249 = vector.broadcast %cst_119 : bf16 to vector<1x256xbf16>
    %250 = tpu.concatenate %199, %206, %213, %220, %192, %227, %234, %241, %248, %249 in 0 : vector<4x256xbf16>, vector<4x256xbf16>, vector<4x256xbf16>, vector<4x256xbf16>, vector<4x256xbf16>, vector<4x256xbf16>, vector<4x256xbf16>, vector<4x256xbf16>, vector<4x256xbf16>, vector<1x256xbf16> -> vector<37x256xbf16>
    %c0_120 = arith.constant 0 : index
    %c0_121 = arith.constant 0 : index
    %251 = vector.load %arg7[%c0_120, %c0_121] : memref<4x37xbf16, #tpu.memory_space<vmem>>, vector<4x37xbf16>
    %cst_122 = arith.constant dense<0.000000e+00> : vector<4x256xf32>
    %252 = tpu.matmul %251, %250, %cst_122 {dimension_numbers = #tpu.dot_dimension_numbers<[1], [0], [0], [1], [0, 0, 1, 1], [], []>} : vector<4x37xbf16>, vector<37x256xbf16>, vector<4x256xf32> -> vector<4x256xf32>
    %253 = vector.extract_strided_slice %160 {offsets = [8, 0], sizes = [4, 256], strides = [1, 1]} : vector<24x256xf32> to vector<4x256xf32>
    %254 = vector.extract_strided_slice %160 {offsets = [12, 0], sizes = [4, 256], strides = [1, 1]} : vector<24x256xf32> to vector<4x256xf32>
    %cst_123 = arith.constant dense<0.000000e+00> : vector<4xf32>
    %255 = vector.multi_reduction <add>, %252, %cst_123 [1] : vector<4x256xf32> to vector<4xf32>
    %256 = vector.shape_cast %255 : vector<4xf32> to vector<4x1xf32>
    %cst_124 = arith.constant 2.560000e+02 : f32
    %257 = vector.broadcast %cst_124 : f32 to vector<4x1xf32>
    %258 = arith.divf %256, %257 : vector<4x1xf32>
    %259 = vector.broadcast %258 : vector<4x1xf32> to vector<4x256xf32>
    %260 = arith.subf %252, %259 : vector<4x256xf32>
    %261 = arith.mulf %260, %260 : vector<4x256xf32>
    %cst_125 = arith.constant dense<0.000000e+00> : vector<4xf32>
    %262 = vector.multi_reduction <add>, %261, %cst_125 [1] : vector<4x256xf32> to vector<4xf32>
    %263 = vector.shape_cast %262 : vector<4xf32> to vector<4x1xf32>
    %cst_126 = arith.constant 2.560000e+02 : f32
    %264 = vector.broadcast %cst_126 : f32 to vector<4x1xf32>
    %265 = arith.divf %263, %264 : vector<4x1xf32>
    %266 = vector.broadcast %258 : vector<4x1xf32> to vector<4x256xf32>
    %267 = arith.subf %252, %266 : vector<4x256xf32>
    %cst_127 = arith.constant 9.99999974E-6 : f32
    %268 = vector.broadcast %cst_127 : f32 to vector<4x1xf32>
    %269 = arith.addf %265, %268 : vector<4x1xf32>
    %270 = math.rsqrt %269 : vector<4x1xf32>
    %271 = vector.broadcast %270 : vector<4x1xf32> to vector<4x256xf32>
    %272 = arith.mulf %267, %271 : vector<4x256xf32>
    %cst_128 = arith.constant 1.000000e+00 : f32
    %273 = vector.broadcast %cst_128 : f32 to vector<4x256xf32>
    %274 = arith.addf %273, %253 : vector<4x256xf32>
    %275 = arith.mulf %272, %274 : vector<4x256xf32>
    %276 = arith.addf %275, %254 : vector<4x256xf32>
    %cst_129 = arith.constant 0.000000e+00 : f32
    %277 = vector.broadcast %cst_129 : f32 to vector<4x256xf32>
    %278 = arith.cmpf oge, %276, %277 : vector<4x256xf32>
    %cst_130 = arith.constant 2.000000e-01 : f32
    %279 = vector.broadcast %cst_130 : f32 to vector<4x256xf32>
    %280 = arith.mulf %279, %276 : vector<4x256xf32>
    %281 = arith.select %278, %276, %280 : vector<4x256xi1>, vector<4x256xf32>
    %282 = arith.truncf %281 : vector<4x256xf32> to vector<4x256xbf16>
    %283 = vector.extract_strided_slice %282 {offsets = [0, 239], sizes = [4, 17], strides = [1, 1]} : vector<4x256xbf16> to vector<4x17xbf16>
    %284 = vector.extract_strided_slice %282 {offsets = [0, 0], sizes = [4, 239], strides = [1, 1]} : vector<4x256xbf16> to vector<4x239xbf16>
    %285 = tpu.concatenate %283, %284 in 1 : vector<4x17xbf16>, vector<4x239xbf16> -> vector<4x256xbf16>
    %c0_131 = arith.constant 0 : index
    %c0_132 = arith.constant 0 : index
    %c0_133 = arith.constant 0 : index
    %286 = vector.load %arg3[%c0_131, %c0_132, %c0_133] : memref<9x1x256xbf16, #tpu.memory_space<vmem>>, vector<1x1x256xbf16>
    %287 = vector.shape_cast %286 : vector<1x1x256xbf16> to vector<1x256xbf16>
    %288 = vector.broadcast %287 : vector<1x256xbf16> to vector<4x256xbf16>
    %289 = arith.mulf %285, %288 : vector<4x256xbf16>
    %290 = vector.extract_strided_slice %282 {offsets = [0, 240], sizes = [4, 16], strides = [1, 1]} : vector<4x256xbf16> to vector<4x16xbf16>
    %291 = vector.extract_strided_slice %282 {offsets = [0, 0], sizes = [4, 240], strides = [1, 1]} : vector<4x256xbf16> to vector<4x240xbf16>
    %292 = tpu.concatenate %290, %291 in 1 : vector<4x16xbf16>, vector<4x240xbf16> -> vector<4x256xbf16>
    %c1_134 = arith.constant 1 : index
    %c0_135 = arith.constant 0 : index
    %c0_136 = arith.constant 0 : index
    %293 = vector.load %arg3[%c1_134, %c0_135, %c0_136] : memref<9x1x256xbf16, #tpu.memory_space<vmem>>, vector<1x1x256xbf16>
    %294 = vector.shape_cast %293 : vector<1x1x256xbf16> to vector<1x256xbf16>
    %295 = vector.broadcast %294 : vector<1x256xbf16> to vector<4x256xbf16>
    %296 = arith.mulf %292, %295 : vector<4x256xbf16>
    %297 = vector.extract_strided_slice %282 {offsets = [0, 241], sizes = [4, 15], strides = [1, 1]} : vector<4x256xbf16> to vector<4x15xbf16>
    %298 = vector.extract_strided_slice %282 {offsets = [0, 0], sizes = [4, 241], strides = [1, 1]} : vector<4x256xbf16> to vector<4x241xbf16>
    %299 = tpu.concatenate %297, %298 in 1 : vector<4x15xbf16>, vector<4x241xbf16> -> vector<4x256xbf16>
    %c2_137 = arith.constant 2 : index
    %c0_138 = arith.constant 0 : index
    %c0_139 = arith.constant 0 : index
    %300 = vector.load %arg3[%c2_137, %c0_138, %c0_139] : memref<9x1x256xbf16, #tpu.memory_space<vmem>>, vector<1x1x256xbf16>
    %301 = vector.shape_cast %300 : vector<1x1x256xbf16> to vector<1x256xbf16>
    %302 = vector.broadcast %301 : vector<1x256xbf16> to vector<4x256xbf16>
    %303 = arith.mulf %299, %302 : vector<4x256xbf16>
    %304 = vector.extract_strided_slice %282 {offsets = [0, 255], sizes = [4, 1], strides = [1, 1]} : vector<4x256xbf16> to vector<4x1xbf16>
    %305 = vector.extract_strided_slice %282 {offsets = [0, 0], sizes = [4, 255], strides = [1, 1]} : vector<4x256xbf16> to vector<4x255xbf16>
    %306 = tpu.concatenate %304, %305 in 1 : vector<4x1xbf16>, vector<4x255xbf16> -> vector<4x256xbf16>
    %c3_140 = arith.constant 3 : index
    %c0_141 = arith.constant 0 : index
    %c0_142 = arith.constant 0 : index
    %307 = vector.load %arg3[%c3_140, %c0_141, %c0_142] : memref<9x1x256xbf16, #tpu.memory_space<vmem>>, vector<1x1x256xbf16>
    %308 = vector.shape_cast %307 : vector<1x1x256xbf16> to vector<1x256xbf16>
    %309 = vector.broadcast %308 : vector<1x256xbf16> to vector<4x256xbf16>
    %310 = arith.mulf %306, %309 : vector<4x256xbf16>
    %311 = vector.extract_strided_slice %282 {offsets = [0, 1], sizes = [4, 255], strides = [1, 1]} : vector<4x256xbf16> to vector<4x255xbf16>
    %312 = vector.extract_strided_slice %282 {offsets = [0, 0], sizes = [4, 1], strides = [1, 1]} : vector<4x256xbf16> to vector<4x1xbf16>
    %313 = tpu.concatenate %311, %312 in 1 : vector<4x255xbf16>, vector<4x1xbf16> -> vector<4x256xbf16>
    %c5_143 = arith.constant 5 : index
    %c0_144 = arith.constant 0 : index
    %c0_145 = arith.constant 0 : index
    %314 = vector.load %arg3[%c5_143, %c0_144, %c0_145] : memref<9x1x256xbf16, #tpu.memory_space<vmem>>, vector<1x1x256xbf16>
    %315 = vector.shape_cast %314 : vector<1x1x256xbf16> to vector<1x256xbf16>
    %316 = vector.broadcast %315 : vector<1x256xbf16> to vector<4x256xbf16>
    %317 = arith.mulf %313, %316 : vector<4x256xbf16>
    %318 = vector.extract_strided_slice %282 {offsets = [0, 15], sizes = [4, 241], strides = [1, 1]} : vector<4x256xbf16> to vector<4x241xbf16>
    %319 = vector.extract_strided_slice %282 {offsets = [0, 0], sizes = [4, 15], strides = [1, 1]} : vector<4x256xbf16> to vector<4x15xbf16>
    %320 = tpu.concatenate %318, %319 in 1 : vector<4x241xbf16>, vector<4x15xbf16> -> vector<4x256xbf16>
    %c6_146 = arith.constant 6 : index
    %c0_147 = arith.constant 0 : index
    %c0_148 = arith.constant 0 : index
    %321 = vector.load %arg3[%c6_146, %c0_147, %c0_148] : memref<9x1x256xbf16, #tpu.memory_space<vmem>>, vector<1x1x256xbf16>
    %322 = vector.shape_cast %321 : vector<1x1x256xbf16> to vector<1x256xbf16>
    %323 = vector.broadcast %322 : vector<1x256xbf16> to vector<4x256xbf16>
    %324 = arith.mulf %320, %323 : vector<4x256xbf16>
    %325 = vector.extract_strided_slice %282 {offsets = [0, 16], sizes = [4, 240], strides = [1, 1]} : vector<4x256xbf16> to vector<4x240xbf16>
    %326 = vector.extract_strided_slice %282 {offsets = [0, 0], sizes = [4, 16], strides = [1, 1]} : vector<4x256xbf16> to vector<4x16xbf16>
    %327 = tpu.concatenate %325, %326 in 1 : vector<4x240xbf16>, vector<4x16xbf16> -> vector<4x256xbf16>
    %c7_149 = arith.constant 7 : index
    %c0_150 = arith.constant 0 : index
    %c0_151 = arith.constant 0 : index
    %328 = vector.load %arg3[%c7_149, %c0_150, %c0_151] : memref<9x1x256xbf16, #tpu.memory_space<vmem>>, vector<1x1x256xbf16>
    %329 = vector.shape_cast %328 : vector<1x1x256xbf16> to vector<1x256xbf16>
    %330 = vector.broadcast %329 : vector<1x256xbf16> to vector<4x256xbf16>
    %331 = arith.mulf %327, %330 : vector<4x256xbf16>
    %332 = vector.extract_strided_slice %282 {offsets = [0, 17], sizes = [4, 239], strides = [1, 1]} : vector<4x256xbf16> to vector<4x239xbf16>
    %333 = vector.extract_strided_slice %282 {offsets = [0, 0], sizes = [4, 17], strides = [1, 1]} : vector<4x256xbf16> to vector<4x17xbf16>
    %334 = tpu.concatenate %332, %333 in 1 : vector<4x239xbf16>, vector<4x17xbf16> -> vector<4x256xbf16>
    %c8_152 = arith.constant 8 : index
    %c0_153 = arith.constant 0 : index
    %c0_154 = arith.constant 0 : index
    %335 = vector.load %arg3[%c8_152, %c0_153, %c0_154] : memref<9x1x256xbf16, #tpu.memory_space<vmem>>, vector<1x1x256xbf16>
    %336 = vector.shape_cast %335 : vector<1x1x256xbf16> to vector<1x256xbf16>
    %337 = vector.broadcast %336 : vector<1x256xbf16> to vector<4x256xbf16>
    %338 = arith.mulf %334, %337 : vector<4x256xbf16>
    %cst_155 = arith.constant 1.000000e+00 : bf16
    %339 = vector.broadcast %cst_155 : bf16 to vector<1x256xbf16>
    %340 = tpu.concatenate %289, %296, %303, %310, %282, %317, %324, %331, %338, %339 in 0 : vector<4x256xbf16>, vector<4x256xbf16>, vector<4x256xbf16>, vector<4x256xbf16>, vector<4x256xbf16>, vector<4x256xbf16>, vector<4x256xbf16>, vector<4x256xbf16>, vector<4x256xbf16>, vector<1x256xbf16> -> vector<37x256xbf16>
    %c0_156 = arith.constant 0 : index
    %c0_157 = arith.constant 0 : index
    %341 = vector.load %arg8[%c0_156, %c0_157] : memref<8x37xbf16, #tpu.memory_space<vmem>>, vector<8x37xbf16>
    %cst_158 = arith.constant dense<0.000000e+00> : vector<8x256xf32>
    %342 = tpu.matmul %341, %340, %cst_158 {dimension_numbers = #tpu.dot_dimension_numbers<[1], [0], [0], [1], [0, 0, 1, 1], [], []>} : vector<8x37xbf16>, vector<37x256xbf16>, vector<8x256xf32> -> vector<8x256xf32>
    %343 = vector.extract_strided_slice %160 {offsets = [16, 0], sizes = [4, 256], strides = [1, 1]} : vector<24x256xf32> to vector<4x256xf32>
    %344 = vector.extract_strided_slice %160 {offsets = [20, 0], sizes = [4, 256], strides = [1, 1]} : vector<24x256xf32> to vector<4x256xf32>
    %cst_159 = arith.constant dense<0.000000e+00> : vector<4xf32>
    %345 = vector.multi_reduction <add>, %162, %cst_159 [1] : vector<4x256xf32> to vector<4xf32>
    %346 = vector.shape_cast %345 : vector<4xf32> to vector<4x1xf32>
    %cst_160 = arith.constant 2.560000e+02 : f32
    %347 = vector.broadcast %cst_160 : f32 to vector<4x1xf32>
    %348 = arith.divf %346, %347 : vector<4x1xf32>
    %349 = vector.broadcast %348 : vector<4x1xf32> to vector<4x256xf32>
    %350 = arith.subf %162, %349 : vector<4x256xf32>
    %351 = arith.mulf %350, %350 : vector<4x256xf32>
    %cst_161 = arith.constant dense<0.000000e+00> : vector<4xf32>
    %352 = vector.multi_reduction <add>, %351, %cst_161 [1] : vector<4x256xf32> to vector<4xf32>
    %353 = vector.shape_cast %352 : vector<4xf32> to vector<4x1xf32>
    %cst_162 = arith.constant 2.560000e+02 : f32
    %354 = vector.broadcast %cst_162 : f32 to vector<4x1xf32>
    %355 = arith.divf %353, %354 : vector<4x1xf32>
    %356 = vector.broadcast %348 : vector<4x1xf32> to vector<4x256xf32>
    %357 = arith.subf %162, %356 : vector<4x256xf32>
    %cst_163 = arith.constant 9.99999974E-6 : f32
    %358 = vector.broadcast %cst_163 : f32 to vector<4x1xf32>
    %359 = arith.addf %355, %358 : vector<4x1xf32>
    %360 = math.rsqrt %359 : vector<4x1xf32>
    %361 = vector.broadcast %360 : vector<4x1xf32> to vector<4x256xf32>
    %362 = arith.mulf %357, %361 : vector<4x256xf32>
    %cst_164 = arith.constant 1.000000e+00 : f32
    %363 = vector.broadcast %cst_164 : f32 to vector<4x256xf32>
    %364 = arith.addf %363, %343 : vector<4x256xf32>
    %365 = arith.mulf %362, %364 : vector<4x256xf32>
    %366 = arith.addf %365, %344 : vector<4x256xf32>
    %c0_165 = arith.constant 0 : index
    %c0_166 = arith.constant 0 : index
    %367 = vector.load %arg9[%c0_165, %c0_166] : memref<8x4xbf16, #tpu.memory_space<vmem>>, vector<8x4xbf16>
    %368 = arith.truncf %366 : vector<4x256xf32> to vector<4x256xbf16>
    %cst_167 = arith.constant dense<0.000000e+00> : vector<8x256xf32>
    %369 = tpu.matmul %367, %368, %cst_167 {dimension_numbers = #tpu.dot_dimension_numbers<[1], [0], [0], [1], [0, 0, 1, 1], [], []>} : vector<8x4xbf16>, vector<4x256xbf16>, vector<8x256xf32> -> vector<8x256xf32>
    %370 = arith.addf %369, %342 : vector<8x256xf32>
    %c0_168 = arith.constant 0 : index
    %c0_169 = arith.constant 0 : index
    %c0_170 = arith.constant 0 : index
    %371 = vector.load %arg10[%c0_168, %c0_169, %c0_170] : memref<1x8x256xf32, #tpu.memory_space<vmem>>, vector<1x8x256xf32>
    %372 = vector.shape_cast %371 : vector<1x8x256xf32> to vector<8x256xf32>
    %373 = vector.shape_cast %370 : vector<8x256xf32> to vector<1x8x256xf32>
    tpu.vector_store %arg10[%c0_168, %c0_169, %c0_170], %373 {strides = array<i32>} : memref<1x8x256xf32, #tpu.memory_space<vmem>>, vector<1x8x256xf32>,
    return
  }
  func.func @transform_0(%arg0: i32) -> (i32, i32, i32) {
    %c0_i32 = arith.constant 0 : i32
    %c0_i32_0 = arith.constant 0 : i32
    %c0_i32_1 = arith.constant 0 : i32
    return %arg0, %c0_i32, %c0_i32_0 : i32, i32, i32
  }
  func.func @transform_1(%arg0: i32) -> (i32, i32, i32) {
    %c0_i32 = arith.constant 0 : i32
    %c0_i32_0 = arith.constant 0 : i32
    %c0_i32_1 = arith.constant 0 : i32
    return %arg0, %c0_i32, %c0_i32_0 : i32, i32, i32
  }
  func.func @transform_2(%arg0: i32) -> (i32, i32, i32) {
    %c0_i32 = arith.constant 0 : i32
    %c0_i32_0 = arith.constant 0 : i32
    %c0_i32_1 = arith.constant 0 : i32
    %c0_i32_2 = arith.constant 0 : i32
    return %c0_i32, %c0_i32_0, %c0_i32_1 : i32, i32, i32
  }
  func.func @transform_3(%arg0: i32) -> (i32, i32) {
    %c0_i32 = arith.constant 0 : i32
    %c0_i32_0 = arith.constant 0 : i32
    %c0_i32_1 = arith.constant 0 : i32
    return %c0_i32, %c0_i32_0 : i32, i32
  }
  func.func @transform_4(%arg0: i32) -> (i32, i32, i32) {
    %c0_i32 = arith.constant 0 : i32
    %c0_i32_0 = arith.constant 0 : i32
    %c0_i32_1 = arith.constant 0 : i32
    %c0_i32_2 = arith.constant 0 : i32
    return %c0_i32, %c0_i32_0, %c0_i32_1 : i32, i32, i32
  }
  func.func @transform_5(%arg0: i32) -> (i32, i32) {
    %c0_i32 = arith.constant 0 : i32
    %c0_i32_0 = arith.constant 0 : i32
    %c0_i32_1 = arith.constant 0 : i32
    return %c0_i32, %c0_i32_0 : i32, i32
  }
  func.func @transform_6(%arg0: i32) -> (i32, i32) {
    %c0_i32 = arith.constant 0 : i32
    %c0_i32_0 = arith.constant 0 : i32
    %c0_i32_1 = arith.constant 0 : i32
    return %c0_i32, %c0_i32_0 : i32, i32
  }
  func.func @transform_7(%arg0: i32) -> (i32, i32) {
    %c0_i32 = arith.constant 0 : i32
    %c0_i32_0 = arith.constant 0 : i32
    %c0_i32_1 = arith.constant 0 : i32
    return %c0_i32, %c0_i32_0 : i32, i32
  }
  func.func @transform_8(%arg0: i32) -> (i32, i32) {
    %c0_i32 = arith.constant 0 : i32
    %c0_i32_0 = arith.constant 0 : i32
    %c0_i32_1 = arith.constant 0 : i32
    return %c0_i32, %c0_i32_0 : i32, i32
  }
  func.func @transform_9(%arg0: i32) -> (i32, i32, i32) {
    %c0_i32 = arith.constant 0 : i32
    %c0_i32_0 = arith.constant 0 : i32
    %c0_i32_1 = arith.constant 0 : i32
    return %arg0, %c0_i32, %c0_i32_0 : i32, i32, i32
  }
}

</mosaic_0001>

<llo_original>
// kernel: tpu_custom_call.1
$region0: #{tpu_custom_call.1}
  #allocation0 [shape = 'u32[]', space=smem, size = 0x4, offset = 0x4, fixed_abs, tag = 'smem constant byte address 0x4 - core index']
  #allocation1 [shape = 'u32[144,128]{1,0:T(1,128)}', space=vmem, size = 0x12000, scoped, tag = 'internal scratch']
  %s0 = inlined_call_operand.vmem [shape: f32[2,4,256], index: 0, kind: input, shape index: {}]
  %s1 = inlined_call_operand.vmem [shape: f32[2,3,256], index: 1, kind: input, shape index: {}]
  %s2 = inlined_call_operand.vmem [shape: bf16[9,1,256], index: 2, kind: input, shape index: {}]
  %s3 = inlined_call_operand.vmem [shape: bf16[384,28], index: 3, kind: input, shape index: {}]
  %s4 = inlined_call_operand.vmem [shape: bf16[9,24,384], index: 4, kind: input, shape index: {}]
  %s5 = inlined_call_operand.vmem [shape: f32[24,1], index: 5, kind: input, shape index: {}]
  %s6 = inlined_call_operand.vmem [shape: bf16[4,37], index: 6, kind: input, shape index: {}]
  %s7 = inlined_call_operand.vmem [shape: bf16[8,37], index: 7, kind: input, shape index: {}]
  %s8 = inlined_call_operand.vmem [shape: bf16[8,4], index: 8, kind: input, shape index: {}]
  %s9 = inlined_call_operand.hbm [shape: f32[2,8,256], index: 9, kind: output, shape index: {}]
  %s10 = sld [smem:[#allocation0]]
  $region69: #{tpu_custom_call.1} parent=0
    _
  %s12 = ssub.s32 1, %s10
  %s13 = scalar_select 0, %s12, %s10
  $region1: #{tpu_custom_call.1} parent=0
    #allocation2 [shape = 'u8[16384]{0}', space=vmem, size = 0x4000, scoped, tag = 'output window, operand 0']
    #allocation3 [shape = 's32[2]{0}', space=sflag, size = 0x8, scoped, tag = 'scoped memory for tpu_custom_call.1']
    %14 = vsyncpa [#allocation3], 0
    %s15 = scalar_lea.sflag [#allocation3], 1
    %16 = vsyncpa %s15, 0
    loop: start=0, step=1, limit=4
    $region2: #{tpu_custom_call.1} parent=1 // loop_pre_header
      _
    $region3: #{tpu_custom_call.1} parent=1 // loop_header
      %s18 = sphi 0, %s22
      %p19 = scmp.ge.s32.totalorder %s18, 4
      %s28 = sphi 0, %s30
      %s31 = sphi 0, %s28
      %s32 = sphi 0, %s31
      %s48 = sphi 0, %s32
      %s54 = sphi 0, %s56
      %s57 = sphi 0, %s54
      %s58 = sphi 0, %s57
      %s74 = sphi 0, %s58
      %s78 = sphi 0, %s78
      %s80 = sphi 0, %s78
      %s81 = sphi 0, %s80
      %s95 = sphi 0, %s81
      %s99 = sphi 0, %s99
      %s101 = sphi 0, %s99
      %s102 = sphi 0, %s101
      %s116 = sphi 0, %s102
      %s120 = sphi 0, %s120
      %s122 = sphi 0, %s120
      %s123 = sphi 0, %s122
      %s137 = sphi 0, %s123
      %s141 = sphi 0, %s141
      %s143 = sphi 0, %s141
      %s144 = sphi 0, %s143
      %s158 = sphi 0, %s144
      %s162 = sphi 0, %s162
      %s164 = sphi 0, %s162
      %s165 = sphi 0, %s164
      %s179 = sphi 0, %s165
      %s183 = sphi 0, %s183
      %s185 = sphi 0, %s183
      %s186 = sphi 0, %s185
      %s200 = sphi 0, %s186
      %s204 = sphi 0, %s204
      %s206 = sphi 0, %s204
      %s207 = sphi 0, %s206
      %s221 = sphi 0, %s207
      %s227 = sphi 0, %s229
      %s230 = sphi 0, %s227
      %s231 = sphi 0, %s230
      %s247 = sphi 0, %s231
    $region4: #{tpu_custom_call.1} parent=1 // loop_header_branch
      %21 = sbr.rel (%p19) target = $region8
    $region5: #{tpu_custom_call.1} parent=1 // loop_body
      %s23 = ssub.s32 %s18, 1
      %s24 = ssub.s32 %s18, 2
      %s25 = sadd.s32 %s18, 1
      %s26 = ssub.s32 %s18, %s25
      %p27 = scmp.eq.s32.totalorder %s26, 0
      %s29 = sadd.s32 %s28, 1
      %s30 = scalar_select %p27, %s28, %s29
      %p33 = pneg %p27
      %p34 = scmp.eq.s32.totalorder %s18, 1
      %p35 = por %p33, %p34
      %p36 = scmp.ne.s32.totalorder %s28, %s31
      %p37 = scmp.eq.s32.totalorder %s18, 0
      %p38 = por %p36, %p37
      %p39 = scmp.ne.s32.totalorder %s28, %s31
      %p40 = scmp.eq.s32.totalorder %s23, 1
      %p41 = por %p39, %p40
      %p42 = scmp.ne.s32.totalorder %s31, %s32
      %p43 = scmp.eq.s32.totalorder %s23, 0
      %p44 = por %p42, %p43
      %p45 = scmp.ne.s32.totalorder %s31, %s32
      %p46 = scmp.eq.s32.totalorder %s24, 1
      %p47 = por %p45, %p46
      %p49 = scmp.ne.s32.totalorder %s32, %s48
      %p50 = scmp.eq.s32.totalorder %s24, 0
      %p51 = por %p49, %p50
      %s52 = ssub.s32 %s18, %s25
      %p53 = scmp.eq.s32.totalorder %s52, 0
      %s55 = sadd.s32 %s54, 1
      %s56 = scalar_select %p53, %s54, %s55
      %p59 = pneg %p53
      %p60 = scmp.eq.s32.totalorder %s18, 1
      %p61 = por %p59, %p60
      %p62 = scmp.ne.s32.totalorder %s54, %s57
      %p63 = scmp.eq.s32.totalorder %s18, 0
      %p64 = por %p62, %p63
      %p65 = scmp.ne.s32.totalorder %s54, %s57
      %p66 = scmp.eq.s32.totalorder %s23, 1
      %p67 = por %p65, %p66
      %p68 = scmp.ne.s32.totalorder %s57, %s58
      %p69 = scmp.eq.s32.totalorder %s23, 0
      %p70 = por %p68, %p69
      %p71 = scmp.ne.s32.totalorder %s57, %s58
      %p72 = scmp.eq.s32.totalorder %s24, 1
      %p73 = por %p71, %p72
      %p75 = scmp.ne.s32.totalorder %s58, %s74
      %p76 = scmp.eq.s32.totalorder %s24, 0
      %p77 = por %p75, %p76
      %s79 = sadd.s32 %s78, 1
      %p82 = scmp.eq.s32.totalorder %s18, 1
      %p83 = scmp.ne.s32.totalorder %s78, %s80
      %p84 = scmp.eq.s32.totalorder %s18, 0
      %p85 = por %p83, %p84
      %p86 = scmp.ne.s32.totalorder %s78, %s80
      %p87 = scmp.eq.s32.totalorder %s23, 1
      %p88 = por %p86, %p87
      %p89 = scmp.ne.s32.totalorder %s80, %s81
      %p90 = scmp.eq.s32.totalorder %s23, 0
      %p91 = por %p89, %p90
      %p92 = scmp.ne.s32.totalorder %s80, %s81
      %p93 = scmp.eq.s32.totalorder %s24, 1
      %p94 = por %p92, %p93
      %p96 = scmp.ne.s32.totalorder %s81, %s95
      %p97 = scmp.eq.s32.totalorder %s24, 0
      %p98 = por %p96, %p97
      %s100 = sadd.s32 %s99, 1
      %p103 = scmp.eq.s32.totalorder %s18, 1
      %p104 = scmp.ne.s32.totalorder %s99, %s101
      %p105 = scmp.eq.s32.totalorder %s18, 0
      %p106 = por %p104, %p105
      %p107 = scmp.ne.s32.totalorder %s99, %s101
      %p108 = scmp.eq.s32.totalorder %s23, 1
      %p109 = por %p107, %p108
      %p110 = scmp.ne.s32.totalorder %s101, %s102
      %p111 = scmp.eq.s32.totalorder %s23, 0
      %p112 = por %p110, %p111
      %p113 = scmp.ne.s32.totalorder %s101, %s102
      %p114 = scmp.eq.s32.totalorder %s24, 1
      %p115 = por %p113, %p114
      %p117 = scmp.ne.s32.totalorder %s102, %s116
      %p118 = scmp.eq.s32.totalorder %s24, 0
      %p119 = por %p117, %p118
      %s121 = sadd.s32 %s120, 1
      %p124 = scmp.eq.s32.totalorder %s18, 1
      %p125 = scmp.ne.s32.totalorder %s120, %s122
      %p126 = scmp.eq.s32.totalorder %s18, 0
      %p127 = por %p125, %p126
      %p128 = scmp.ne.s32.totalorder %s120, %s122
      %p129 = scmp.eq.s32.totalorder %s23, 1
      %p130 = por %p128, %p129
      %p131 = scmp.ne.s32.totalorder %s122, %s123
      %p132 = scmp.eq.s32.totalorder %s23, 0
      %p133 = por %p131, %p132
      %p134 = scmp.ne.s32.totalorder %s122, %s123
      %p135 = scmp.eq.s32.totalorder %s24, 1
      %p136 = por %p134, %p135
      %p138 = scmp.ne.s32.totalorder %s123, %s137
      %p139 = scmp.eq.s32.totalorder %s24, 0
      %p140 = por %p138, %p139
      %s142 = sadd.s32 %s141, 1
      %p145 = scmp.eq.s32.totalorder %s18, 1
      %p146 = scmp.ne.s32.totalorder %s141, %s143
      %p147 = scmp.eq.s32.totalorder %s18, 0
      %p148 = por %p146, %p147
      %p149 = scmp.ne.s32.totalorder %s141, %s143
      %p150 = scmp.eq.s32.totalorder %s23, 1
      %p151 = por %p149, %p150
      %p152 = scmp.ne.s32.totalorder %s143, %s144
      %p153 = scmp.eq.s32.totalorder %s23, 0
      %p154 = por %p152, %p153
      %p155 = scmp.ne.s32.totalorder %s143, %s144
      %p156 = scmp.eq.s32.totalorder %s24, 1
      %p157 = por %p155, %p156
      %p159 = scmp.ne.s32.totalorder %s144, %s158
      %p160 = scmp.eq.s32.totalorder %s24, 0
      %p161 = por %p159, %p160
      %s163 = sadd.s32 %s162, 1
      %p166 = scmp.eq.s32.totalorder %s18, 1
      %p167 = scmp.ne.s32.totalorder %s162, %s164
      %p168 = scmp.eq.s32.totalorder %s18, 0
      %p169 = por %p167, %p168
      %p170 = scmp.ne.s32.totalorder %s162, %s164
      %p171 = scmp.eq.s32.totalorder %s23, 1
      %p172 = por %p170, %p171
      %p173 = scmp.ne.s32.totalorder %s164, %s165
      %p174 = scmp.eq.s32.totalorder %s23, 0
      %p175 = por %p173, %p174
      %p176 = scmp.ne.s32.totalorder %s164, %s165
      %p177 = scmp.eq.s32.totalorder %s24, 1
      %p178 = por %p176, %p177
      %p180 = scmp.ne.s32.totalorder %s165, %s179
      %p181 = scmp.eq.s32.totalorder %s24, 0
      %p182 = por %p180, %p181
      %s184 = sadd.s32 %s183, 1
      %p187 = scmp.eq.s32.totalorder %s18, 1
      %p188 = scmp.ne.s32.totalorder %s183, %s185
      %p189 = scmp.eq.s32.totalorder %s18, 0
      %p190 = por %p188, %p189
      %p191 = scmp.ne.s32.totalorder %s183, %s185
      %p192 = scmp.eq.s32.totalorder %s23, 1
      %p193 = por %p191, %p192
      %p194 = scmp.ne.s32.totalorder %s185, %s186
      %p195 = scmp.eq.s32.totalorder %s23, 0
      %p196 = por %p194, %p195
      %p197 = scmp.ne.s32.totalorder %s185, %s186
      %p198 = scmp.eq.s32.totalorder %s24, 1
      %p199 = por %p197, %p198
      %p201 = scmp.ne.s32.totalorder %s186, %s200
      %p202 = scmp.eq.s32.totalorder %s24, 0
      %p203 = por %p201, %p202
      %s205 = sadd.s32 %s204, 1
      %p208 = scmp.eq.s32.totalorder %s18, 1
      %p209 = scmp.ne.s32.totalorder %s204, %s206
      %p210 = scmp.eq.s32.totalorder %s18, 0
      %p211 = por %p209, %p210
      %p212 = scmp.ne.s32.totalorder %s204, %s206
      %p213 = scmp.eq.s32.totalorder %s23, 1
      %p214 = por %p212, %p213
      %p215 = scmp.ne.s32.totalorder %s206, %s207
      %p216 = scmp.eq.s32.totalorder %s23, 0
      %p217 = por %p215, %p216
      %p218 = scmp.ne.s32.totalorder %s206, %s207
      %p219 = scmp.eq.s32.totalorder %s24, 1
      %p220 = por %p218, %p219
      %p222 = scmp.ne.s32.totalorder %s207, %s221
      %p223 = scmp.eq.s32.totalorder %s24, 0
      %p224 = por %p222, %p223
      %s225 = ssub.s32 %s18, %s25
      %p226 = scmp.eq.s32.totalorder %s225, 0
      %s228 = sadd.s32 %s227, 1
      %s229 = scalar_select %p226, %s227, %s228
      %p232 = pneg %p226
      %p233 = scmp.eq.s32.totalorder %s18, 1
      %p234 = por %p232, %p233
      %p235 = scmp.ne.s32.totalorder %s227, %s230
      %p236 = scmp.eq.s32.totalorder %s18, 0
      %p237 = por %p235, %p236
      %p238 = scmp.ne.s32.totalorder %s227, %s230
      %p239 = scmp.eq.s32.totalorder %s23, 1
      %p240 = por %p238, %p239
      %p241 = scmp.ne.s32.totalorder %s230, %s231
      %p242 = scmp.eq.s32.totalorder %s23, 0
      %p243 = por %p241, %p242
      %p244 = scmp.ne.s32.totalorder %s230, %s231
      %p245 = scmp.eq.s32.totalorder %s24, 1
      %p246 = por %p244, %p245
      %p248 = scmp.ne.s32.totalorder %s231, %s247
      %p249 = scmp.eq.s32.totalorder %s24, 0
      %p250 = por %p248, %p249
      %p251 = scmp.le.s32.totalorder 1, %s18
      %p252 = scmp.lt.s32.totalorder %s18, 3
      %p253 = pnand %p251, %p252
      %p254 = pneg %p253
      // Predicated region
      $region9: #{tpu_custom_call.1} parent=5 // pred_check
        _
      $region10: #{tpu_custom_call.1} parent=5 // pred_check_branch
        %256 = sbr.rel (%p253) target = $region12
      $region11: #{tpu_custom_call.1} parent=5 // pred_region
        %s257 = ssub.s32 %s18, 1
        // Predicated region
        $region13: #{tpu_custom_call.1} parent=11 // pred_check
          %p258 = pneg %p91
        $region14: #{tpu_custom_call.1} parent=11 // pred_check_branch
          %260 = sbr.rel (%p258) target = $region16
        $region15: #{tpu_custom_call.1} parent=11 // pred_region
          _
        $region16: #{tpu_custom_call.1} parent=11 // pred_fallthru
          _
        // Predicated region
        $region17: #{tpu_custom_call.1} parent=11 // pred_check
          %p261 = pneg %p112
        $region18: #{tpu_custom_call.1} parent=11 // pred_check_branch
          %263 = sbr.rel (%p261) target = $region20
        $region19: #{tpu_custom_call.1} parent=11 // pred_region
          _
        $region20: #{tpu_custom_call.1} parent=11 // pred_fallthru
          _
        // Predicated region
        $region21: #{tpu_custom_call.1} parent=11 // pred_check
          %p264 = pneg %p133
        $region22: #{tpu_custom_call.1} parent=11 // pred_check_branch
          %266 = sbr.rel (%p264) target = $region24
        $region23: #{tpu_custom_call.1} parent=11 // pred_region
          _
        $region24: #{tpu_custom_call.1} parent=11 // pred_fallthru
          _
        // Predicated region
        $region25: #{tpu_custom_call.1} parent=11 // pred_check
          %p267 = pneg %p154
        $region26: #{tpu_custom_call.1} parent=11 // pred_check_branch
          %269 = sbr.rel (%p267) target = $region28
        $region27: #{tpu_custom_call.1} parent=11 // pred_region
          _
        $region28: #{tpu_custom_call.1} parent=11 // pred_fallthru
          _
        // Predicated region
        $region29: #{tpu_custom_call.1} parent=11 // pred_check
          %p270 = pneg %p175
        $region30: #{tpu_custom_call.1} parent=11 // pred_check_branch
          %272 = sbr.rel (%p270) target = $region32
        $region31: #{tpu_custom_call.1} parent=11 // pred_region
          _
        $region32: #{tpu_custom_call.1} parent=11 // pred_fallthru
          _
        // Predicated region
        $region33: #{tpu_custom_call.1} parent=11 // pred_check
          %p273 = pneg %p196
        $region34: #{tpu_custom_call.1} parent=11 // pred_check_branch
          %275 = sbr.rel (%p273) target = $region36
        $region35: #{tpu_custom_call.1} parent=11 // pred_region
          _
        $region36: #{tpu_custom_call.1} parent=11 // pred_fallthru
          _
        // Predicated region
        $region37: #{tpu_custom_call.1} parent=11 // pred_check
          %p276 = pneg %p217
        $region38: #{tpu_custom_call.1} parent=11 // pred_check_branch
          %278 = sbr.rel (%p276) target = $region40
        $region39: #{tpu_custom_call.1} parent=11 // pred_region
          _
        $region40: #{tpu_custom_call.1} parent=11 // pred_fallthru
          _
      $region12: #{tpu_custom_call.1} parent=5 // pred_fallthru
        _
      %p279 = scmp.lt.s32.totalorder %s18, 2
      // Predicated region
      $region41: #{tpu_custom_call.1} parent=5 // pred_check
        %p280 = pneg %p279
      $region42: #{tpu_custom_call.1} parent=5 // pred_check_branch
        %282 = sbr.rel (%p280) target = $region44
      $region43: #{tpu_custom_call.1} parent=5 // pred_region
        // Predicated region
        $region45: #{tpu_custom_call.1} parent=43 // pred_check
          %p283 = pneg %p38
        $region46: #{tpu_custom_call.1} parent=43 // pred_check_branch
          %285 = sbr.rel (%p283) target = $region48
        $region47: #{tpu_custom_call.1} parent=43 // pred_region
          %p286 = scmp.lt.s32.totalorder %s18, 1
          %s287 = scalar_select %p286, %s18, 1
          %s288 = smul.addr %s287, 2
          %s289 = smul.addr %s288, 4
          %s290 = scalar_lea.vmem %s0, %s289
        $region48: #{tpu_custom_call.1} parent=43 // pred_fallthru
          _
        // Predicated region
        $region49: #{tpu_custom_call.1} parent=43 // pred_check
          %p291 = pneg %p64
        $region50: #{tpu_custom_call.1} parent=43 // pred_check_branch
          %293 = sbr.rel (%p291) target = $region52
        $region51: #{tpu_custom_call.1} parent=43 // pred_region
          %p294 = scmp.lt.s32.totalorder %s18, 1
          %s295 = scalar_select %p294, %s18, 1
          %s296 = smul.addr %s295, 2
          %s297 = smul.addr %s296, 4
          %s298 = scalar_lea.vmem %s1, %s297
        $region52: #{tpu_custom_call.1} parent=43 // pred_fallthru
          _
      $region44: #{tpu_custom_call.1} parent=5 // pred_fallthru
        _
      %p299 = scmp.le.s32.totalorder 1, %s18
      %p300 = scmp.lt.s32.totalorder %s18, 3
      %p301 = pnand %p299, %p300
      %p302 = pneg %p301
      // Predicated region
      $region53: #{tpu_custom_call.1} parent=5 // pred_check
        _
      $region54: #{tpu_custom_call.1} parent=5 // pred_check_branch
        %304 = sbr.rel (%p301) target = $region56
      $region55: #{tpu_custom_call.1} parent=5 // pred_region
        %s305 = ssub.s32 %s18, 1
        %p306 = scmp.lt.s32.totalorder %s23, 1
        %s307 = scalar_select %p306, %s23, 1
        %s308 = smul.addr %s307, 2
        %s309 = smul.addr %s308, 4
        %s310 = scalar_lea.vmem %s0, %s309
        %p311 = pneg %p44
        %p312 = pneg %p41
        %p313 = scmp.lt.s32.totalorder %s23, 1
        %s314 = scalar_select %p313, %s23, 1
        %s315 = smul.addr %s314, 2
        %s316 = smul.addr %s315, 4
        %s317 = scalar_lea.vmem %s1, %s316
        %p318 = pneg %p70
        %p319 = pneg %p67
        %p320 = pneg %p91
        %p321 = pneg %p88
        %p322 = pneg %p112
        %p323 = pneg %p109
        %p324 = pneg %p133
        %p325 = pneg %p130
        %p326 = pneg %p154
        %p327 = pneg %p151
        %p328 = pneg %p175
        %p329 = pneg %p172
        %p330 = pneg %p196
        %p331 = pneg %p193
        %p332 = pneg %p217
        %p333 = pneg %p214
        %p334 = pneg %p243
        %p335 = pneg %p240
        %s336 = sand.u32 %s230, 1
        %s337 = scalar_lea.sflag [#allocation3], %s336
        %s338 = sand.u32 %s230, 1
        %s339 = smul.addr %s338, 16
        %s340 = scalar_lea.vmem [#allocation2], %s339
        %p341 = scmp.lt.s32.totalorder %s23, 1
        %s342 = scalar_select %p341, %s23, 1
        %s343 = smul.addr %s342, 2
        %s344 = smul.addr %s343, 4
        %s345 = scalar_lea.vmem %s0, %s344
        %p346 = scmp.lt.s32.totalorder %s23, 1
        %s347 = scalar_select %p346, %s23, 1
        %s348 = smul.addr %s347, 2
        %s349 = smul.addr %s348, 4
        %s350 = scalar_lea.vmem %s1, %s349
        %v353 = vld [vmem:[%s350] sm:$0x77]
        %v355 = vcombine.high %v353, %v353
        %v357 = vpack.c.bf16 %v353, %v353
        %v358 = vpack.c.bf16 %v355, %v355
        %360 = vrot.lane.b32.xlu0 %v358, 17
        %v361 = vpop.permute.xlu0 %360
        %363 = vrot.lane.b32.xlu0 %v357, 17
        %v364 = vpop.permute.xlu0 %363
        %vm365 = vcmask 138240
        %v366 = vsel %vm365, %v364, %v361
        %vm368 = vcmask 138240
        %v371 = vsel %vm368, %v361, %v364
        %v373 = vld [vmem:[%s2] sm:$0x3]
        %v376 = vunpack.c.l.s4 1966171168
        %v377 = vunpack.c.0.s8 %v376
        %v378 = vlaneseq
        %v379 = vshrl.u32 %v378, 7
        %v380 = vsub.s32 %v377, %v379
        %v381 = vrot.slane %v373, %v380
        %v382 = vcombine.high %v381, %v381
        %v384 = vunpack.c.l.s4 1966171168
        %v385 = vunpack.c.0.s8 %v384
        %v386 = vlaneseq
        %v387 = vshrl.u32 %v386, 7
        %v388 = vsub.s32 %v385, %v387
        %v389 = vrot.slane %v381, %v388
        %v391 = vunpack.c.l.s4 1966171168
        %v392 = vunpack.c.0.s8 %v391
        %v393 = vlaneseq
        %v394 = vshrl.u32 %v393, 7
        %v395 = vsub.s32 %v392, %v394
        %v396 = vrot.slane %v382, %v395
        %v398 = vpack.i.b16 %v389, %v389
        %v400 = vlaneseq
        %v401 = vshrl.u32 %v400, 7
        %v402 = vsub.s32 0, %v401
        %v403 = vrot.slane %v398, %v402
        %v405 = vpack.i.b16 %v396, %v396
        %v407 = vlaneseq
        %v408 = vshrl.u32 %v407, 7
        %v409 = vsub.s32 0, %v408
        %v410 = vrot.slane %v405, %v409
        %v411 = vmul.bf16 %v371, %v403
        %v412 = vmul.bf16 %v366, %v410
        %413 = vrot.lane.b32.xlu0 %v358, 16
        %v414 = vpop.permute.xlu0 %413
        %415 = vrot.lane.b32.xlu0 %v357, 16
        %v416 = vpop.permute.xlu0 %415
        %vm417 = vcmask 130048
        %v418 = vsel %vm417, %v416, %v414
        %vm420 = vcmask 130048
        %v423 = vsel %vm420, %v414, %v416
        %s425 = scalar_lea.vmem %s2, 2
        %v426 = vld [vmem:[%s425] sm:$0x3]
        %v429 = vunpack.c.l.s4 1966171168
        %v430 = vunpack.c.0.s8 %v429
        %v431 = vlaneseq
        %v432 = vshrl.u32 %v431, 7
        %v433 = vsub.s32 %v430, %v432
        %v434 = vrot.slane %v426, %v433
        %v435 = vcombine.high %v434, %v434
        %v437 = vunpack.c.l.s4 1966171168
        %v438 = vunpack.c.0.s8 %v437
        %v439 = vlaneseq
        %v440 = vshrl.u32 %v439, 7
        %v441 = vsub.s32 %v438, %v440
        %v442 = vrot.slane %v434, %v441
        %v444 = vunpack.c.l.s4 1966171168
        %v445 = vunpack.c.0.s8 %v444
        %v446 = vlaneseq
        %v447 = vshrl.u32 %v446, 7
        %v448 = vsub.s32 %v445, %v447
        %v449 = vrot.slane %v435, %v448
        %v451 = vpack.i.b16 %v442, %v442
        %v453 = vlaneseq
        %v454 = vshrl.u32 %v453, 7
        %v455 = vsub.s32 0, %v454
        %v456 = vrot.slane %v451, %v455
        %v458 = vpack.i.b16 %v449, %v449
        %v460 = vlaneseq
        %v461 = vshrl.u32 %v460, 7
        %v462 = vsub.s32 0, %v461
        %v463 = vrot.slane %v458, %v462
        %v464 = vmul.bf16 %v423, %v456
        %v465 = vmul.bf16 %v418, %v463
        %466 = vrot.lane.b32.xlu0 %v358, 15
        %v467 = vpop.permute.xlu0 %466
        %468 = vrot.lane.b32.xlu0 %v357, 15
        %v469 = vpop.permute.xlu0 %468
        %vm470 = vcmask 121856
        %v471 = vsel %vm470, %v469, %v467
        %vm473 = vcmask 121856
        %v476 = vsel %vm473, %v467, %v469
        %s478 = scalar_lea.vmem %s2, 4
        %v479 = vld [vmem:[%s478] sm:$0x3]
        %v482 = vunpack.c.l.s4 1966171168
        %v483 = vunpack.c.0.s8 %v482
        %v484 = vlaneseq
        %v485 = vshrl.u32 %v484, 7
        %v486 = vsub.s32 %v483, %v485
        %v487 = vrot.slane %v479, %v486
        %v488 = vcombine.high %v487, %v487
        %v490 = vunpack.c.l.s4 1966171168
        %v491 = vunpack.c.0.s8 %v490
        %v492 = vlaneseq
        %v493 = vshrl.u32 %v492, 7
        %v494 = vsub.s32 %v491, %v493
        %v495 = vrot.slane %v487, %v494
        %v497 = vunpack.c.l.s4 1966171168
        %v498 = vunpack.c.0.s8 %v497
        %v499 = vlaneseq
        %v500 = vshrl.u32 %v499, 7
        %v501 = vsub.s32 %v498, %v500
        %v502 = vrot.slane %v488, %v501
        %v504 = vpack.i.b16 %v495, %v495
        %v506 = vlaneseq
        %v507 = vshrl.u32 %v506, 7
        %v508 = vsub.s32 0, %v507
        %v509 = vrot.slane %v504, %v508
        %v511 = vpack.i.b16 %v502, %v502
        %v513 = vlaneseq
        %v514 = vshrl.u32 %v513, 7
        %v515 = vsub.s32 0, %v514
        %v516 = vrot.slane %v511, %v515
        %v517 = vmul.bf16 %v476, %v509
        %v518 = vmul.bf16 %v471, %v516
        %519 = vrot.lane.b32.xlu0 %v358, 1
        %v520 = vpop.permute.xlu0 %519
        %521 = vrot.lane.b32.xlu0 %v357, 1
        %v522 = vpop.permute.xlu0 %521
        %vm523 = vcmask 7168
        %v524 = vsel %vm523, %v522, %v520
        %vm526 = vcmask 7168
        %v529 = vsel %vm526, %v520, %v522
        %s531 = scalar_lea.vmem %s2, 6
        %v532 = vld [vmem:[%s531] sm:$0x3]
        %v535 = vunpack.c.l.s4 1966171168
        %v536 = vunpack.c.0.s8 %v535
        %v537 = vlaneseq
        %v538 = vshrl.u32 %v537, 7
        %v539 = vsub.s32 %v536, %v538
        %v540 = vrot.slane %v532, %v539
        %v541 = vcombine.high %v540, %v540
        %v543 = vunpack.c.l.s4 1966171168
        %v544 = vunpack.c.0.s8 %v543
        %v545 = vlaneseq
        %v546 = vshrl.u32 %v545, 7
        %v547 = vsub.s32 %v544, %v546
        %v548 = vrot.slane %v540, %v547
        %v550 = vunpack.c.l.s4 1966171168
        %v551 = vunpack.c.0.s8 %v550
        %v552 = vlaneseq
        %v553 = vshrl.u32 %v552, 7
        %v554 = vsub.s32 %v551, %v553
        %v555 = vrot.slane %v541, %v554
        %v557 = vpack.i.b16 %v548, %v548
        %v559 = vlaneseq
        %v560 = vshrl.u32 %v559, 7
        %v561 = vsub.s32 0, %v560
        %v562 = vrot.slane %v557, %v561
        %v564 = vpack.i.b16 %v555, %v555
        %v566 = vlaneseq
        %v567 = vshrl.u32 %v566, 7
        %v568 = vsub.s32 0, %v567
        %v569 = vrot.slane %v564, %v568
        %v570 = vmul.bf16 %v529, %v562
        %v571 = vmul.bf16 %v524, %v569
        %572 = vrot.lane.b32.xlu0 %v357, 127
        %v573 = vpop.permute.xlu0 %572
        %574 = vrot.lane.b32.xlu0 %v358, 127
        %v575 = vpop.permute.xlu0 %574
        %vm576 = vcmask 1039360
        %v577 = vsel %vm576, %v573, %v575
        %vm579 = vcmask 1039360
        %v582 = vsel %vm579, %v575, %v573
        %s584 = scalar_lea.vmem %s2, 10
        %v585 = vld [vmem:[%s584] sm:$0x3]
        %v588 = vunpack.c.l.s4 1966171168
        %v589 = vunpack.c.0.s8 %v588
        %v590 = vlaneseq
        %v591 = vshrl.u32 %v590, 7
        %v592 = vsub.s32 %v589, %v591
        %v593 = vrot.slane %v585, %v592
        %v594 = vcombine.high %v593, %v593
        %v596 = vunpack.c.l.s4 1966171168
        %v597 = vunpack.c.0.s8 %v596
        %v598 = vlaneseq
        %v599 = vshrl.u32 %v598, 7
        %v600 = vsub.s32 %v597, %v599
        %v601 = vrot.slane %v593, %v600
        %v603 = vunpack.c.l.s4 1966171168
        %v604 = vunpack.c.0.s8 %v603
        %v605 = vlaneseq
        %v606 = vshrl.u32 %v605, 7
        %v607 = vsub.s32 %v604, %v606
        %v608 = vrot.slane %v594, %v607
        %v610 = vpack.i.b16 %v601, %v601
        %v612 = vlaneseq
        %v613 = vshrl.u32 %v612, 7
        %v614 = vsub.s32 0, %v613
        %v615 = vrot.slane %v610, %v614
        %v617 = vpack.i.b16 %v608, %v608
        %v619 = vlaneseq
        %v620 = vshrl.u32 %v619, 7
        %v621 = vsub.s32 0, %v620
        %v622 = vrot.slane %v617, %v621
        %v623 = vmul.bf16 %v577, %v615
        %v624 = vmul.bf16 %v582, %v622
        %625 = vrot.lane.b32.xlu0 %v357, 113
        %v626 = vpop.permute.xlu0 %625
        %627 = vrot.lane.b32.xlu0 %v358, 113
        %v628 = vpop.permute.xlu0 %627
        %vm629 = vcmask 924672
        %v630 = vsel %vm629, %v626, %v628
        %vm632 = vcmask 924672
        %v635 = vsel %vm632, %v628, %v626
        %s637 = scalar_lea.vmem %s2, 12
        %v638 = vld [vmem:[%s637] sm:$0x3]
        %v641 = vunpack.c.l.s4 1966171168
        %v642 = vunpack.c.0.s8 %v641
        %v643 = vlaneseq
        %v644 = vshrl.u32 %v643, 7
        %v645 = vsub.s32 %v642, %v644
        %v646 = vrot.slane %v638, %v645
        %v647 = vcombine.high %v646, %v646
        %v649 = vunpack.c.l.s4 1966171168
        %v650 = vunpack.c.0.s8 %v649
        %v651 = vlaneseq
        %v652 = vshrl.u32 %v651, 7
        %v653 = vsub.s32 %v650, %v652
        %v654 = vrot.slane %v646, %v653
        %v656 = vunpack.c.l.s4 1966171168
        %v657 = vunpack.c.0.s8 %v656
        %v658 = vlaneseq
        %v659 = vshrl.u32 %v658, 7
        %v660 = vsub.s32 %v657, %v659
        %v661 = vrot.slane %v647, %v660
        %v663 = vpack.i.b16 %v654, %v654
        %v665 = vlaneseq
        %v666 = vshrl.u32 %v665, 7
        %v667 = vsub.s32 0, %v666
        %v668 = vrot.slane %v663, %v667
        %v670 = vpack.i.b16 %v661, %v661
        %v672 = vlaneseq
        %v673 = vshrl.u32 %v672, 7
        %v674 = vsub.s32 0, %v673
        %v675 = vrot.slane %v670, %v674
        %v676 = vmul.bf16 %v630, %v668
        %v677 = vmul.bf16 %v635, %v675
        %678 = vrot.lane.b32.xlu0 %v357, 112
        %v679 = vpop.permute.xlu0 %678
        %680 = vrot.lane.b32.xlu0 %v358, 112
        %v681 = vpop.permute.xlu0 %680
        %vm682 = vcmask 916480
        %v683 = vsel %vm682, %v679, %v681
        %vm685 = vcmask 916480
        %v688 = vsel %vm685, %v681, %v679
        %s690 = scalar_lea.vmem %s2, 14
        %v691 = vld [vmem:[%s690] sm:$0x3]
        %v694 = vunpack.c.l.s4 1966171168
        %v695 = vunpack.c.0.s8 %v694
        %v696 = vlaneseq
        %v697 = vshrl.u32 %v696, 7
        %v698 = vsub.s32 %v695, %v697
        %v699 = vrot.slane %v691, %v698
        %v700 = vcombine.high %v699, %v699
        %v702 = vunpack.c.l.s4 1966171168
        %v703 = vunpack.c.0.s8 %v702
        %v704 = vlaneseq
        %v705 = vshrl.u32 %v704, 7
        %v706 = vsub.s32 %v703, %v705
        %v707 = vrot.slane %v699, %v706
        %v709 = vunpack.c.l.s4 1966171168
        %v710 = vunpack.c.0.s8 %v709
        %v711 = vlaneseq
        %v712 = vshrl.u32 %v711, 7
        %v713 = vsub.s32 %v710, %v712
        %v714 = vrot.slane %v700, %v713
        %v716 = vpack.i.b16 %v707, %v707
        %v718 = vlaneseq
        %v719 = vshrl.u32 %v718, 7
        %v720 = vsub.s32 0, %v719
        %v721 = vrot.slane %v716, %v720
        %v723 = vpack.i.b16 %v714, %v714
        %v725 = vlaneseq
        %v726 = vshrl.u32 %v725, 7
        %v727 = vsub.s32 0, %v726
        %v728 = vrot.slane %v723, %v727
        %v729 = vmul.bf16 %v683, %v721
        %v730 = vmul.bf16 %v688, %v728
        %731 = vrot.lane.b32.xlu0 %v357, 111
        %v732 = vpop.permute.xlu0 %731
        %733 = vrot.lane.b32.xlu0 %v358, 111
        %v734 = vpop.permute.xlu0 %733
        %vm735 = vcmask 908288
        %v736 = vsel %vm735, %v732, %v734
        %vm738 = vcmask 908288
        %v741 = vsel %vm738, %v734, %v732
        %s743 = scalar_lea.vmem %s2, 16
        %v744 = vld [vmem:[%s743] sm:$0x3]
        %v747 = vunpack.c.l.s4 1966171168
        %v748 = vunpack.c.0.s8 %v747
        %v749 = vlaneseq
        %v750 = vshrl.u32 %v749, 7
        %v751 = vsub.s32 %v748, %v750
        %v752 = vrot.slane %v744, %v751
        %v753 = vcombine.high %v752, %v752
        %v755 = vunpack.c.l.s4 1966171168
        %v756 = vunpack.c.0.s8 %v755
        %v757 = vlaneseq
        %v758 = vshrl.u32 %v757, 7
        %v759 = vsub.s32 %v756, %v758
        %v760 = vrot.slane %v752, %v759
        %v762 = vunpack.c.l.s4 1966171168
        %v763 = vunpack.c.0.s8 %v762
        %v764 = vlaneseq
        %v765 = vshrl.u32 %v764, 7
        %v766 = vsub.s32 %v763, %v765
        %v767 = vrot.slane %v753, %v766
        %v769 = vpack.i.b16 %v760, %v760
        %v771 = vlaneseq
        %v772 = vshrl.u32 %v771, 7
        %v773 = vsub.s32 0, %v772
        %v774 = vrot.slane %v769, %v773
        %v776 = vpack.i.b16 %v767, %v767
        %v778 = vlaneseq
        %v779 = vshrl.u32 %v778, 7
        %v780 = vsub.s32 0, %v779
        %v781 = vrot.slane %v776, %v780
        %v782 = vmul.bf16 %v736, %v774
        %v783 = vmul.bf16 %v741, %v781
        %v785 = vshrl.u32 %v464, 16
        %v787 = vrot.slane %v785, 6
        %v788 = vshll.u32 %v464, 16
        %v790 = vrot.slane %v788, 7
        %v791 = vor.u32 %v787, %v790
        %v793 = vshrl.u32 %v465, 16
        %v795 = vrot.slane %v793, 6
        %v796 = vshll.u32 %v465, 16
        %v798 = vrot.slane %v796, 7
        %v799 = vor.u32 %v795, %v798
        %v804 = vrot.slane %v517, 5
        %v805 = vrot.slane %v518, 5
        %v807 = vshrl.u32 %v570, 16
        %v809 = vrot.slane %v807, 3
        %v810 = vshll.u32 %v570, 16
        %v812 = vrot.slane %v810, 4
        %v813 = vor.u32 %v809, %v812
        %v815 = vshrl.u32 %v571, 16
        %v817 = vrot.slane %v815, 3
        %v818 = vshll.u32 %v571, 16
        %v820 = vrot.slane %v818, 4
        %v821 = vor.u32 %v817, %v820
        %v824 = vrot.slane %v357, 2
        %v825 = vrot.slane %v358, 2
        %v827 = vshll.u32 %v623, 16
        %v829 = vrot.slane %v827, 1
        %v831 = vshll.u32 %v624, 16
        %v833 = vrot.slane %v831, 1
        %v834 = vshrl.u32 %v623, 16
        %v836 = vor.u32 %v834, %v829
        %v837 = vshrl.u32 %v624, 16
        %v839 = vor.u32 %v837, %v833
        %v844 = vrot.slane %v676, 7
        %v845 = vrot.slane %v677, 7
        %v847 = vshrl.u32 %v729, 16
        %v849 = vrot.slane %v847, 5
        %v850 = vshll.u32 %v729, 16
        %v852 = vrot.slane %v850, 6
        %v853 = vor.u32 %v849, %v852
        %v855 = vshrl.u32 %v730, 16
        %v857 = vrot.slane %v855, 5
        %v858 = vshll.u32 %v730, 16
        %v860 = vrot.slane %v858, 6
        %v861 = vor.u32 %v857, %v860
        %v866 = vrot.slane %v782, 4
        %v867 = vrot.slane %v783, 4
        %vm868 = vcmask 1041408
        %vm869 = vsmask.f32 1280
        %vm870 = vmand %vm868, %vm869
        %v871 = vsel %vm870, %v411, %v791
        %v872 = vsel %vm870, %v412, %v799
        %vm873 = vcmask 1042432
        %v876 = vsel %vm873, %v871, %v804
        %v880 = vsel %vm873, %v872, %v805
        %vm882 = vcmask 1044480
        %vm883 = vsmask.f32 4352
        %vm884 = vmand %vm882, %vm883
        %v885 = vsel %vm884, %v876, %v813
        %v886 = vsel %vm884, %v880, %v821
        %vm887 = vcmask 1045504
        %v890 = vsel %vm887, %v885, %v824
        %v894 = vsel %vm887, %v886, %v825
        %vm896 = vcmask 1047552
        %vm897 = vsmask.f32 7424
        %vm898 = vmand %vm896, %vm897
        %v899 = vsel %vm898, %v890, %v829
        %v900 = vsel %vm898, %v894, %v833
        %vm901 = vcmask 1040384
        %v904 = vsel %vm901, %v836, %v844
        %v908 = vsel %vm901, %v839, %v845
        %vm910 = vcmask 1042432
        %vm911 = vsmask.f32 2304
        %vm912 = vmand %vm910, %vm911
        %v913 = vsel %vm912, %v904, %v853
        %v914 = vsel %vm912, %v908, %v861
        %vm915 = vcmask 1043456
        %v918 = vsel %vm915, %v913, %v866
        %v922 = vsel %vm915, %v914, %v867
        %vm924 = vcmask 1045504
        %vm925 = vsmask.f32 5376
        %vm926 = vmand %vm924, %vm925
        %v927 = vsel %vm926, %v918, 1065369472
        %v928 = vsel %vm926, %v922, 1065369472
        %v929 = vld [vmem:[%s3] sm:$0xf]
        %v930 = vld [vmem:[%s3 + $0x4] sm:$0xf]
        %v931 = vld [vmem:[%s3 + $0x8] sm:$0xf]
        %v932 = vld [vmem:[%s3 + $0xc] sm:$0xf]
        %v933 = vld [vmem:[%s3 + $0x10] sm:$0xf]
        %v934 = vld [vmem:[%s3 + $0x14] sm:$0xf]
        %v935 = vld [vmem:[%s3 + $0x18] sm:$0xf]
        %v936 = vld [vmem:[%s3 + $0x1c] sm:$0xf]
        %v937 = vld [vmem:[%s3 + $0x20] sm:$0xf]
        %v938 = vld [vmem:[%s3 + $0x24] sm:$0xf]
        %v939 = vld [vmem:[%s3 + $0x28] sm:$0xf]
        %v940 = vld [vmem:[%s3 + $0x2c] sm:$0xf]
        %v941 = vld [vmem:[%s3 + $0x30] sm:$0xf]
        %v942 = vld [vmem:[%s3 + $0x34] sm:$0xf]
        %v943 = vld [vmem:[%s3 + $0x38] sm:$0xf]
        %v944 = vld [vmem:[%s3 + $0x3c] sm:$0xf]
        %v945 = vld [vmem:[%s3 + $0x40] sm:$0xf]
        %v946 = vld [vmem:[%s3 + $0x44] sm:$0xf]
        %v947 = vld [vmem:[%s3 + $0x48] sm:$0xf]
        %v948 = vld [vmem:[%s3 + $0x4c] sm:$0xf]
        %v949 = vld [vmem:[%s3 + $0x50] sm:$0xf]
        %v950 = vld [vmem:[%s3 + $0x54] sm:$0xf]
        %v951 = vld [vmem:[%s3 + $0x58] sm:$0xf]
        %v952 = vld [vmem:[%s3 + $0x5c] sm:$0xf]
        %v953 = vld [vmem:[%s3 + $0x60] sm:$0xf]
        %v954 = vld [vmem:[%s3 + $0x64] sm:$0xf]
        %v955 = vld [vmem:[%s3 + $0x68] sm:$0xf]
        %v956 = vld [vmem:[%s3 + $0x6c] sm:$0xf]
        %v957 = vld [vmem:[%s3 + $0x70] sm:$0xf]
        %v958 = vld [vmem:[%s3 + $0x74] sm:$0xf]
        %v959 = vld [vmem:[%s3 + $0x78] sm:$0xf]
        %v960 = vld [vmem:[%s3 + $0x7c] sm:$0xf]
        %v961 = vld [vmem:[%s3 + $0x80] sm:$0xf]
        %v962 = vld [vmem:[%s3 + $0x84] sm:$0xf]
        %v963 = vld [vmem:[%s3 + $0x88] sm:$0xf]
        %v964 = vld [vmem:[%s3 + $0x8c] sm:$0xf]
        %v965 = vld [vmem:[%s3 + $0x90] sm:$0xf]
        %v966 = vld [vmem:[%s3 + $0x94] sm:$0xf]
        %v967 = vld [vmem:[%s3 + $0x98] sm:$0xf]
        %v968 = vld [vmem:[%s3 + $0x9c] sm:$0xf]
        %v969 = vld [vmem:[%s3 + $0xa0] sm:$0xf]
        %v970 = vld [vmem:[%s3 + $0xa4] sm:$0xf]
        %v971 = vld [vmem:[%s3 + $0xa8] sm:$0xf]
        %v972 = vld [vmem:[%s3 + $0xac] sm:$0xf]
        %v973 = vld [vmem:[%s3 + $0xb0] sm:$0xf]
        %v974 = vld [vmem:[%s3 + $0xb4] sm:$0xf]
        %v975 = vld [vmem:[%s3 + $0xb8] sm:$0xf]
        %v976 = vld [vmem:[%s3 + $0xbc] sm:$0xf]
        %v1025 = vunpack.c.l.b16 %v929
        %v1026 = vunpack.c.l.b16 %v930
        %v1027 = vunpack.c.l.b16 %v931
        %v1028 = vunpack.c.l.b16 %v932
        %v1029 = vunpack.c.l.b16 %v933
        %v1030 = vunpack.c.l.b16 %v934
        %v1031 = vunpack.c.l.b16 %v935
        %v1032 = vunpack.c.l.b16 %v936
        %v1033 = vunpack.c.l.b16 %v937
        %v1034 = vunpack.c.l.b16 %v938
        %v1035 = vunpack.c.l.b16 %v939
        %v1036 = vunpack.c.l.b16 %v940
        %v1037 = vunpack.c.l.b16 %v941
        %v1038 = vunpack.c.l.b16 %v942
        %v1039 = vunpack.c.l.b16 %v943
        %v1040 = vunpack.c.l.b16 %v944
        %v1041 = vunpack.c.l.b16 %v945
        %v1042 = vunpack.c.l.b16 %v946
        %v1043 = vunpack.c.l.b16 %v947
        %v1044 = vunpack.c.l.b16 %v948
        %v1045 = vunpack.c.l.b16 %v949
        %v1046 = vunpack.c.l.b16 %v950
        %v1047 = vunpack.c.l.b16 %v951
        %v1048 = vunpack.c.l.b16 %v952
        %v1049 = vunpack.c.l.b16 %v953
        %v1050 = vunpack.c.l.b16 %v954
        %v1051 = vunpack.c.l.b16 %v955
        %v1052 = vunpack.c.l.b16 %v956
        %v1053 = vunpack.c.l.b16 %v957
        %v1054 = vunpack.c.l.b16 %v958
        %v1055 = vunpack.c.l.b16 %v959
        %v1056 = vunpack.c.l.b16 %v960
        %v1057 = vunpack.c.l.b16 %v961
        %v1058 = vunpack.c.l.b16 %v962
        %v1059 = vunpack.c.l.b16 %v963
        %v1060 = vunpack.c.l.b16 %v964
        %v1061 = vunpack.c.l.b16 %v965
        %v1062 = vunpack.c.l.b16 %v966
        %v1063 = vunpack.c.l.b16 %v967
        %v1064 = vunpack.c.l.b16 %v968
        %v1065 = vunpack.c.l.b16 %v969
        %v1066 = vunpack.c.l.b16 %v970
        %v1067 = vunpack.c.l.b16 %v971
        %v1068 = vunpack.c.l.b16 %v972
        %v1069 = vunpack.c.l.b16 %v973
        %v1070 = vunpack.c.l.b16 %v974
        %v1071 = vunpack.c.l.b16 %v975
        %v1072 = vunpack.c.l.b16 %v976
        %v1073 = vpack.c.b16 %v1026, %v1025
        %v1074 = vpack.c.b16 %v1028, %v1027
        %v1075 = vpack.c.b16 %v1030, %v1029
        %v1076 = vpack.c.b16 %v1032, %v1031
        %v1077 = vpack.c.b16 %v1034, %v1033
        %v1078 = vpack.c.b16 %v1036, %v1035
        %v1079 = vpack.c.b16 %v1038, %v1037
        %v1080 = vpack.c.b16 %v1040, %v1039
        %v1081 = vpack.c.b16 %v1042, %v1041
        %v1082 = vpack.c.b16 %v1044, %v1043
        %v1083 = vpack.c.b16 %v1046, %v1045
        %v1084 = vpack.c.b16 %v1048, %v1047
        %v1085 = vpack.c.b16 %v1050, %v1049
        %v1086 = vpack.c.b16 %v1052, %v1051
        %v1087 = vpack.c.b16 %v1054, %v1053
        %v1088 = vpack.c.b16 %v1056, %v1055
        %v1089 = vpack.c.b16 %v1058, %v1057
        %v1090 = vpack.c.b16 %v1060, %v1059
        %v1091 = vpack.c.b16 %v1062, %v1061
        %v1092 = vpack.c.b16 %v1064, %v1063
        %v1093 = vpack.c.b16 %v1066, %v1065
        %v1094 = vpack.c.b16 %v1068, %v1067
        %v1095 = vpack.c.b16 %v1070, %v1069
        %v1096 = vpack.c.b16 %v1072, %v1071
        %vm1097 = vcmask 228352
        %v1099 = vsel %vm1097, %v1073, 0
        %v1102 = vsel %vm1097, %v1074, 0
        %v1105 = vsel %vm1097, %v1075, 0
        %v1108 = vsel %vm1097, %v1076, 0
        %v1111 = vsel %vm1097, %v1077, 0
        %v1114 = vsel %vm1097, %v1078, 0
        %v1117 = vsel %vm1097, %v1079, 0
        %v1120 = vsel %vm1097, %v1080, 0
        %v1123 = vsel %vm1097, %v1081, 0
        %v1126 = vsel %vm1097, %v1082, 0
        %v1129 = vsel %vm1097, %v1083, 0
        %v1132 = vsel %vm1097, %v1084, 0
        %v1135 = vsel %vm1097, %v1085, 0
        %v1138 = vsel %vm1097, %v1086, 0
        %v1141 = vsel %vm1097, %v1087, 0
        %v1144 = vsel %vm1097, %v1088, 0
        %v1147 = vsel %vm1097, %v1089, 0
        %v1150 = vsel %vm1097, %v1090, 0
        %v1153 = vsel %vm1097, %v1091, 0
        %v1156 = vsel %vm1097, %v1092, 0
        %v1159 = vsel %vm1097, %v1093, 0
        %v1162 = vsel %vm1097, %v1094, 0
        %v1165 = vsel %vm1097, %v1095, 0
        %v1168 = vsel %vm1097, %v1096, 0
        %v1171 = vsel %vm887, %v927, 0
        %v1174 = vsel %vm887, %v928, 0
        %1176 = vmatprep.subr.bf16.mxu0 %v900
        %1177 = vmatpush1.bf16.msra.mxu0 %v899
        %1178 = vmatprep.subr.bf16.mxu0 %v1174
        %1179 = vmatpush1.bf16.msra.mxu0 %v1171
        %1180 = vmatprep.subr.bf16.mxu0 0
        %1181 = vmatpush1.bf16.msra.mxu0 0
        %1182 = vmatprep.subr.bf16.mxu0 0
        %1183 = vmatpush1.bf16.msra.mxu0 0
        %1184 = vmatprep.subr.bf16.mxu0 0
        %1185 = vmatpush1.bf16.msra.mxu0 0
        %1186 = vmatprep.subr.bf16.mxu0 0
        %1187 = vmatpush1.bf16.msra.mxu0 0
        %1188 = vmatprep.subr.bf16.mxu0 0
        %1189 = vmatpush1.bf16.msra.mxu0 0
        %1190 = vmatprep.subr.bf16.mxu0 0
        %1191 = vmatpush1.bf16.msra.mxu0 0
        %1192 = vmatprep.subr.bf16.mxu0 0
        %1193 = vmatpush1.bf16.msra.mxu0 0
        %1194 = vmatprep.subr.bf16.mxu0 0
        %1195 = vmatpush1.bf16.msra.mxu0 0
        %1196 = vmatprep.subr.bf16.mxu0 0
        %1197 = vmatpush1.bf16.msra.mxu0 0
        %1198 = vmatprep.subr.bf16.mxu0 0
        %1199 = vmatpush1.bf16.msra.mxu0 0
        %1200 = vmatprep.subr.bf16.mxu0 0
        %1201 = vmatpush1.bf16.msra.mxu0 0
        %1202 = vmatprep.subr.bf16.mxu0 0
        %1203 = vmatpush1.bf16.msra.mxu0 0
        %1204 = vmatprep.subr.bf16.mxu0 0
        %1205 = vmatpush1.bf16.msra.mxu0 0
        %1206 = vmatprep.subr.bf16.mxu0 0
        %1207 = vmatpush1.bf16.msra.mxu0 0
        %1208 = vmatprep.mubr.bf16.mxu0 0
        %1209 = vmatmul.mubr.bf16.gmra.mrb[0].mxu0 %v1099
        %v1210 = vpop.f32.mrb[0].mxu0
        %v1211 = vadd.f32 0.0, %v1210
        %v1212 = vpop.f32.mrb[0].mxu0
        %v1213 = vadd.f32 0.0, %v1212
        %v1214 = vpop.f32.mrb[0].mxu0
        %v1215 = vadd.f32 0.0, %v1214
        %v1216 = vpop.f32.mrb[0].mxu0
        %v1217 = vadd.f32 0.0, %v1216
        %1218 = vmatprep.mubr.bf16.mxu0 0
        %1219 = vmatmul.mubr.bf16.gmra.mrb[0].mxu0 %v1102
        %v1220 = vpop.f32.mrb[0].mxu0
        %v1221 = vadd.f32 0.0, %v1220
        %v1222 = vpop.f32.mrb[0].mxu0
        %v1223 = vadd.f32 0.0, %v1222
        %v1224 = vpop.f32.mrb[0].mxu0
        %v1225 = vadd.f32 0.0, %v1224
        %v1226 = vpop.f32.mrb[0].mxu0
        %v1227 = vadd.f32 0.0, %v1226
        %1228 = vmatprep.mubr.bf16.mxu0 0
        %1229 = vmatmul.mubr.bf16.gmra.mrb[0].mxu0 %v1105
        %v1230 = vpop.f32.mrb[0].mxu0
        %v1231 = vadd.f32 0.0, %v1230
        %v1232 = vpop.f32.mrb[0].mxu0
        %v1233 = vadd.f32 0.0, %v1232
        %v1234 = vpop.f32.mrb[0].mxu0
        %v1235 = vadd.f32 0.0, %v1234
        %v1236 = vpop.f32.mrb[0].mxu0
        %v1237 = vadd.f32 0.0, %v1236
        %1238 = vmatprep.mubr.bf16.mxu0 0
        %1239 = vmatmul.mubr.bf16.gmra.mrb[0].mxu0 %v1108
        %v1240 = vpop.f32.mrb[0].mxu0
        %v1241 = vadd.f32 0.0, %v1240
        %v1242 = vpop.f32.mrb[0].mxu0
        %v1243 = vadd.f32 0.0, %v1242
        %v1244 = vpop.f32.mrb[0].mxu0
        %v1245 = vadd.f32 0.0, %v1244
        %v1246 = vpop.f32.mrb[0].mxu0
        %v1247 = vadd.f32 0.0, %v1246
        %1248 = vmatprep.mubr.bf16.mxu0 0
        %1249 = vmatmul.mubr.bf16.gmra.mrb[0].mxu0 %v1111
        %v1250 = vpop.f32.mrb[0].mxu0
        %v1251 = vadd.f32 0.0, %v1250
        %v1252 = vpop.f32.mrb[0].mxu0
        %v1253 = vadd.f32 0.0, %v1252
        %v1254 = vpop.f32.mrb[0].mxu0
        %v1255 = vadd.f32 0.0, %v1254
        %v1256 = vpop.f32.mrb[0].mxu0
        %v1257 = vadd.f32 0.0, %v1256
        %1258 = vmatprep.mubr.bf16.mxu0 0
        %1259 = vmatmul.mubr.bf16.gmra.mrb[0].mxu0 %v1114
        %v1260 = vpop.f32.mrb[0].mxu0
        %v1261 = vadd.f32 0.0, %v1260
        %v1262 = vpop.f32.mrb[0].mxu0
        %v1263 = vadd.f32 0.0, %v1262
        %v1264 = vpop.f32.mrb[0].mxu0
        %v1265 = vadd.f32 0.0, %v1264
        %v1266 = vpop.f32.mrb[0].mxu0
        %v1267 = vadd.f32 0.0, %v1266
        %1268 = vmatprep.mubr.bf16.mxu0 0
        %1269 = vmatmul.mubr.bf16.gmra.mrb[0].mxu0 %v1117
        %v1270 = vpop.f32.mrb[0].mxu0
        %v1271 = vadd.f32 0.0, %v1270
        %v1272 = vpop.f32.mrb[0].mxu0
        %v1273 = vadd.f32 0.0, %v1272
        %v1274 = vpop.f32.mrb[0].mxu0
        %v1275 = vadd.f32 0.0, %v1274
        %v1276 = vpop.f32.mrb[0].mxu0
        %v1277 = vadd.f32 0.0, %v1276
        %1278 = vmatprep.mubr.bf16.mxu0 0
        %1279 = vmatmul.mubr.bf16.gmra.mrb[0].mxu0 %v1120
        %v1280 = vpop.f32.mrb[0].mxu0
        %v1281 = vadd.f32 0.0, %v1280
        %v1282 = vpop.f32.mrb[0].mxu0
        %v1283 = vadd.f32 0.0, %v1282
        %v1284 = vpop.f32.mrb[0].mxu0
        %v1285 = vadd.f32 0.0, %v1284
        %v1286 = vpop.f32.mrb[0].mxu0
        %v1287 = vadd.f32 0.0, %v1286
        %1288 = vmatprep.mubr.bf16.mxu0 0
        %1289 = vmatmul.mubr.bf16.gmra.mrb[0].mxu0 %v1123
        %v1290 = vpop.f32.mrb[0].mxu0
        %v1291 = vadd.f32 0.0, %v1290
        %v1292 = vpop.f32.mrb[0].mxu0
        %v1293 = vadd.f32 0.0, %v1292
        %v1294 = vpop.f32.mrb[0].mxu0
        %v1295 = vadd.f32 0.0, %v1294
        %v1296 = vpop.f32.mrb[0].mxu0
        %v1297 = vadd.f32 0.0, %v1296
        %1298 = vmatprep.mubr.bf16.mxu0 0
        %1299 = vmatmul.mubr.bf16.gmra.mrb[0].mxu0 %v1126
        %v1300 = vpop.f32.mrb[0].mxu0
        %v1301 = vadd.f32 0.0, %v1300
        %v1302 = vpop.f32.mrb[0].mxu0
        %v1303 = vadd.f32 0.0, %v1302
        %v1304 = vpop.f32.mrb[0].mxu0
        %v1305 = vadd.f32 0.0, %v1304
        %v1306 = vpop.f32.mrb[0].mxu0
        %v1307 = vadd.f32 0.0, %v1306
        %1308 = vmatprep.mubr.bf16.mxu0 0
        %1309 = vmatmul.mubr.bf16.gmra.mrb[0].mxu0 %v1129
        %v1310 = vpop.f32.mrb[0].mxu0
        %v1311 = vadd.f32 0.0, %v1310
        %v1312 = vpop.f32.mrb[0].mxu0
        %v1313 = vadd.f32 0.0, %v1312
        %v1314 = vpop.f32.mrb[0].mxu0
        %v1315 = vadd.f32 0.0, %v1314
        %v1316 = vpop.f32.mrb[0].mxu0
        %v1317 = vadd.f32 0.0, %v1316
        %1318 = vmatprep.mubr.bf16.mxu0 0
        %1319 = vmatmul.mubr.bf16.gmra.mrb[0].mxu0 %v1132
        %v1320 = vpop.f32.mrb[0].mxu0
        %v1321 = vadd.f32 0.0, %v1320
        %v1322 = vpop.f32.mrb[0].mxu0
        %v1323 = vadd.f32 0.0, %v1322
        %v1324 = vpop.f32.mrb[0].mxu0
        %v1325 = vadd.f32 0.0, %v1324
        %v1326 = vpop.f32.mrb[0].mxu0
        %v1327 = vadd.f32 0.0, %v1326
        %1328 = vmatprep.mubr.bf16.mxu0 0
        %1329 = vmatmul.mubr.bf16.gmra.mrb[0].mxu0 %v1135
        %v1330 = vpop.f32.mrb[0].mxu0
        %v1331 = vadd.f32 0.0, %v1330
        %v1332 = vpop.f32.mrb[0].mxu0
        %v1333 = vadd.f32 0.0, %v1332
        %v1334 = vpop.f32.mrb[0].mxu0
        %v1335 = vadd.f32 0.0, %v1334
        %v1336 = vpop.f32.mrb[0].mxu0
        %v1337 = vadd.f32 0.0, %v1336
        %1338 = vmatprep.mubr.bf16.mxu0 0
        %1339 = vmatmul.mubr.bf16.gmra.mrb[0].mxu0 %v1138
        %v1340 = vpop.f32.mrb[0].mxu0
        %v1341 = vadd.f32 0.0, %v1340
        %v1342 = vpop.f32.mrb[0].mxu0
        %v1343 = vadd.f32 0.0, %v1342
        %v1344 = vpop.f32.mrb[0].mxu0
        %v1345 = vadd.f32 0.0, %v1344
        %v1346 = vpop.f32.mrb[0].mxu0
        %v1347 = vadd.f32 0.0, %v1346
        %1348 = vmatprep.mubr.bf16.mxu0 0
        %1349 = vmatmul.mubr.bf16.gmra.mrb[0].mxu0 %v1141
        %v1350 = vpop.f32.mrb[0].mxu0
        %v1351 = vadd.f32 0.0, %v1350
        %v1352 = vpop.f32.mrb[0].mxu0
        %v1353 = vadd.f32 0.0, %v1352
        %v1354 = vpop.f32.mrb[0].mxu0
        %v1355 = vadd.f32 0.0, %v1354
        %v1356 = vpop.f32.mrb[0].mxu0
        %v1357 = vadd.f32 0.0, %v1356
        %1358 = vmatprep.mubr.bf16.mxu0 0
        %1359 = vmatmul.mubr.bf16.gmra.mrb[0].mxu0 %v1144
        %v1360 = vpop.f32.mrb[0].mxu0
        %v1361 = vadd.f32 0.0, %v1360
        %v1362 = vpop.f32.mrb[0].mxu0
        %v1363 = vadd.f32 0.0, %v1362
        %v1364 = vpop.f32.mrb[0].mxu0
        %v1365 = vadd.f32 0.0, %v1364
        %v1366 = vpop.f32.mrb[0].mxu0
        %v1367 = vadd.f32 0.0, %v1366
        %1368 = vmatprep.mubr.bf16.mxu0 0
        %1369 = vmatmul.mubr.bf16.gmra.mrb[0].mxu0 %v1147
        %v1370 = vpop.f32.mrb[0].mxu0
        %v1371 = vadd.f32 0.0, %v1370
        %v1372 = vpop.f32.mrb[0].mxu0
        %v1373 = vadd.f32 0.0, %v1372
        %v1374 = vpop.f32.mrb[0].mxu0
        %v1375 = vadd.f32 0.0, %v1374
        %v1376 = vpop.f32.mrb[0].mxu0
        %v1377 = vadd.f32 0.0, %v1376
        %1378 = vmatprep.mubr.bf16.mxu0 0
        %1379 = vmatmul.mubr.bf16.gmra.mrb[0].mxu0 %v1150
        %v1380 = vpop.f32.mrb[0].mxu0
        %v1381 = vadd.f32 0.0, %v1380
        %v1382 = vpop.f32.mrb[0].mxu0
        %v1383 = vadd.f32 0.0, %v1382
        %v1384 = vpop.f32.mrb[0].mxu0
        %v1385 = vadd.f32 0.0, %v1384
        %v1386 = vpop.f32.mrb[0].mxu0
        %v1387 = vadd.f32 0.0, %v1386
        %1388 = vmatprep.mubr.bf16.mxu0 0
        %1389 = vmatmul.mubr.bf16.gmra.mrb[0].mxu0 %v1153
        %v1390 = vpop.f32.mrb[0].mxu0
        %v1391 = vadd.f32 0.0, %v1390
        %v1392 = vpop.f32.mrb[0].mxu0
        %v1393 = vadd.f32 0.0, %v1392
        %v1394 = vpop.f32.mrb[0].mxu0
        %v1395 = vadd.f32 0.0, %v1394
        %v1396 = vpop.f32.mrb[0].mxu0
        %v1397 = vadd.f32 0.0, %v1396
        %1398 = vmatprep.mubr.bf16.mxu0 0
        %1399 = vmatmul.mubr.bf16.gmra.mrb[0].mxu0 %v1156
        %v1400 = vpop.f32.mrb[0].mxu0
        %v1401 = vadd.f32 0.0, %v1400
        %v1402 = vpop.f32.mrb[0].mxu0
        %v1403 = vadd.f32 0.0, %v1402
        %v1404 = vpop.f32.mrb[0].mxu0
        %v1405 = vadd.f32 0.0, %v1404
        %v1406 = vpop.f32.mrb[0].mxu0
        %v1407 = vadd.f32 0.0, %v1406
        %1408 = vmatprep.mubr.bf16.mxu0 0
        %1409 = vmatmul.mubr.bf16.gmra.mrb[0].mxu0 %v1159
        %v1410 = vpop.f32.mrb[0].mxu0
        %v1411 = vadd.f32 0.0, %v1410
        %v1412 = vpop.f32.mrb[0].mxu0
        %v1413 = vadd.f32 0.0, %v1412
        %v1414 = vpop.f32.mrb[0].mxu0
        %v1415 = vadd.f32 0.0, %v1414
        %v1416 = vpop.f32.mrb[0].mxu0
        %v1417 = vadd.f32 0.0, %v1416
        %1418 = vmatprep.mubr.bf16.mxu0 0
        %1419 = vmatmul.mubr.bf16.gmra.mrb[0].mxu0 %v1162
        %v1420 = vpop.f32.mrb[0].mxu0
        %v1421 = vadd.f32 0.0, %v1420
        %v1422 = vpop.f32.mrb[0].mxu0
        %v1423 = vadd.f32 0.0, %v1422
        %v1424 = vpop.f32.mrb[0].mxu0
        %v1425 = vadd.f32 0.0, %v1424
        %v1426 = vpop.f32.mrb[0].mxu0
        %v1427 = vadd.f32 0.0, %v1426
        %1428 = vmatprep.mubr.bf16.mxu0 0
        %1429 = vmatmul.mubr.bf16.gmra.mrb[0].mxu0 %v1165
        %v1430 = vpop.f32.mrb[0].mxu0
        %v1431 = vadd.f32 0.0, %v1430
        %v1432 = vpop.f32.mrb[0].mxu0
        %v1433 = vadd.f32 0.0, %v1432
        %v1434 = vpop.f32.mrb[0].mxu0
        %v1435 = vadd.f32 0.0, %v1434
        %v1436 = vpop.f32.mrb[0].mxu0
        %v1437 = vadd.f32 0.0, %v1436
        %1438 = vmatprep.mubr.bf16.mxu0 0
        %1439 = vmatmul.mubr.bf16.gmra.mrb[0].mxu0 %v1168
        %v1440 = vpop.f32.mrb[0].mxu0
        %v1441 = vadd.f32 0.0, %v1440
        %v1442 = vpop.f32.mrb[0].mxu0
        %v1443 = vadd.f32 0.0, %v1442
        %v1444 = vpop.f32.mrb[0].mxu0
        %v1445 = vadd.f32 0.0, %v1444
        %v1446 = vpop.f32.mrb[0].mxu0
        %v1447 = vadd.f32 0.0, %v1446
        %1448 = vdwg.mxu0
        %v1449 = vmax.f32 %v1211, 0.0
        %v1450 = vmax.f32 %v1213, 0.0
        %v1451 = vmax.f32 %v1215, 0.0
        %v1452 = vmax.f32 %v1217, 0.0
        %v1453 = vmax.f32 %v1221, 0.0
        %v1454 = vmax.f32 %v1223, 0.0
        %v1455 = vmax.f32 %v1225, 0.0
        %v1456 = vmax.f32 %v1227, 0.0
        %v1457 = vmax.f32 %v1231, 0.0
        %v1458 = vmax.f32 %v1233, 0.0
        %v1459 = vmax.f32 %v1235, 0.0
        %v1460 = vmax.f32 %v1237, 0.0
        %v1461 = vmax.f32 %v1241, 0.0
        %v1462 = vmax.f32 %v1243, 0.0
        %v1463 = vmax.f32 %v1245, 0.0
        %v1464 = vmax.f32 %v1247, 0.0
        %v1465 = vmax.f32 %v1251, 0.0
        %v1466 = vmax.f32 %v1253, 0.0
        %v1467 = vmax.f32 %v1255, 0.0
        %v1468 = vmax.f32 %v1257, 0.0
        %v1469 = vmax.f32 %v1261, 0.0
        %v1470 = vmax.f32 %v1263, 0.0
        %v1471 = vmax.f32 %v1265, 0.0
        %v1472 = vmax.f32 %v1267, 0.0
        %v1473 = vmax.f32 %v1271, 0.0
        %v1474 = vmax.f32 %v1273, 0.0
        %v1475 = vmax.f32 %v1275, 0.0
        %v1476 = vmax.f32 %v1277, 0.0
        %v1477 = vmax.f32 %v1281, 0.0
        %v1478 = vmax.f32 %v1283, 0.0
        %v1479 = vmax.f32 %v1285, 0.0
        %v1480 = vmax.f32 %v1287, 0.0
        %v1481 = vmax.f32 %v1291, 0.0
        %v1482 = vmax.f32 %v1293, 0.0
        %v1483 = vmax.f32 %v1295, 0.0
        %v1484 = vmax.f32 %v1297, 0.0
        %v1485 = vmax.f32 %v1301, 0.0
        %v1486 = vmax.f32 %v1303, 0.0
        %v1487 = vmax.f32 %v1305, 0.0
        %v1488 = vmax.f32 %v1307, 0.0
        %v1489 = vmax.f32 %v1311, 0.0
        %v1490 = vmax.f32 %v1313, 0.0
        %v1491 = vmax.f32 %v1315, 0.0
        %v1492 = vmax.f32 %v1317, 0.0
        %v1493 = vmax.f32 %v1321, 0.0
        %v1494 = vmax.f32 %v1323, 0.0
        %v1495 = vmax.f32 %v1325, 0.0
        %v1496 = vmax.f32 %v1327, 0.0
        %v1497 = vmax.f32 %v1331, 0.0
        %v1498 = vmax.f32 %v1333, 0.0
        %v1499 = vmax.f32 %v1335, 0.0
        %v1500 = vmax.f32 %v1337, 0.0
        %v1501 = vmax.f32 %v1341, 0.0
        %v1502 = vmax.f32 %v1343, 0.0
        %v1503 = vmax.f32 %v1345, 0.0
        %v1504 = vmax.f32 %v1347, 0.0
        %v1505 = vmax.f32 %v1351, 0.0
        %v1506 = vmax.f32 %v1353, 0.0
        %v1507 = vmax.f32 %v1355, 0.0
        %v1508 = vmax.f32 %v1357, 0.0
        %v1509 = vmax.f32 %v1361, 0.0
        %v1510 = vmax.f32 %v1363, 0.0
        %v1511 = vmax.f32 %v1365, 0.0
        %v1512 = vmax.f32 %v1367, 0.0
        %v1513 = vmax.f32 %v1371, 0.0
        %v1514 = vmax.f32 %v1373, 0.0
        %v1515 = vmax.f32 %v1375, 0.0
        %v1516 = vmax.f32 %v1377, 0.0
        %v1517 = vmax.f32 %v1381, 0.0
        %v1518 = vmax.f32 %v1383, 0.0
        %v1519 = vmax.f32 %v1385, 0.0
        %v1520 = vmax.f32 %v1387, 0.0
        %v1521 = vmax.f32 %v1391, 0.0
        %v1522 = vmax.f32 %v1393, 0.0
        %v1523 = vmax.f32 %v1395, 0.0
        %v1524 = vmax.f32 %v1397, 0.0
        %v1525 = vmax.f32 %v1401, 0.0
        %v1526 = vmax.f32 %v1403, 0.0
        %v1527 = vmax.f32 %v1405, 0.0
        %v1528 = vmax.f32 %v1407, 0.0
        %v1529 = vmax.f32 %v1411, 0.0
        %v1530 = vmax.f32 %v1413, 0.0
        %v1531 = vmax.f32 %v1415, 0.0
        %v1532 = vmax.f32 %v1417, 0.0
        %v1533 = vmax.f32 %v1421, 0.0
        %v1534 = vmax.f32 %v1423, 0.0
        %v1535 = vmax.f32 %v1425, 0.0
        %v1536 = vmax.f32 %v1427, 0.0
        %v1537 = vmax.f32 %v1431, 0.0
        %v1538 = vmax.f32 %v1433, 0.0
        %v1539 = vmax.f32 %v1435, 0.0
        %v1540 = vmax.f32 %v1437, 0.0
        %v1541 = vmax.f32 %v1441, 0.0
        %v1542 = vmax.f32 %v1443, 0.0
        %v1543 = vmax.f32 %v1445, 0.0
        %v1544 = vmax.f32 %v1447, 0.0
        %v1545 = vpack.c.bf16 %v1451, %v1449
        %v1546 = vpack.c.bf16 %v1452, %v1450
        %v1547 = vpack.c.bf16 %v1455, %v1453
        %v1548 = vpack.c.bf16 %v1456, %v1454
        %v1549 = vpack.c.bf16 %v1459, %v1457
        %v1550 = vpack.c.bf16 %v1460, %v1458
        %v1551 = vpack.c.bf16 %v1463, %v1461
        %v1552 = vpack.c.bf16 %v1464, %v1462
        %v1553 = vpack.c.bf16 %v1467, %v1465
        %v1554 = vpack.c.bf16 %v1468, %v1466
        %v1555 = vpack.c.bf16 %v1471, %v1469
        %v1556 = vpack.c.bf16 %v1472, %v1470
        %v1557 = vpack.c.bf16 %v1475, %v1473
        %v1558 = vpack.c.bf16 %v1476, %v1474
        %v1559 = vpack.c.bf16 %v1479, %v1477
        %v1560 = vpack.c.bf16 %v1480, %v1478
        %v1561 = vpack.c.bf16 %v1483, %v1481
        %v1562 = vpack.c.bf16 %v1484, %v1482
        %v1563 = vpack.c.bf16 %v1487, %v1485
        %v1564 = vpack.c.bf16 %v1488, %v1486
        %v1565 = vpack.c.bf16 %v1491, %v1489
        %v1566 = vpack.c.bf16 %v1492, %v1490
        %v1567 = vpack.c.bf16 %v1495, %v1493
        %v1568 = vpack.c.bf16 %v1496, %v1494
        %v1569 = vpack.c.bf16 %v1499, %v1497
        %v1570 = vpack.c.bf16 %v1500, %v1498
        %v1571 = vpack.c.bf16 %v1503, %v1501
        %v1572 = vpack.c.bf16 %v1504, %v1502
        %v1573 = vpack.c.bf16 %v1507, %v1505
        %v1574 = vpack.c.bf16 %v1508, %v1506
        %v1575 = vpack.c.bf16 %v1511, %v1509
        %v1576 = vpack.c.bf16 %v1512, %v1510
        %v1577 = vpack.c.bf16 %v1515, %v1513
        %v1578 = vpack.c.bf16 %v1516, %v1514
        %v1579 = vpack.c.bf16 %v1519, %v1517
        %v1580 = vpack.c.bf16 %v1520, %v1518
        %v1581 = vpack.c.bf16 %v1523, %v1521
        %v1582 = vpack.c.bf16 %v1524, %v1522
        %v1583 = vpack.c.bf16 %v1527, %v1525
        %v1584 = vpack.c.bf16 %v1528, %v1526
        %v1585 = vpack.c.bf16 %v1531, %v1529
        %v1586 = vpack.c.bf16 %v1532, %v1530
        %v1587 = vpack.c.bf16 %v1535, %v1533
        %v1588 = vpack.c.bf16 %v1536, %v1534
        %v1589 = vpack.c.bf16 %v1539, %v1537
        %v1590 = vpack.c.bf16 %v1540, %v1538
        %v1591 = vpack.c.bf16 %v1543, %v1541
        %v1592 = vpack.c.bf16 %v1544, %v1542
        %v1593 = vld [vmem:[%s5] sm:$0xff]
        %v1594 = vld [vmem:[%s5 + $0x8] sm:$0xff]
        %v1595 = vld [vmem:[%s5 + $0x10] sm:$0xff]
        %1597 = vset.pattern.permute.xlu0 0
        %1598 = vperm.xlu0 %1597, %v1593
        %v1599 = vpop.permute.xlu0 %1598
        %1602 = vset.pattern.permute.xlu0 0
        %1603 = vperm.xlu0 %1602, %v1594
        %v1604 = vpop.permute.xlu0 %1603
        %1607 = vset.pattern.permute.xlu0 0
        %1608 = vperm.xlu0 %1607, %v1595
        %v1609 = vpop.permute.xlu0 %1608
        %v1611 = vld [vmem:[%s4] sm:$0xff]
        %v1612 = vld [vmem:[%s4 + $0x8] sm:$0xf]
        %v1613 = vld [vmem:[%s4 + $0xc] sm:$0xff]
        %v1614 = vld [vmem:[%s4 + $0x14] sm:$0xf]
        %v1615 = vld [vmem:[%s4 + $0x18] sm:$0xff]
        %v1616 = vld [vmem:[%s4 + $0x20] sm:$0xf]
        %1641 = vrot.lane.b32.xlu0 %v1546, 17
        %v1642 = vpop.permute.xlu0 %1641
        %1643 = vrot.lane.b32.xlu0 %v1548, 17
        %v1644 = vpop.permute.xlu0 %1643
        %1645 = vrot.lane.b32.xlu0 %v1550, 17
        %v1646 = vpop.permute.xlu0 %1645
        %1647 = vrot.lane.b32.xlu0 %v1552, 17
        %v1648 = vpop.permute.xlu0 %1647
        %1649 = vrot.lane.b32.xlu0 %v1554, 17
        %v1650 = vpop.permute.xlu0 %1649
        %1651 = vrot.lane.b32.xlu0 %v1556, 17
        %v1652 = vpop.permute.xlu0 %1651
        %1653 = vrot.lane.b32.xlu0 %v1558, 17
        %v1654 = vpop.permute.xlu0 %1653
        %1655 = vrot.lane.b32.xlu0 %v1560, 17
        %v1656 = vpop.permute.xlu0 %1655
        %1657 = vrot.lane.b32.xlu0 %v1562, 17
        %v1658 = vpop.permute.xlu0 %1657
        %1659 = vrot.lane.b32.xlu0 %v1564, 17
        %v1660 = vpop.permute.xlu0 %1659
        %1661 = vrot.lane.b32.xlu0 %v1566, 17
        %v1662 = vpop.permute.xlu0 %1661
        %1663 = vrot.lane.b32.xlu0 %v1568, 17
        %v1664 = vpop.permute.xlu0 %1663
        %1665 = vrot.lane.b32.xlu0 %v1570, 17
        %v1666 = vpop.permute.xlu0 %1665
        %1667 = vrot.lane.b32.xlu0 %v1572, 17
        %v1668 = vpop.permute.xlu0 %1667
        %1669 = vrot.lane.b32.xlu0 %v1574, 17
        %v1670 = vpop.permute.xlu0 %1669
        %1671 = vrot.lane.b32.xlu0 %v1576, 17
        %v1672 = vpop.permute.xlu0 %1671
        %1673 = vrot.lane.b32.xlu0 %v1578, 17
        %v1674 = vpop.permute.xlu0 %1673
        %1675 = vrot.lane.b32.xlu0 %v1580, 17
        %v1676 = vpop.permute.xlu0 %1675
        %1677 = vrot.lane.b32.xlu0 %v1582, 17
        %v1678 = vpop.permute.xlu0 %1677
        %1679 = vrot.lane.b32.xlu0 %v1584, 17
        %v1680 = vpop.permute.xlu0 %1679
        %1681 = vrot.lane.b32.xlu0 %v1586, 17
        %v1682 = vpop.permute.xlu0 %1681
        %1683 = vrot.lane.b32.xlu0 %v1588, 17
        %v1684 = vpop.permute.xlu0 %1683
        %1685 = vrot.lane.b32.xlu0 %v1590, 17
        %v1686 = vpop.permute.xlu0 %1685
        %1687 = vrot.lane.b32.xlu0 %v1592, 17
        %v1688 = vpop.permute.xlu0 %1687
        %1713 = vrot.lane.b32.xlu0 %v1545, 17
        %v1714 = vpop.permute.xlu0 %1713
        %1715 = vrot.lane.b32.xlu0 %v1547, 17
        %v1716 = vpop.permute.xlu0 %1715
        %1717 = vrot.lane.b32.xlu0 %v1549, 17
        %v1718 = vpop.permute.xlu0 %1717
        %1719 = vrot.lane.b32.xlu0 %v1551, 17
        %v1720 = vpop.permute.xlu0 %1719
        %1721 = vrot.lane.b32.xlu0 %v1553, 17
        %v1722 = vpop.permute.xlu0 %1721
        %1723 = vrot.lane.b32.xlu0 %v1555, 17
        %v1724 = vpop.permute.xlu0 %1723
        %1725 = vrot.lane.b32.xlu0 %v1557, 17
        %v1726 = vpop.permute.xlu0 %1725
        %1727 = vrot.lane.b32.xlu0 %v1559, 17
        %v1728 = vpop.permute.xlu0 %1727
        %1729 = vrot.lane.b32.xlu0 %v1561, 17
        %v1730 = vpop.permute.xlu0 %1729
        %1731 = vrot.lane.b32.xlu0 %v1563, 17
        %v1732 = vpop.permute.xlu0 %1731
        %1733 = vrot.lane.b32.xlu0 %v1565, 17
        %v1734 = vpop.permute.xlu0 %1733
        %1735 = vrot.lane.b32.xlu0 %v1567, 17
        %v1736 = vpop.permute.xlu0 %1735
        %1737 = vrot.lane.b32.xlu0 %v1569, 17
        %v1738 = vpop.permute.xlu0 %1737
        %1739 = vrot.lane.b32.xlu0 %v1571, 17
        %v1740 = vpop.permute.xlu0 %1739
        %1741 = vrot.lane.b32.xlu0 %v1573, 17
        %v1742 = vpop.permute.xlu0 %1741
        %1743 = vrot.lane.b32.xlu0 %v1575, 17
        %v1744 = vpop.permute.xlu0 %1743
        %1745 = vrot.lane.b32.xlu0 %v1577, 17
        %v1746 = vpop.permute.xlu0 %1745
        %1747 = vrot.lane.b32.xlu0 %v1579, 17
        %v1748 = vpop.permute.xlu0 %1747
        %1749 = vrot.lane.b32.xlu0 %v1581, 17
        %v1750 = vpop.permute.xlu0 %1749
        %1751 = vrot.lane.b32.xlu0 %v1583, 17
        %v1752 = vpop.permute.xlu0 %1751
        %1753 = vrot.lane.b32.xlu0 %v1585, 17
        %v1754 = vpop.permute.xlu0 %1753
        %1755 = vrot.lane.b32.xlu0 %v1587, 17
        %v1756 = vpop.permute.xlu0 %1755
        %1757 = vrot.lane.b32.xlu0 %v1589, 17
        %v1758 = vpop.permute.xlu0 %1757
        %1759 = vrot.lane.b32.xlu0 %v1591, 17
        %v1760 = vpop.permute.xlu0 %1759
        %v1761 = vsel %vm365, %v1714, %v1642
        %v1762 = vsel %vm365, %v1716, %v1644
        %v1763 = vsel %vm365, %v1718, %v1646
        %v1764 = vsel %vm365, %v1720, %v1648
        %v1765 = vsel %vm365, %v1722, %v1650
        %v1766 = vsel %vm365, %v1724, %v1652
        %v1767 = vsel %vm365, %v1726, %v1654
        %v1768 = vsel %vm365, %v1728, %v1656
        %v1769 = vsel %vm365, %v1730, %v1658
        %v1770 = vsel %vm365, %v1732, %v1660
        %v1771 = vsel %vm365, %v1734, %v1662
        %v1772 = vsel %vm365, %v1736, %v1664
        %v1773 = vsel %vm365, %v1738, %v1666
        %v1774 = vsel %vm365, %v1740, %v1668
        %v1775 = vsel %vm365, %v1742, %v1670
        %v1776 = vsel %vm365, %v1744, %v1672
        %v1777 = vsel %vm365, %v1746, %v1674
        %v1778 = vsel %vm365, %v1748, %v1676
        %v1779 = vsel %vm365, %v1750, %v1678
        %v1780 = vsel %vm365, %v1752, %v1680
        %v1781 = vsel %vm365, %v1754, %v1682
        %v1782 = vsel %vm365, %v1756, %v1684
        %v1783 = vsel %vm365, %v1758, %v1686
        %v1784 = vsel %vm365, %v1760, %v1688
        %v1811 = vsel %vm368, %v1642, %v1714
        %v1815 = vsel %vm368, %v1644, %v1716
        %v1819 = vsel %vm368, %v1646, %v1718
        %v1823 = vsel %vm368, %v1648, %v1720
        %v1827 = vsel %vm368, %v1650, %v1722
        %v1831 = vsel %vm368, %v1652, %v1724
        %v1835 = vsel %vm368, %v1654, %v1726
        %v1839 = vsel %vm368, %v1656, %v1728
        %v1843 = vsel %vm368, %v1658, %v1730
        %v1847 = vsel %vm368, %v1660, %v1732
        %v1851 = vsel %vm368, %v1662, %v1734
        %v1855 = vsel %vm368, %v1664, %v1736
        %v1859 = vsel %vm368, %v1666, %v1738
        %v1863 = vsel %vm368, %v1668, %v1740
        %v1867 = vsel %vm368, %v1670, %v1742
        %v1871 = vsel %vm368, %v1672, %v1744
        %v1875 = vsel %vm368, %v1674, %v1746
        %v1879 = vsel %vm368, %v1676, %v1748
        %v1883 = vsel %vm368, %v1678, %v1750
        %v1887 = vsel %vm368, %v1680, %v1752
        %v1891 = vsel %vm368, %v1682, %v1754
        %v1895 = vsel %vm368, %v1684, %v1756
        %v1899 = vsel %vm368, %v1686, %v1758
        %v1903 = vsel %vm368, %v1688, %v1760
        %v1905 = vmul.bf16 %v1811, %v403
        %v1906 = vmul.bf16 %v1761, %v410
        %v1907 = vmul.bf16 %v1815, %v403
        %v1908 = vmul.bf16 %v1762, %v410
        %v1909 = vmul.bf16 %v1819, %v403
        %v1910 = vmul.bf16 %v1763, %v410
        %v1911 = vmul.bf16 %v1823, %v403
        %v1912 = vmul.bf16 %v1764, %v410
        %v1913 = vmul.bf16 %v1827, %v403
        %v1914 = vmul.bf16 %v1765, %v410
        %v1915 = vmul.bf16 %v1831, %v403
        %v1916 = vmul.bf16 %v1766, %v410
        %v1917 = vmul.bf16 %v1835, %v403
        %v1918 = vmul.bf16 %v1767, %v410
        %v1919 = vmul.bf16 %v1839, %v403
        %v1920 = vmul.bf16 %v1768, %v410
        %v1921 = vmul.bf16 %v1843, %v403
        %v1922 = vmul.bf16 %v1769, %v410
        %v1923 = vmul.bf16 %v1847, %v403
        %v1924 = vmul.bf16 %v1770, %v410
        %v1925 = vmul.bf16 %v1851, %v403
        %v1926 = vmul.bf16 %v1771, %v410
        %v1927 = vmul.bf16 %v1855, %v403
        %v1928 = vmul.bf16 %v1772, %v410
        %v1929 = vmul.bf16 %v1859, %v403
        %v1930 = vmul.bf16 %v1773, %v410
        %v1931 = vmul.bf16 %v1863, %v403
        %v1932 = vmul.bf16 %v1774, %v410
        %v1933 = vmul.bf16 %v1867, %v403
        %v1934 = vmul.bf16 %v1775, %v410
        %v1935 = vmul.bf16 %v1871, %v403
        %v1936 = vmul.bf16 %v1776, %v410
        %v1937 = vmul.bf16 %v1875, %v403
        %v1938 = vmul.bf16 %v1777, %v410
        %v1939 = vmul.bf16 %v1879, %v403
        %v1940 = vmul.bf16 %v1778, %v410
        %v1941 = vmul.bf16 %v1883, %v403
        %v1942 = vmul.bf16 %v1779, %v410
        %v1943 = vmul.bf16 %v1887, %v403
        %v1944 = vmul.bf16 %v1780, %v410
        %v1945 = vmul.bf16 %v1891, %v403
        %v1946 = vmul.bf16 %v1781, %v410
        %v1947 = vmul.bf16 %v1895, %v403
        %v1948 = vmul.bf16 %v1782, %v410
        %v1949 = vmul.bf16 %v1899, %v403
        %v1950 = vmul.bf16 %v1783, %v410
        %v1951 = vmul.bf16 %v1903, %v403
        %v1952 = vmul.bf16 %v1784, %v410
        %v1959 = vunpack.c.l.b16 %v1611
        %v1960 = vunpack.c.h.b16 %v1611
        %v1961 = vunpack.c.l.b16 %v1612
        %v1962 = vunpack.c.l.b16 %v1613
        %v1963 = vunpack.c.h.b16 %v1613
        %v1964 = vunpack.c.l.b16 %v1614
        %v1965 = vunpack.c.l.b16 %v1615
        %v1966 = vunpack.c.h.b16 %v1615
        %v1967 = vunpack.c.l.b16 %v1616
        %v1968 = vpack.c.b16 %v1962, %v1959
        %v1969 = vpack.c.b16 %v1963, %v1960
        %v1970 = vpack.c.b16 %v1964, %v1961
        %v1971 = vpack.c.b16 %v1965, %v1965
        %v1972 = vpack.c.b16 %v1966, %v1966
        %v1973 = vpack.c.b16 %v1967, %v1967
        %1980 = vmatprep.subr.bf16.mxu0 %v1906
        %1981 = vmatpush1.bf16.msra.mxu0 %v1905
        %1982 = vmatprep.subr.bf16.mxu0 %v1908
        %1983 = vmatpush1.bf16.msra.mxu0 %v1907
        %1984 = vmatprep.subr.bf16.mxu0 %v1910
        %1985 = vmatpush1.bf16.msra.mxu0 %v1909
        %1986 = vmatprep.subr.bf16.mxu0 %v1912
        %1987 = vmatpush1.bf16.msra.mxu0 %v1911
        %1988 = vmatprep.subr.bf16.mxu0 %v1914
        %1989 = vmatpush1.bf16.msra.mxu0 %v1913
        %1990 = vmatprep.subr.bf16.mxu0 %v1916
        %1991 = vmatpush1.bf16.msra.mxu0 %v1915
        %1992 = vmatprep.subr.bf16.mxu0 %v1918
        %1993 = vmatpush1.bf16.msra.mxu0 %v1917
        %1994 = vmatprep.subr.bf16.mxu0 %v1920
        %1995 = vmatpush1.bf16.msra.mxu0 %v1919
        %1996 = vmatprep.subr.bf16.mxu0 %v1922
        %1997 = vmatpush1.bf16.msra.mxu0 %v1921
        %1998 = vmatprep.subr.bf16.mxu0 %v1924
        %1999 = vmatpush1.bf16.msra.mxu0 %v1923
        %2000 = vmatprep.subr.bf16.mxu0 %v1926
        %2001 = vmatpush1.bf16.msra.mxu0 %v1925
        %2002 = vmatprep.subr.bf16.mxu0 %v1928
        %2003 = vmatpush1.bf16.msra.mxu0 %v1927
        %2004 = vmatprep.subr.bf16.mxu0 %v1930
        %2005 = vmatpush1.bf16.msra.mxu0 %v1929
        %2006 = vmatprep.subr.bf16.mxu0 %v1932
        %2007 = vmatpush1.bf16.msra.mxu0 %v1931
        %2008 = vmatprep.subr.bf16.mxu0 %v1934
        %2009 = vmatpush1.bf16.msra.mxu0 %v1933
        %2010 = vmatprep.subr.bf16.mxu0 %v1936
        %2011 = vmatpush1.bf16.msra.mxu0 %v1935
        %2012 = vmatprep.mubr.bf16.mxu0 %v1969
        %2013 = vmatmul.mubr.bf16.gmra.mrb[0].mxu0 %v1968
        %v2014 = vpop.f32.mrb[0].mxu0
        %v2015 = vadd.f32 0.0, %v2014
        %v2016 = vpop.f32.mrb[0].mxu0
        %v2017 = vadd.f32 0.0, %v2016
        %v2018 = vpop.f32.mrb[0].mxu0
        %v2019 = vadd.f32 0.0, %v2018
        %v2020 = vpop.f32.mrb[0].mxu0
        %v2021 = vadd.f32 0.0, %v2020
        %2022 = vmatprep.mubr.bf16.mxu0 %v1972
        %2023 = vmatmul.mubr.bf16.gmra.mrb[0].mxu0 %v1971
        %v2024 = vpop.f32.mrb[0].mxu0
        %v2025 = vadd.f32 0.0, %v2024
        %v2026 = vpop.f32.mrb[0].mxu0
        %v2027 = vadd.f32 0.0, %v2026
        %v2028 = vpop.f32.mrb[0].mxu0
        %v2029 = vpop.f32.mrb[0].mxu0
        %2030 = vdwg.mxu0
        %2031 = vmatprep.subr.bf16.mxu0 %v1938
        %2032 = vmatpush1.bf16.msra.mxu0 %v1937
        %2033 = vmatprep.subr.bf16.mxu0 %v1940
        %2034 = vmatpush1.bf16.msra.mxu0 %v1939
        %2035 = vmatprep.subr.bf16.mxu0 %v1942
        %2036 = vmatpush1.bf16.msra.mxu0 %v1941
        %2037 = vmatprep.subr.bf16.mxu0 %v1944
        %2038 = vmatpush1.bf16.msra.mxu0 %v1943
        %2039 = vmatprep.subr.bf16.mxu0 %v1946
        %2040 = vmatpush1.bf16.msra.mxu0 %v1945
        %2041 = vmatprep.subr.bf16.mxu0 %v1948
        %2042 = vmatpush1.bf16.msra.mxu0 %v1947
        %2043 = vmatprep.subr.bf16.mxu0 %v1950
        %2044 = vmatpush1.bf16.msra.mxu0 %v1949
        %2045 = vmatprep.subr.bf16.mxu0 %v1952
        %2046 = vmatpush1.bf16.msra.mxu0 %v1951
        %2047 = vmatprep.subr.bf16.mxu0 0
        %2048 = vmatpush1.bf16.msra.mxu0 0
        %2049 = vmatprep.subr.bf16.mxu0 0
        %2050 = vmatpush1.bf16.msra.mxu0 0
        %2051 = vmatprep.subr.bf16.mxu0 0
        %2052 = vmatpush1.bf16.msra.mxu0 0
        %2053 = vmatprep.subr.bf16.mxu0 0
        %2054 = vmatpush1.bf16.msra.mxu0 0
        %2055 = vmatprep.subr.bf16.mxu0 0
        %2056 = vmatpush1.bf16.msra.mxu0 0
        %2057 = vmatprep.subr.bf16.mxu0 0
        %2058 = vmatpush1.bf16.msra.mxu0 0
        %2059 = vmatprep.subr.bf16.mxu0 0
        %2060 = vmatpush1.bf16.msra.mxu0 0
        %2061 = vmatprep.subr.bf16.mxu0 0
        %2062 = vmatpush1.bf16.msra.mxu0 0
        %2063 = vmatprep.mubr.bf16.mxu0 0
        %2064 = vmatmul.mubr.bf16.gmra.mrb[0].mxu0 %v1970
        %v2065 = vpop.f32.mrb[0].mxu0
        %v2066 = vadd.f32 %v2015, %v2065
        %v2067 = vpop.f32.mrb[0].mxu0
        %v2068 = vadd.f32 %v2017, %v2067
        %v2069 = vpop.f32.mrb[0].mxu0
        %v2070 = vadd.f32 %v2019, %v2069
        %v2071 = vpop.f32.mrb[0].mxu0
        %v2072 = vadd.f32 %v2021, %v2071
        %2073 = vmatprep.mubr.bf16.mxu0 0
        %2074 = vmatmul.mubr.bf16.gmra.mrb[0].mxu0 %v1973
        %v2075 = vpop.f32.mrb[0].mxu0
        %v2076 = vadd.f32 %v2025, %v2075
        %v2077 = vpop.f32.mrb[0].mxu0
        %v2078 = vadd.f32 %v2027, %v2077
        %v2079 = vpop.f32.mrb[0].mxu0
        %v2080 = vpop.f32.mrb[0].mxu0
        %2081 = vdwg.mxu0
        %v2082 = vadd.f32 %v1599, %v2066
        %v2083 = vadd.f32 %v1599, %v2068
        %v2084 = vadd.f32 %v1604, %v2070
        %v2085 = vadd.f32 %v1604, %v2072
        %v2086 = vadd.f32 %v1609, %v2076
        %v2087 = vadd.f32 %v1609, %v2078
        %s2088 = scalar_lea.vmem %s4, 36
        %v2089 = vld [vmem:[%s2088] sm:$0xff]
        %v2090 = vld [vmem:[%s2088 + $0x8] sm:$0xf]
        %v2091 = vld [vmem:[%s2088 + $0xc] sm:$0xff]
        %v2092 = vld [vmem:[%s2088 + $0x14] sm:$0xf]
        %v2093 = vld [vmem:[%s2088 + $0x18] sm:$0xff]
        %v2094 = vld [vmem:[%s2088 + $0x20] sm:$0xf]
        %2095 = vrot.lane.b32.xlu0 %v1546, 16
        %v2096 = vpop.permute.xlu0 %2095
        %2097 = vrot.lane.b32.xlu0 %v1548, 16
        %v2098 = vpop.permute.xlu0 %2097
        %2099 = vrot.lane.b32.xlu0 %v1550, 16
        %v2100 = vpop.permute.xlu0 %2099
        %2101 = vrot.lane.b32.xlu0 %v1552, 16
        %v2102 = vpop.permute.xlu0 %2101
        %2103 = vrot.lane.b32.xlu0 %v1554, 16
        %v2104 = vpop.permute.xlu0 %2103
        %2105 = vrot.lane.b32.xlu0 %v1556, 16
        %v2106 = vpop.permute.xlu0 %2105
        %2107 = vrot.lane.b32.xlu0 %v1558, 16
        %v2108 = vpop.permute.xlu0 %2107
        %2109 = vrot.lane.b32.xlu0 %v1560, 16
        %v2110 = vpop.permute.xlu0 %2109
        %2111 = vrot.lane.b32.xlu0 %v1562, 16
        %v2112 = vpop.permute.xlu0 %2111
        %2113 = vrot.lane.b32.xlu0 %v1564, 16
        %v2114 = vpop.permute.xlu0 %2113
        %2115 = vrot.lane.b32.xlu0 %v1566, 16
        %v2116 = vpop.permute.xlu0 %2115
        %2117 = vrot.lane.b32.xlu0 %v1568, 16
        %v2118 = vpop.permute.xlu0 %2117
        %2119 = vrot.lane.b32.xlu0 %v1570, 16
        %v2120 = vpop.permute.xlu0 %2119
        %2121 = vrot.lane.b32.xlu0 %v1572, 16
        %v2122 = vpop.permute.xlu0 %2121
        %2123 = vrot.lane.b32.xlu0 %v1574, 16
        %v2124 = vpop.permute.xlu0 %2123
        %2125 = vrot.lane.b32.xlu0 %v1576, 16
        %v2126 = vpop.permute.xlu0 %2125
        %2127 = vrot.lane.b32.xlu0 %v1578, 16
        %v2128 = vpop.permute.xlu0 %2127
        %2129 = vrot.lane.b32.xlu0 %v1580, 16
        %v2130 = vpop.permute.xlu0 %2129
        %2131 = vrot.lane.b32.xlu0 %v1582, 16
        %v2132 = vpop.permute.xlu0 %2131
        %2133 = vrot.lane.b32.xlu0 %v1584, 16
        %v2134 = vpop.permute.xlu0 %2133
        %2135 = vrot.lane.b32.xlu0 %v1586, 16
        %v2136 = vpop.permute.xlu0 %2135
        %2137 = vrot.lane.b32.xlu0 %v1588, 16
        %v2138 = vpop.permute.xlu0 %2137
        %2139 = vrot.lane.b32.xlu0 %v1590, 16
        %v2140 = vpop.permute.xlu0 %2139
        %2141 = vrot.lane.b32.xlu0 %v1592, 16
        %v2142 = vpop.permute.xlu0 %2141
        %2143 = vrot.lane.b32.xlu0 %v1545, 16
        %v2144 = vpop.permute.xlu0 %2143
        %2145 = vrot.lane.b32.xlu0 %v1547, 16
        %v2146 = vpop.permute.xlu0 %2145
        %2147 = vrot.lane.b32.xlu0 %v1549, 16
        %v2148 = vpop.permute.xlu0 %2147
        %2149 = vrot.lane.b32.xlu0 %v1551, 16
        %v2150 = vpop.permute.xlu0 %2149
        %2151 = vrot.lane.b32.xlu0 %v1553, 16
        %v2152 = vpop.permute.xlu0 %2151
        %2153 = vrot.lane.b32.xlu0 %v1555, 16
        %v2154 = vpop.permute.xlu0 %2153
        %2155 = vrot.lane.b32.xlu0 %v1557, 16
        %v2156 = vpop.permute.xlu0 %2155
        %2157 = vrot.lane.b32.xlu0 %v1559, 16
        %v2158 = vpop.permute.xlu0 %2157
        %2159 = vrot.lane.b32.xlu0 %v1561, 16
        %v2160 = vpop.permute.xlu0 %2159
        %2161 = vrot.lane.b32.xlu0 %v1563, 16
        %v2162 = vpop.permute.xlu0 %2161
        %2163 = vrot.lane.b32.xlu0 %v1565, 16
        %v2164 = vpop.permute.xlu0 %2163
        %2165 = vrot.lane.b32.xlu0 %v1567, 16
        %v2166 = vpop.permute.xlu0 %2165
        %2167 = vrot.lane.b32.xlu0 %v1569, 16
        %v2168 = vpop.permute.xlu0 %2167
        %2169 = vrot.lane.b32.xlu0 %v1571, 16
        %v2170 = vpop.permute.xlu0 %2169
        %2171 = vrot.lane.b32.xlu0 %v1573, 16
        %v2172 = vpop.permute.xlu0 %2171
        %2173 = vrot.lane.b32.xlu0 %v1575, 16
        %v2174 = vpop.permute.xlu0 %2173
        %2175 = vrot.lane.b32.xlu0 %v1577, 16
        %v2176 = vpop.permute.xlu0 %2175
        %2177 = vrot.lane.b32.xlu0 %v1579, 16
        %v2178 = vpop.permute.xlu0 %2177
        %2179 = vrot.lane.b32.xlu0 %v1581, 16
        %v2180 = vpop.permute.xlu0 %2179
        %2181 = vrot.lane.b32.xlu0 %v1583, 16
        %v2182 = vpop.permute.xlu0 %2181
        %2183 = vrot.lane.b32.xlu0 %v1585, 16
        %v2184 = vpop.permute.xlu0 %2183
        %2185 = vrot.lane.b32.xlu0 %v1587, 16
        %v2186 = vpop.permute.xlu0 %2185
        %2187 = vrot.lane.b32.xlu0 %v1589, 16
        %v2188 = vpop.permute.xlu0 %2187
        %2189 = vrot.lane.b32.xlu0 %v1591, 16
        %v2190 = vpop.permute.xlu0 %2189
        %v2191 = vsel %vm417, %v2144, %v2096
        %v2192 = vsel %vm417, %v2146, %v2098
        %v2193 = vsel %vm417, %v2148, %v2100
        %v2194 = vsel %vm417, %v2150, %v2102
        %v2195 = vsel %vm417, %v2152, %v2104
        %v2196 = vsel %vm417, %v2154, %v2106
        %v2197 = vsel %vm417, %v2156, %v2108
        %v2198 = vsel %vm417, %v2158, %v2110
        %v2199 = vsel %vm417, %v2160, %v2112
        %v2200 = vsel %vm417, %v2162, %v2114
        %v2201 = vsel %vm417, %v2164, %v2116
        %v2202 = vsel %vm417, %v2166, %v2118
        %v2203 = vsel %vm417, %v2168, %v2120
        %v2204 = vsel %vm417, %v2170, %v2122
        %v2205 = vsel %vm417, %v2172, %v2124
        %v2206 = vsel %vm417, %v2174, %v2126
        %v2207 = vsel %vm417, %v2176, %v2128
        %v2208 = vsel %vm417, %v2178, %v2130
        %v2209 = vsel %vm417, %v2180, %v2132
        %v2210 = vsel %vm417, %v2182, %v2134
        %v2211 = vsel %vm417, %v2184, %v2136
        %v2212 = vsel %vm417, %v2186, %v2138
        %v2213 = vsel %vm417, %v2188, %v2140
        %v2214 = vsel %vm417, %v2190, %v2142
        %v2241 = vsel %vm420, %v2096, %v2144
        %v2245 = vsel %vm420, %v2098, %v2146
        %v2249 = vsel %vm420, %v2100, %v2148
        %v2253 = vsel %vm420, %v2102, %v2150
        %v2257 = vsel %vm420, %v2104, %v2152
        %v2261 = vsel %vm420, %v2106, %v2154
        %v2265 = vsel %vm420, %v2108, %v2156
        %v2269 = vsel %vm420, %v2110, %v2158
        %v2273 = vsel %vm420, %v2112, %v2160
        %v2277 = vsel %vm420, %v2114, %v2162
        %v2281 = vsel %vm420, %v2116, %v2164
        %v2285 = vsel %vm420, %v2118, %v2166
        %v2289 = vsel %vm420, %v2120, %v2168
        %v2293 = vsel %vm420, %v2122, %v2170
        %v2297 = vsel %vm420, %v2124, %v2172
        %v2301 = vsel %vm420, %v2126, %v2174
        %v2305 = vsel %vm420, %v2128, %v2176
        %v2309 = vsel %vm420, %v2130, %v2178
        %v2313 = vsel %vm420, %v2132, %v2180
        %v2317 = vsel %vm420, %v2134, %v2182
        %v2321 = vsel %vm420, %v2136, %v2184
        %v2325 = vsel %vm420, %v2138, %v2186
        %v2329 = vsel %vm420, %v2140, %v2188
        %v2333 = vsel %vm420, %v2142, %v2190
        %v2335 = vmul.bf16 %v2241, %v456
        %v2336 = vmul.bf16 %v2191, %v463
        %v2337 = vmul.bf16 %v2245, %v456
        %v2338 = vmul.bf16 %v2192, %v463
        %v2339 = vmul.bf16 %v2249, %v456
        %v2340 = vmul.bf16 %v2193, %v463
        %v2341 = vmul.bf16 %v2253, %v456
        %v2342 = vmul.bf16 %v2194, %v463
        %v2343 = vmul.bf16 %v2257, %v456
        %v2344 = vmul.bf16 %v2195, %v463
        %v2345 = vmul.bf16 %v2261, %v456
        %v2346 = vmul.bf16 %v2196, %v463
        %v2347 = vmul.bf16 %v2265, %v456
        %v2348 = vmul.bf16 %v2197, %v463
        %v2349 = vmul.bf16 %v2269, %v456
        %v2350 = vmul.bf16 %v2198, %v463
        %v2351 = vmul.bf16 %v2273, %v456
        %v2352 = vmul.bf16 %v2199, %v463
        %v2353 = vmul.bf16 %v2277, %v456
        %v2354 = vmul.bf16 %v2200, %v463
        %v2355 = vmul.bf16 %v2281, %v456
        %v2356 = vmul.bf16 %v2201, %v463
        %v2357 = vmul.bf16 %v2285, %v456
        %v2358 = vmul.bf16 %v2202, %v463
        %v2359 = vmul.bf16 %v2289, %v456
        %v2360 = vmul.bf16 %v2203, %v463
        %v2361 = vmul.bf16 %v2293, %v456
        %v2362 = vmul.bf16 %v2204, %v463
        %v2363 = vmul.bf16 %v2297, %v456
        %v2364 = vmul.bf16 %v2205, %v463
        %v2365 = vmul.bf16 %v2301, %v456
        %v2366 = vmul.bf16 %v2206, %v463
        %v2367 = vmul.bf16 %v2305, %v456
        %v2368 = vmul.bf16 %v2207, %v463
        %v2369 = vmul.bf16 %v2309, %v456
        %v2370 = vmul.bf16 %v2208, %v463
        %v2371 = vmul.bf16 %v2313, %v456
        %v2372 = vmul.bf16 %v2209, %v463
        %v2373 = vmul.bf16 %v2317, %v456
        %v2374 = vmul.bf16 %v2210, %v463
        %v2375 = vmul.bf16 %v2321, %v456
        %v2376 = vmul.bf16 %v2211, %v463
        %v2377 = vmul.bf16 %v2325, %v456
        %v2378 = vmul.bf16 %v2212, %v463
        %v2379 = vmul.bf16 %v2329, %v456
        %v2380 = vmul.bf16 %v2213, %v463
        %v2381 = vmul.bf16 %v2333, %v456
        %v2382 = vmul.bf16 %v2214, %v463
        %v2389 = vunpack.c.l.b16 %v2089
        %v2390 = vunpack.c.h.b16 %v2089
        %v2391 = vunpack.c.l.b16 %v2090
        %v2392 = vunpack.c.l.b16 %v2091
        %v2393 = vunpack.c.h.b16 %v2091
        %v2394 = vunpack.c.l.b16 %v2092
        %v2395 = vunpack.c.l.b16 %v2093
        %v2396 = vunpack.c.h.b16 %v2093
        %v2397 = vunpack.c.l.b16 %v2094
        %v2398 = vpack.c.b16 %v2392, %v2389
        %v2399 = vpack.c.b16 %v2393, %v2390
        %v2400 = vpack.c.b16 %v2394, %v2391
        %v2401 = vpack.c.b16 %v2395, %v2395
        %v2402 = vpack.c.b16 %v2396, %v2396
        %v2403 = vpack.c.b16 %v2397, %v2397
        %2410 = vmatprep.subr.bf16.mxu0 %v2336
        %2411 = vmatpush1.bf16.msra.mxu0 %v2335
        %2412 = vmatprep.subr.bf16.mxu0 %v2338
        %2413 = vmatpush1.bf16.msra.mxu0 %v2337
        %2414 = vmatprep.subr.bf16.mxu0 %v2340
        %2415 = vmatpush1.bf16.msra.mxu0 %v2339
        %2416 = vmatprep.subr.bf16.mxu0 %v2342
        %2417 = vmatpush1.bf16.msra.mxu0 %v2341
        %2418 = vmatprep.subr.bf16.mxu0 %v2344
        %2419 = vmatpush1.bf16.msra.mxu0 %v2343
        %2420 = vmatprep.subr.bf16.mxu0 %v2346
        %2421 = vmatpush1.bf16.msra.mxu0 %v2345
        %2422 = vmatprep.subr.bf16.mxu0 %v2348
        %2423 = vmatpush1.bf16.msra.mxu0 %v2347
        %2424 = vmatprep.subr.bf16.mxu0 %v2350
        %2425 = vmatpush1.bf16.msra.mxu0 %v2349
        %2426 = vmatprep.subr.bf16.mxu0 %v2352
        %2427 = vmatpush1.bf16.msra.mxu0 %v2351
        %2428 = vmatprep.subr.bf16.mxu0 %v2354
        %2429 = vmatpush1.bf16.msra.mxu0 %v2353
        %2430 = vmatprep.subr.bf16.mxu0 %v2356
        %2431 = vmatpush1.bf16.msra.mxu0 %v2355
        %2432 = vmatprep.subr.bf16.mxu0 %v2358
        %2433 = vmatpush1.bf16.msra.mxu0 %v2357
        %2434 = vmatprep.subr.bf16.mxu0 %v2360
        %2435 = vmatpush1.bf16.msra.mxu0 %v2359
        %2436 = vmatprep.subr.bf16.mxu0 %v2362
        %2437 = vmatpush1.bf16.msra.mxu0 %v2361
        %2438 = vmatprep.subr.bf16.mxu0 %v2364
        %2439 = vmatpush1.bf16.msra.mxu0 %v2363
        %2440 = vmatprep.subr.bf16.mxu0 %v2366
        %2441 = vmatpush1.bf16.msra.mxu0 %v2365
        %2442 = vmatprep.mubr.bf16.mxu0 %v2399
        %2443 = vmatmul.mubr.bf16.gmra.mrb[0].mxu0 %v2398
        %v2444 = vpop.f32.mrb[0].mxu0
        %v2445 = vadd.f32 0.0, %v2444
        %v2446 = vpop.f32.mrb[0].mxu0
        %v2447 = vadd.f32 0.0, %v2446
        %v2448 = vpop.f32.mrb[0].mxu0
        %v2449 = vadd.f32 0.0, %v2448
        %v2450 = vpop.f32.mrb[0].mxu0
        %v2451 = vadd.f32 0.0, %v2450
        %2452 = vmatprep.mubr.bf16.mxu0 %v2402
        %2453 = vmatmul.mubr.bf16.gmra.mrb[0].mxu0 %v2401
        %v2454 = vpop.f32.mrb[0].mxu0
        %v2455 = vadd.f32 0.0, %v2454
        %v2456 = vpop.f32.mrb[0].mxu0
        %v2457 = vadd.f32 0.0, %v2456
        %v2458 = vpop.f32.mrb[0].mxu0
        %v2459 = vpop.f32.mrb[0].mxu0
        %2460 = vdwg.mxu0
        %2461 = vmatprep.subr.bf16.mxu0 %v2368
        %2462 = vmatpush1.bf16.msra.mxu0 %v2367
        %2463 = vmatprep.subr.bf16.mxu0 %v2370
        %2464 = vmatpush1.bf16.msra.mxu0 %v2369
        %2465 = vmatprep.subr.bf16.mxu0 %v2372
        %2466 = vmatpush1.bf16.msra.mxu0 %v2371
        %2467 = vmatprep.subr.bf16.mxu0 %v2374
        %2468 = vmatpush1.bf16.msra.mxu0 %v2373
        %2469 = vmatprep.subr.bf16.mxu0 %v2376
        %2470 = vmatpush1.bf16.msra.mxu0 %v2375
        %2471 = vmatprep.subr.bf16.mxu0 %v2378
        %2472 = vmatpush1.bf16.msra.mxu0 %v2377
        %2473 = vmatprep.subr.bf16.mxu0 %v2380
        %2474 = vmatpush1.bf16.msra.mxu0 %v2379
        %2475 = vmatprep.subr.bf16.mxu0 %v2382
        %2476 = vmatpush1.bf16.msra.mxu0 %v2381
        %2477 = vmatprep.subr.bf16.mxu0 0
        %2478 = vmatpush1.bf16.msra.mxu0 0
        %2479 = vmatprep.subr.bf16.mxu0 0
        %2480 = vmatpush1.bf16.msra.mxu0 0
        %2481 = vmatprep.subr.bf16.mxu0 0
        %2482 = vmatpush1.bf16.msra.mxu0 0
        %2483 = vmatprep.subr.bf16.mxu0 0
        %2484 = vmatpush1.bf16.msra.mxu0 0
        %2485 = vmatprep.subr.bf16.mxu0 0
        %2486 = vmatpush1.bf16.msra.mxu0 0
        %2487 = vmatprep.subr.bf16.mxu0 0
        %2488 = vmatpush1.bf16.msra.mxu0 0
        %2489 = vmatprep.subr.bf16.mxu0 0
        %2490 = vmatpush1.bf16.msra.mxu0 0
        %2491 = vmatprep.subr.bf16.mxu0 0
        %2492 = vmatpush1.bf16.msra.mxu0 0
        %2493 = vmatprep.mubr.bf16.mxu0 0
        %2494 = vmatmul.mubr.bf16.gmra.mrb[0].mxu0 %v2400
        %v2495 = vpop.f32.mrb[0].mxu0
        %v2496 = vadd.f32 %v2445, %v2495
        %v2497 = vpop.f32.mrb[0].mxu0
        %v2498 = vadd.f32 %v2447, %v2497
        %v2499 = vpop.f32.mrb[0].mxu0
        %v2500 = vadd.f32 %v2449, %v2499
        %v2501 = vpop.f32.mrb[0].mxu0
        %v2502 = vadd.f32 %v2451, %v2501
        %2503 = vmatprep.mubr.bf16.mxu0 0
        %2504 = vmatmul.mubr.bf16.gmra.mrb[0].mxu0 %v2403
        %v2505 = vpop.f32.mrb[0].mxu0
        %v2506 = vadd.f32 %v2455, %v2505
        %v2507 = vpop.f32.mrb[0].mxu0
        %v2508 = vadd.f32 %v2457, %v2507
        %v2509 = vpop.f32.mrb[0].mxu0
        %v2510 = vpop.f32.mrb[0].mxu0
        %2511 = vdwg.mxu0
        %v2512 = vadd.f32 %v2082, %v2496
        %v2513 = vadd.f32 %v2083, %v2498
        %v2514 = vadd.f32 %v2084, %v2500
        %v2515 = vadd.f32 %v2085, %v2502
        %v2516 = vadd.f32 %v2086, %v2506
        %v2517 = vadd.f32 %v2087, %v2508
        %s2518 = scalar_lea.vmem %s4, 72
        %v2519 = vld [vmem:[%s2518] sm:$0xff]
        %v2520 = vld [vmem:[%s2518 + $0x8] sm:$0xf]
        %v2521 = vld [vmem:[%s2518 + $0xc] sm:$0xff]
        %v2522 = vld [vmem:[%s2518 + $0x14] sm:$0xf]
        %v2523 = vld [vmem:[%s2518 + $0x18] sm:$0xff]
        %v2524 = vld [vmem:[%s2518 + $0x20] sm:$0xf]
        %2525 = vrot.lane.b32.xlu0 %v1546, 15
        %v2526 = vpop.permute.xlu0 %2525
        %2527 = vrot.lane.b32.xlu0 %v1548, 15
        %v2528 = vpop.permute.xlu0 %2527
        %2529 = vrot.lane.b32.xlu0 %v1550, 15
        %v2530 = vpop.permute.xlu0 %2529
        %2531 = vrot.lane.b32.xlu0 %v1552, 15
        %v2532 = vpop.permute.xlu0 %2531
        %2533 = vrot.lane.b32.xlu0 %v1554, 15
        %v2534 = vpop.permute.xlu0 %2533
        %2535 = vrot.lane.b32.xlu0 %v1556, 15
        %v2536 = vpop.permute.xlu0 %2535
        %2537 = vrot.lane.b32.xlu0 %v1558, 15
        %v2538 = vpop.permute.xlu0 %2537
        %2539 = vrot.lane.b32.xlu0 %v1560, 15
        %v2540 = vpop.permute.xlu0 %2539
        %2541 = vrot.lane.b32.xlu0 %v1562, 15
        %v2542 = vpop.permute.xlu0 %2541
        %2543 = vrot.lane.b32.xlu0 %v1564, 15
        %v2544 = vpop.permute.xlu0 %2543
        %2545 = vrot.lane.b32.xlu0 %v1566, 15
        %v2546 = vpop.permute.xlu0 %2545
        %2547 = vrot.lane.b32.xlu0 %v1568, 15
        %v2548 = vpop.permute.xlu0 %2547
        %2549 = vrot.lane.b32.xlu0 %v1570, 15
        %v2550 = vpop.permute.xlu0 %2549
        %2551 = vrot.lane.b32.xlu0 %v1572, 15
        %v2552 = vpop.permute.xlu0 %2551
        %2553 = vrot.lane.b32.xlu0 %v1574, 15
        %v2554 = vpop.permute.xlu0 %2553
        %2555 = vrot.lane.b32.xlu0 %v1576, 15
        %v2556 = vpop.permute.xlu0 %2555
        %2557 = vrot.lane.b32.xlu0 %v1578, 15
        %v2558 = vpop.permute.xlu0 %2557
        %2559 = vrot.lane.b32.xlu0 %v1580, 15
        %v2560 = vpop.permute.xlu0 %2559
        %2561 = vrot.lane.b32.xlu0 %v1582, 15
        %v2562 = vpop.permute.xlu0 %2561
        %2563 = vrot.lane.b32.xlu0 %v1584, 15
        %v2564 = vpop.permute.xlu0 %2563
        %2565 = vrot.lane.b32.xlu0 %v1586, 15
        %v2566 = vpop.permute.xlu0 %2565
        %2567 = vrot.lane.b32.xlu0 %v1588, 15
        %v2568 = vpop.permute.xlu0 %2567
        %2569 = vrot.lane.b32.xlu0 %v1590, 15
        %v2570 = vpop.permute.xlu0 %2569
        %2571 = vrot.lane.b32.xlu0 %v1592, 15
        %v2572 = vpop.permute.xlu0 %2571
        %2573 = vrot.lane.b32.xlu0 %v1545, 15
        %v2574 = vpop.permute.xlu0 %2573
        %2575 = vrot.lane.b32.xlu0 %v1547, 15
        %v2576 = vpop.permute.xlu0 %2575
        %2577 = vrot.lane.b32.xlu0 %v1549, 15
        %v2578 = vpop.permute.xlu0 %2577
        %2579 = vrot.lane.b32.xlu0 %v1551, 15
        %v2580 = vpop.permute.xlu0 %2579
        %2581 = vrot.lane.b32.xlu0 %v1553, 15
        %v2582 = vpop.permute.xlu0 %2581
        %2583 = vrot.lane.b32.xlu0 %v1555, 15
        %v2584 = vpop.permute.xlu0 %2583
        %2585 = vrot.lane.b32.xlu0 %v1557, 15
        %v2586 = vpop.permute.xlu0 %2585
        %2587 = vrot.lane.b32.xlu0 %v1559, 15
        %v2588 = vpop.permute.xlu0 %2587
        %2589 = vrot.lane.b32.xlu0 %v1561, 15
        %v2590 = vpop.permute.xlu0 %2589
        %2591 = vrot.lane.b32.xlu0 %v1563, 15
        %v2592 = vpop.permute.xlu0 %2591
        %2593 = vrot.lane.b32.xlu0 %v1565, 15
        %v2594 = vpop.permute.xlu0 %2593
        %2595 = vrot.lane.b32.xlu0 %v1567, 15
        %v2596 = vpop.permute.xlu0 %2595
        %2597 = vrot.lane.b32.xlu0 %v1569, 15
        %v2598 = vpop.permute.xlu0 %2597
        %2599 = vrot.lane.b32.xlu0 %v1571, 15
        %v2600 = vpop.permute.xlu0 %2599
        %2601 = vrot.lane.b32.xlu0 %v1573, 15
        %v2602 = vpop.permute.xlu0 %2601
        %2603 = vrot.lane.b32.xlu0 %v1575, 15
        %v2604 = vpop.permute.xlu0 %2603
        %2605 = vrot.lane.b32.xlu0 %v1577, 15
        %v2606 = vpop.permute.xlu0 %2605
        %2607 = vrot.lane.b32.xlu0 %v1579, 15
        %v2608 = vpop.permute.xlu0 %2607
        %2609 = vrot.lane.b32.xlu0 %v1581, 15
        %v2610 = vpop.permute.xlu0 %2609
        %2611 = vrot.lane.b32.xlu0 %v1583, 15
        %v2612 = vpop.permute.xlu0 %2611
        %2613 = vrot.lane.b32.xlu0 %v1585, 15
        %v2614 = vpop.permute.xlu0 %2613
        %2615 = vrot.lane.b32.xlu0 %v1587, 15
        %v2616 = vpop.permute.xlu0 %2615
        %2617 = vrot.lane.b32.xlu0 %v1589, 15
        %v2618 = vpop.permute.xlu0 %2617
        %2619 = vrot.lane.b32.xlu0 %v1591, 15
        %v2620 = vpop.permute.xlu0 %2619
        %v2621 = vsel %vm470, %v2574, %v2526
        %v2622 = vsel %vm470, %v2576, %v2528
        %v2623 = vsel %vm470, %v2578, %v2530
        %v2624 = vsel %vm470, %v2580, %v2532
        %v2625 = vsel %vm470, %v2582, %v2534
        %v2626 = vsel %vm470, %v2584, %v2536
        %v2627 = vsel %vm470, %v2586, %v2538
        %v2628 = vsel %vm470, %v2588, %v2540
        %v2629 = vsel %vm470, %v2590, %v2542
        %v2630 = vsel %vm470, %v2592, %v2544
        %v2631 = vsel %vm470, %v2594, %v2546
        %v2632 = vsel %vm470, %v2596, %v2548
        %v2633 = vsel %vm470, %v2598, %v2550
        %v2634 = vsel %vm470, %v2600, %v2552
        %v2635 = vsel %vm470, %v2602, %v2554
        %v2636 = vsel %vm470, %v2604, %v2556
        %v2637 = vsel %vm470, %v2606, %v2558
        %v2638 = vsel %vm470, %v2608, %v2560
        %v2639 = vsel %vm470, %v2610, %v2562
        %v2640 = vsel %vm470, %v2612, %v2564
        %v2641 = vsel %vm470, %v2614, %v2566
        %v2642 = vsel %vm470, %v2616, %v2568
        %v2643 = vsel %vm470, %v2618, %v2570
        %v2644 = vsel %vm470, %v2620, %v2572
        %v2671 = vsel %vm473, %v2526, %v2574
        %v2675 = vsel %vm473, %v2528, %v2576
        %v2679 = vsel %vm473, %v2530, %v2578
        %v2683 = vsel %vm473, %v2532, %v2580
        %v2687 = vsel %vm473, %v2534, %v2582
        %v2691 = vsel %vm473, %v2536, %v2584
        %v2695 = vsel %vm473, %v2538, %v2586
        %v2699 = vsel %vm473, %v2540, %v2588
        %v2703 = vsel %vm473, %v2542, %v2590
        %v2707 = vsel %vm473, %v2544, %v2592
        %v2711 = vsel %vm473, %v2546, %v2594
        %v2715 = vsel %vm473, %v2548, %v2596
        %v2719 = vsel %vm473, %v2550, %v2598
        %v2723 = vsel %vm473, %v2552, %v2600
        %v2727 = vsel %vm473, %v2554, %v2602
        %v2731 = vsel %vm473, %v2556, %v2604
        %v2735 = vsel %vm473, %v2558, %v2606
        %v2739 = vsel %vm473, %v2560, %v2608
        %v2743 = vsel %vm473, %v2562, %v2610
        %v2747 = vsel %vm473, %v2564, %v2612
        %v2751 = vsel %vm473, %v2566, %v2614
        %v2755 = vsel %vm473, %v2568, %v2616
        %v2759 = vsel %vm473, %v2570, %v2618
        %v2763 = vsel %vm473, %v2572, %v2620
        %v2765 = vmul.bf16 %v2671, %v509
        %v2766 = vmul.bf16 %v2621, %v516
        %v2767 = vmul.bf16 %v2675, %v509
        %v2768 = vmul.bf16 %v2622, %v516
        %v2769 = vmul.bf16 %v2679, %v509
        %v2770 = vmul.bf16 %v2623, %v516
        %v2771 = vmul.bf16 %v2683, %v509
        %v2772 = vmul.bf16 %v2624, %v516
        %v2773 = vmul.bf16 %v2687, %v509
        %v2774 = vmul.bf16 %v2625, %v516
        %v2775 = vmul.bf16 %v2691, %v509
        %v2776 = vmul.bf16 %v2626, %v516
        %v2777 = vmul.bf16 %v2695, %v509
        %v2778 = vmul.bf16 %v2627, %v516
        %v2779 = vmul.bf16 %v2699, %v509
        %v2780 = vmul.bf16 %v2628, %v516
        %v2781 = vmul.bf16 %v2703, %v509
        %v2782 = vmul.bf16 %v2629, %v516
        %v2783 = vmul.bf16 %v2707, %v509
        %v2784 = vmul.bf16 %v2630, %v516
        %v2785 = vmul.bf16 %v2711, %v509
        %v2786 = vmul.bf16 %v2631, %v516
        %v2787 = vmul.bf16 %v2715, %v509
        %v2788 = vmul.bf16 %v2632, %v516
        %v2789 = vmul.bf16 %v2719, %v509
        %v2790 = vmul.bf16 %v2633, %v516
        %v2791 = vmul.bf16 %v2723, %v509
        %v2792 = vmul.bf16 %v2634, %v516
        %v2793 = vmul.bf16 %v2727, %v509
        %v2794 = vmul.bf16 %v2635, %v516
        %v2795 = vmul.bf16 %v2731, %v509
        %v2796 = vmul.bf16 %v2636, %v516
        %v2797 = vmul.bf16 %v2735, %v509
        %v2798 = vmul.bf16 %v2637, %v516
        %v2799 = vmul.bf16 %v2739, %v509
        %v2800 = vmul.bf16 %v2638, %v516
        %v2801 = vmul.bf16 %v2743, %v509
        %v2802 = vmul.bf16 %v2639, %v516
        %v2803 = vmul.bf16 %v2747, %v509
        %v2804 = vmul.bf16 %v2640, %v516
        %v2805 = vmul.bf16 %v2751, %v509
        %v2806 = vmul.bf16 %v2641, %v516
        %v2807 = vmul.bf16 %v2755, %v509
        %v2808 = vmul.bf16 %v2642, %v516
        %v2809 = vmul.bf16 %v2759, %v509
        %v2810 = vmul.bf16 %v2643, %v516
        %v2811 = vmul.bf16 %v2763, %v509
        %v2812 = vmul.bf16 %v2644, %v516
        %v2819 = vunpack.c.l.b16 %v2519
        %v2820 = vunpack.c.h.b16 %v2519
        %v2821 = vunpack.c.l.b16 %v2520
        %v2822 = vunpack.c.l.b16 %v2521
        %v2823 = vunpack.c.h.b16 %v2521
        %v2824 = vunpack.c.l.b16 %v2522
        %v2825 = vunpack.c.l.b16 %v2523
        %v2826 = vunpack.c.h.b16 %v2523
        %v2827 = vunpack.c.l.b16 %v2524
        %v2828 = vpack.c.b16 %v2822, %v2819
        %v2829 = vpack.c.b16 %v2823, %v2820
        %v2830 = vpack.c.b16 %v2824, %v2821
        %v2831 = vpack.c.b16 %v2825, %v2825
        %v2832 = vpack.c.b16 %v2826, %v2826
        %v2833 = vpack.c.b16 %v2827, %v2827
        %2840 = vmatprep.subr.bf16.mxu0 %v2766
        %2841 = vmatpush1.bf16.msra.mxu0 %v2765
        %2842 = vmatprep.subr.bf16.mxu0 %v2768
        %2843 = vmatpush1.bf16.msra.mxu0 %v2767
        %2844 = vmatprep.subr.bf16.mxu0 %v2770
        %2845 = vmatpush1.bf16.msra.mxu0 %v2769
        %2846 = vmatprep.subr.bf16.mxu0 %v2772
        %2847 = vmatpush1.bf16.msra.mxu0 %v2771
        %2848 = vmatprep.subr.bf16.mxu0 %v2774
        %2849 = vmatpush1.bf16.msra.mxu0 %v2773
        %2850 = vmatprep.subr.bf16.mxu0 %v2776
        %2851 = vmatpush1.bf16.msra.mxu0 %v2775
        %2852 = vmatprep.subr.bf16.mxu0 %v2778
        %2853 = vmatpush1.bf16.msra.mxu0 %v2777
        %2854 = vmatprep.subr.bf16.mxu0 %v2780
        %2855 = vmatpush1.bf16.msra.mxu0 %v2779
        %2856 = vmatprep.subr.bf16.mxu0 %v2782
        %2857 = vmatpush1.bf16.msra.mxu0 %v2781
        %2858 = vmatprep.subr.bf16.mxu0 %v2784
        %2859 = vmatpush1.bf16.msra.mxu0 %v2783
        %2860 = vmatprep.subr.bf16.mxu0 %v2786
        %2861 = vmatpush1.bf16.msra.mxu0 %v2785
        %2862 = vmatprep.subr.bf16.mxu0 %v2788
        %2863 = vmatpush1.bf16.msra.mxu0 %v2787
        %2864 = vmatprep.subr.bf16.mxu0 %v2790
        %2865 = vmatpush1.bf16.msra.mxu0 %v2789
        %2866 = vmatprep.subr.bf16.mxu0 %v2792
        %2867 = vmatpush1.bf16.msra.mxu0 %v2791
        %2868 = vmatprep.subr.bf16.mxu0 %v2794
        %2869 = vmatpush1.bf16.msra.mxu0 %v2793
        %2870 = vmatprep.subr.bf16.mxu0 %v2796
        %2871 = vmatpush1.bf16.msra.mxu0 %v2795
        %2872 = vmatprep.mubr.bf16.mxu0 %v2829
        %2873 = vmatmul.mubr.bf16.gmra.mrb[0].mxu0 %v2828
        %v2874 = vpop.f32.mrb[0].mxu0
        %v2875 = vadd.f32 0.0, %v2874
        %v2876 = vpop.f32.mrb[0].mxu0
        %v2877 = vadd.f32 0.0, %v2876
        %v2878 = vpop.f32.mrb[0].mxu0
        %v2879 = vadd.f32 0.0, %v2878
        %v2880 = vpop.f32.mrb[0].mxu0
        %v2881 = vadd.f32 0.0, %v2880
        %2882 = vmatprep.mubr.bf16.mxu0 %v2832
        %2883 = vmatmul.mubr.bf16.gmra.mrb[0].mxu0 %v2831
        %v2884 = vpop.f32.mrb[0].mxu0
        %v2885 = vadd.f32 0.0, %v2884
        %v2886 = vpop.f32.mrb[0].mxu0
        %v2887 = vadd.f32 0.0, %v2886
        %v2888 = vpop.f32.mrb[0].mxu0
        %v2889 = vpop.f32.mrb[0].mxu0
        %2890 = vdwg.mxu0
        %2891 = vmatprep.subr.bf16.mxu0 %v2798
        %2892 = vmatpush1.bf16.msra.mxu0 %v2797
        %2893 = vmatprep.subr.bf16.mxu0 %v2800
        %2894 = vmatpush1.bf16.msra.mxu0 %v2799
        %2895 = vmatprep.subr.bf16.mxu0 %v2802
        %2896 = vmatpush1.bf16.msra.mxu0 %v2801
        %2897 = vmatprep.subr.bf16.mxu0 %v2804
        %2898 = vmatpush1.bf16.msra.mxu0 %v2803
        %2899 = vmatprep.subr.bf16.mxu0 %v2806
        %2900 = vmatpush1.bf16.msra.mxu0 %v2805
        %2901 = vmatprep.subr.bf16.mxu0 %v2808
        %2902 = vmatpush1.bf16.msra.mxu0 %v2807
        %2903 = vmatprep.subr.bf16.mxu0 %v2810
        %2904 = vmatpush1.bf16.msra.mxu0 %v2809
        %2905 = vmatprep.subr.bf16.mxu0 %v2812
        %2906 = vmatpush1.bf16.msra.mxu0 %v2811
        %2907 = vmatprep.subr.bf16.mxu0 0
        %2908 = vmatpush1.bf16.msra.mxu0 0
        %2909 = vmatprep.subr.bf16.mxu0 0
        %2910 = vmatpush1.bf16.msra.mxu0 0
        %2911 = vmatprep.subr.bf16.mxu0 0
        %2912 = vmatpush1.bf16.msra.mxu0 0
        %2913 = vmatprep.subr.bf16.mxu0 0
        %2914 = vmatpush1.bf16.msra.mxu0 0
        %2915 = vmatprep.subr.bf16.mxu0 0
        %2916 = vmatpush1.bf16.msra.mxu0 0
        %2917 = vmatprep.subr.bf16.mxu0 0
        %2918 = vmatpush1.bf16.msra.mxu0 0
        %2919 = vmatprep.subr.bf16.mxu0 0
        %2920 = vmatpush1.bf16.msra.mxu0 0
        %2921 = vmatprep.subr.bf16.mxu0 0
        %2922 = vmatpush1.bf16.msra.mxu0 0
        %2923 = vmatprep.mubr.bf16.mxu0 0
        %2924 = vmatmul.mubr.bf16.gmra.mrb[0].mxu0 %v2830
        %v2925 = vpop.f32.mrb[0].mxu0
        %v2926 = vadd.f32 %v2875, %v2925
        %v2927 = vpop.f32.mrb[0].mxu0
        %v2928 = vadd.f32 %v2877, %v2927
        %v2929 = vpop.f32.mrb[0].mxu0
        %v2930 = vadd.f32 %v2879, %v2929
        %v2931 = vpop.f32.mrb[0].mxu0
        %v2932 = vadd.f32 %v2881, %v2931
        %2933 = vmatprep.mubr.bf16.mxu0 0
        %2934 = vmatmul.mubr.bf16.gmra.mrb[0].mxu0 %v2833
        %v2935 = vpop.f32.mrb[0].mxu0
        %v2936 = vadd.f32 %v2885, %v2935
        %v2937 = vpop.f32.mrb[0].mxu0
        %v2938 = vadd.f32 %v2887, %v2937
        %v2939 = vpop.f32.mrb[0].mxu0
        %v2940 = vpop.f32.mrb[0].mxu0
        %2941 = vdwg.mxu0
        %v2942 = vadd.f32 %v2512, %v2926
        %v2943 = vadd.f32 %v2513, %v2928
        %v2944 = vadd.f32 %v2514, %v2930
        %v2945 = vadd.f32 %v2515, %v2932
        %v2946 = vadd.f32 %v2516, %v2936
        %v2947 = vadd.f32 %v2517, %v2938
        %s2948 = scalar_lea.vmem %s4, 108
        %v2949 = vld [vmem:[%s2948] sm:$0xff]
        %v2950 = vld [vmem:[%s2948 + $0x8] sm:$0xf]
        %v2951 = vld [vmem:[%s2948 + $0xc] sm:$0xff]
        %v2952 = vld [vmem:[%s2948 + $0x14] sm:$0xf]
        %v2953 = vld [vmem:[%s2948 + $0x18] sm:$0xff]
        %v2954 = vld [vmem:[%s2948 + $0x20] sm:$0xf]
        %2955 = vrot.lane.b32.xlu0 %v1546, 1
        %v2956 = vpop.permute.xlu0 %2955
        %2957 = vrot.lane.b32.xlu0 %v1548, 1
        %v2958 = vpop.permute.xlu0 %2957
        %2959 = vrot.lane.b32.xlu0 %v1550, 1
        %v2960 = vpop.permute.xlu0 %2959
        %2961 = vrot.lane.b32.xlu0 %v1552, 1
        %v2962 = vpop.permute.xlu0 %2961
        %2963 = vrot.lane.b32.xlu0 %v1554, 1
        %v2964 = vpop.permute.xlu0 %2963
        %2965 = vrot.lane.b32.xlu0 %v1556, 1
        %v2966 = vpop.permute.xlu0 %2965
        %2967 = vrot.lane.b32.xlu0 %v1558, 1
        %v2968 = vpop.permute.xlu0 %2967
        %2969 = vrot.lane.b32.xlu0 %v1560, 1
        %v2970 = vpop.permute.xlu0 %2969
        %2971 = vrot.lane.b32.xlu0 %v1562, 1
        %v2972 = vpop.permute.xlu0 %2971
        %2973 = vrot.lane.b32.xlu0 %v1564, 1
        %v2974 = vpop.permute.xlu0 %2973
        %2975 = vrot.lane.b32.xlu0 %v1566, 1
        %v2976 = vpop.permute.xlu0 %2975
        %2977 = vrot.lane.b32.xlu0 %v1568, 1
        %v2978 = vpop.permute.xlu0 %2977
        %2979 = vrot.lane.b32.xlu0 %v1570, 1
        %v2980 = vpop.permute.xlu0 %2979
        %2981 = vrot.lane.b32.xlu0 %v1572, 1
        %v2982 = vpop.permute.xlu0 %2981
        %2983 = vrot.lane.b32.xlu0 %v1574, 1
        %v2984 = vpop.permute.xlu0 %2983
        %2985 = vrot.lane.b32.xlu0 %v1576, 1
        %v2986 = vpop.permute.xlu0 %2985
        %2987 = vrot.lane.b32.xlu0 %v1578, 1
        %v2988 = vpop.permute.xlu0 %2987
        %2989 = vrot.lane.b32.xlu0 %v1580, 1
        %v2990 = vpop.permute.xlu0 %2989
        %2991 = vrot.lane.b32.xlu0 %v1582, 1
        %v2992 = vpop.permute.xlu0 %2991
        %2993 = vrot.lane.b32.xlu0 %v1584, 1
        %v2994 = vpop.permute.xlu0 %2993
        %2995 = vrot.lane.b32.xlu0 %v1586, 1
        %v2996 = vpop.permute.xlu0 %2995
        %2997 = vrot.lane.b32.xlu0 %v1588, 1
        %v2998 = vpop.permute.xlu0 %2997
        %2999 = vrot.lane.b32.xlu0 %v1590, 1
        %v3000 = vpop.permute.xlu0 %2999
        %3001 = vrot.lane.b32.xlu0 %v1592, 1
        %v3002 = vpop.permute.xlu0 %3001
        %3003 = vrot.lane.b32.xlu0 %v1545, 1
        %v3004 = vpop.permute.xlu0 %3003
        %3005 = vrot.lane.b32.xlu0 %v1547, 1
        %v3006 = vpop.permute.xlu0 %3005
        %3007 = vrot.lane.b32.xlu0 %v1549, 1
        %v3008 = vpop.permute.xlu0 %3007
        %3009 = vrot.lane.b32.xlu0 %v1551, 1
        %v3010 = vpop.permute.xlu0 %3009
        %3011 = vrot.lane.b32.xlu0 %v1553, 1
        %v3012 = vpop.permute.xlu0 %3011
        %3013 = vrot.lane.b32.xlu0 %v1555, 1
        %v3014 = vpop.permute.xlu0 %3013
        %3015 = vrot.lane.b32.xlu0 %v1557, 1
        %v3016 = vpop.permute.xlu0 %3015
        %3017 = vrot.lane.b32.xlu0 %v1559, 1
        %v3018 = vpop.permute.xlu0 %3017
        %3019 = vrot.lane.b32.xlu0 %v1561, 1
        %v3020 = vpop.permute.xlu0 %3019
        %3021 = vrot.lane.b32.xlu0 %v1563, 1
        %v3022 = vpop.permute.xlu0 %3021
        %3023 = vrot.lane.b32.xlu0 %v1565, 1
        %v3024 = vpop.permute.xlu0 %3023
        %3025 = vrot.lane.b32.xlu0 %v1567, 1
        %v3026 = vpop.permute.xlu0 %3025
        %3027 = vrot.lane.b32.xlu0 %v1569, 1
        %v3028 = vpop.permute.xlu0 %3027
        %3029 = vrot.lane.b32.xlu0 %v1571, 1
        %v3030 = vpop.permute.xlu0 %3029
        %3031 = vrot.lane.b32.xlu0 %v1573, 1
        %v3032 = vpop.permute.xlu0 %3031
        %3033 = vrot.lane.b32.xlu0 %v1575, 1
        %v3034 = vpop.permute.xlu0 %3033
        %3035 = vrot.lane.b32.xlu0 %v1577, 1
        %v3036 = vpop.permute.xlu0 %3035
        %3037 = vrot.lane.b32.xlu0 %v1579, 1
        %v3038 = vpop.permute.xlu0 %3037
        %3039 = vrot.lane.b32.xlu0 %v1581, 1
        %v3040 = vpop.permute.xlu0 %3039
        %3041 = vrot.lane.b32.xlu0 %v1583, 1
        %v3042 = vpop.permute.xlu0 %3041
        %3043 = vrot.lane.b32.xlu0 %v1585, 1
        %v3044 = vpop.permute.xlu0 %3043
        %3045 = vrot.lane.b32.xlu0 %v1587, 1
        %v3046 = vpop.permute.xlu0 %3045
        %3047 = vrot.lane.b32.xlu0 %v1589, 1
        %v3048 = vpop.permute.xlu0 %3047
        %3049 = vrot.lane.b32.xlu0 %v1591, 1
        %v3050 = vpop.permute.xlu0 %3049
        %v3051 = vsel %vm523, %v3004, %v2956
        %v3052 = vsel %vm523, %v3006, %v2958
        %v3053 = vsel %vm523, %v3008, %v2960
        %v3054 = vsel %vm523, %v3010, %v2962
        %v3055 = vsel %vm523, %v3012, %v2964
        %v3056 = vsel %vm523, %v3014, %v2966
        %v3057 = vsel %vm523, %v3016, %v2968
        %v3058 = vsel %vm523, %v3018, %v2970
        %v3059 = vsel %vm523, %v3020, %v2972
        %v3060 = vsel %vm523, %v3022, %v2974
        %v3061 = vsel %vm523, %v3024, %v2976
        %v3062 = vsel %vm523, %v3026, %v2978
        %v3063 = vsel %vm523, %v3028, %v2980
        %v3064 = vsel %vm523, %v3030, %v2982
        %v3065 = vsel %vm523, %v3032, %v2984
        %v3066 = vsel %vm523, %v3034, %v2986
        %v3067 = vsel %vm523, %v3036, %v2988
        %v3068 = vsel %vm523, %v3038, %v2990
        %v3069 = vsel %vm523, %v3040, %v2992
        %v3070 = vsel %vm523, %v3042, %v2994
        %v3071 = vsel %vm523, %v3044, %v2996
        %v3072 = vsel %vm523, %v3046, %v2998
        %v3073 = vsel %vm523, %v3048, %v3000
        %v3074 = vsel %vm523, %v3050, %v3002
        %v3101 = vsel %vm526, %v2956, %v3004
        %v3105 = vsel %vm526, %v2958, %v3006
        %v3109 = vsel %vm526, %v2960, %v3008
        %v3113 = vsel %vm526, %v2962, %v3010
        %v3117 = vsel %vm526, %v2964, %v3012
        %v3121 = vsel %vm526, %v2966, %v3014
        %v3125 = vsel %vm526, %v2968, %v3016
        %v3129 = vsel %vm526, %v2970, %v3018
        %v3133 = vsel %vm526, %v2972, %v3020
        %v3137 = vsel %vm526, %v2974, %v3022
        %v3141 = vsel %vm526, %v2976, %v3024
        %v3145 = vsel %vm526, %v2978, %v3026
        %v3149 = vsel %vm526, %v2980, %v3028
        %v3153 = vsel %vm526, %v2982, %v3030
        %v3157 = vsel %vm526, %v2984, %v3032
        %v3161 = vsel %vm526, %v2986, %v3034
        %v3165 = vsel %vm526, %v2988, %v3036
        %v3169 = vsel %vm526, %v2990, %v3038
        %v3173 = vsel %vm526, %v2992, %v3040
        %v3177 = vsel %vm526, %v2994, %v3042
        %v3181 = vsel %vm526, %v2996, %v3044
        %v3185 = vsel %vm526, %v2998, %v3046
        %v3189 = vsel %vm526, %v3000, %v3048
        %v3193 = vsel %vm526, %v3002, %v3050
        %v3195 = vmul.bf16 %v3101, %v562
        %v3196 = vmul.bf16 %v3051, %v569
        %v3197 = vmul.bf16 %v3105, %v562
        %v3198 = vmul.bf16 %v3052, %v569
        %v3199 = vmul.bf16 %v3109, %v562
        %v3200 = vmul.bf16 %v3053, %v569
        %v3201 = vmul.bf16 %v3113, %v562
        %v3202 = vmul.bf16 %v3054, %v569
        %v3203 = vmul.bf16 %v3117, %v562
        %v3204 = vmul.bf16 %v3055, %v569
        %v3205 = vmul.bf16 %v3121, %v562
        %v3206 = vmul.bf16 %v3056, %v569
        %v3207 = vmul.bf16 %v3125, %v562
        %v3208 = vmul.bf16 %v3057, %v569
        %v3209 = vmul.bf16 %v3129, %v562
        %v3210 = vmul.bf16 %v3058, %v569
        %v3211 = vmul.bf16 %v3133, %v562
        %v3212 = vmul.bf16 %v3059, %v569
        %v3213 = vmul.bf16 %v3137, %v562
        %v3214 = vmul.bf16 %v3060, %v569
        %v3215 = vmul.bf16 %v3141, %v562
        %v3216 = vmul.bf16 %v3061, %v569
        %v3217 = vmul.bf16 %v3145, %v562
        %v3218 = vmul.bf16 %v3062, %v569
        %v3219 = vmul.bf16 %v3149, %v562
        %v3220 = vmul.bf16 %v3063, %v569
        %v3221 = vmul.bf16 %v3153, %v562
        %v3222 = vmul.bf16 %v3064, %v569
        %v3223 = vmul.bf16 %v3157, %v562
        %v3224 = vmul.bf16 %v3065, %v569
        %v3225 = vmul.bf16 %v3161, %v562
        %v3226 = vmul.bf16 %v3066, %v569
        %v3227 = vmul.bf16 %v3165, %v562
        %v3228 = vmul.bf16 %v3067, %v569
        %v3229 = vmul.bf16 %v3169, %v562
        %v3230 = vmul.bf16 %v3068, %v569
        %v3231 = vmul.bf16 %v3173, %v562
        %v3232 = vmul.bf16 %v3069, %v569
        %v3233 = vmul.bf16 %v3177, %v562
        %v3234 = vmul.bf16 %v3070, %v569
        %v3235 = vmul.bf16 %v3181, %v562
        %v3236 = vmul.bf16 %v3071, %v569
        %v3237 = vmul.bf16 %v3185, %v562
        %v3238 = vmul.bf16 %v3072, %v569
        %v3239 = vmul.bf16 %v3189, %v562
        %v3240 = vmul.bf16 %v3073, %v569
        %v3241 = vmul.bf16 %v3193, %v562
        %v3242 = vmul.bf16 %v3074, %v569
        %v3249 = vunpack.c.l.b16 %v2949
        %v3250 = vunpack.c.h.b16 %v2949
        %v3251 = vunpack.c.l.b16 %v2950
        %v3252 = vunpack.c.l.b16 %v2951
        %v3253 = vunpack.c.h.b16 %v2951
        %v3254 = vunpack.c.l.b16 %v2952
        %v3255 = vunpack.c.l.b16 %v2953
        %v3256 = vunpack.c.h.b16 %v2953
        %v3257 = vunpack.c.l.b16 %v2954
        %v3258 = vpack.c.b16 %v3252, %v3249
        %v3259 = vpack.c.b16 %v3253, %v3250
        %v3260 = vpack.c.b16 %v3254, %v3251
        %v3261 = vpack.c.b16 %v3255, %v3255
        %v3262 = vpack.c.b16 %v3256, %v3256
        %v3263 = vpack.c.b16 %v3257, %v3257
        %3270 = vmatprep.subr.bf16.mxu0 %v3196
        %3271 = vmatpush1.bf16.msra.mxu0 %v3195
        %3272 = vmatprep.subr.bf16.mxu0 %v3198
        %3273 = vmatpush1.bf16.msra.mxu0 %v3197
        %3274 = vmatprep.subr.bf16.mxu0 %v3200
        %3275 = vmatpush1.bf16.msra.mxu0 %v3199
        %3276 = vmatprep.subr.bf16.mxu0 %v3202
        %3277 = vmatpush1.bf16.msra.mxu0 %v3201
        %3278 = vmatprep.subr.bf16.mxu0 %v3204
        %3279 = vmatpush1.bf16.msra.mxu0 %v3203
        %3280 = vmatprep.subr.bf16.mxu0 %v3206
        %3281 = vmatpush1.bf16.msra.mxu0 %v3205
        %3282 = vmatprep.subr.bf16.mxu0 %v3208
        %3283 = vmatpush1.bf16.msra.mxu0 %v3207
        %3284 = vmatprep.subr.bf16.mxu0 %v3210
        %3285 = vmatpush1.bf16.msra.mxu0 %v3209
        %3286 = vmatprep.subr.bf16.mxu0 %v3212
        %3287 = vmatpush1.bf16.msra.mxu0 %v3211
        %3288 = vmatprep.subr.bf16.mxu0 %v3214
        %3289 = vmatpush1.bf16.msra.mxu0 %v3213
        %3290 = vmatprep.subr.bf16.mxu0 %v3216
        %3291 = vmatpush1.bf16.msra.mxu0 %v3215
        %3292 = vmatprep.subr.bf16.mxu0 %v3218
        %3293 = vmatpush1.bf16.msra.mxu0 %v3217
        %3294 = vmatprep.subr.bf16.mxu0 %v3220
        %3295 = vmatpush1.bf16.msra.mxu0 %v3219
        %3296 = vmatprep.subr.bf16.mxu0 %v3222
        %3297 = vmatpush1.bf16.msra.mxu0 %v3221
        %3298 = vmatprep.subr.bf16.mxu0 %v3224
        %3299 = vmatpush1.bf16.msra.mxu0 %v3223
        %3300 = vmatprep.subr.bf16.mxu0 %v3226
        %3301 = vmatpush1.bf16.msra.mxu0 %v3225
        %3302 = vmatprep.mubr.bf16.mxu0 %v3259
        %3303 = vmatmul.mubr.bf16.gmra.mrb[0].mxu0 %v3258
        %v3304 = vpop.f32.mrb[0].mxu0
        %v3305 = vadd.f32 0.0, %v3304
        %v3306 = vpop.f32.mrb[0].mxu0
        %v3307 = vadd.f32 0.0, %v3306
        %v3308 = vpop.f32.mrb[0].mxu0
        %v3309 = vadd.f32 0.0, %v3308
        %v3310 = vpop.f32.mrb[0].mxu0
        %v3311 = vadd.f32 0.0, %v3310
        %3312 = vmatprep.mubr.bf16.mxu0 %v3262
        %3313 = vmatmul.mubr.bf16.gmra.mrb[0].mxu0 %v3261
        %v3314 = vpop.f32.mrb[0].mxu0
        %v3315 = vadd.f32 0.0, %v3314
        %v3316 = vpop.f32.mrb[0].mxu0
        %v3317 = vadd.f32 0.0, %v3316
        %v3318 = vpop.f32.mrb[0].mxu0
        %v3319 = vpop.f32.mrb[0].mxu0
        %3320 = vdwg.mxu0
        %3321 = vmatprep.subr.bf16.mxu0 %v3228
        %3322 = vmatpush1.bf16.msra.mxu0 %v3227
        %3323 = vmatprep.subr.bf16.mxu0 %v3230
        %3324 = vmatpush1.bf16.msra.mxu0 %v3229
        %3325 = vmatprep.subr.bf16.mxu0 %v3232
        %3326 = vmatpush1.bf16.msra.mxu0 %v3231
        %3327 = vmatprep.subr.bf16.mxu0 %v3234
        %3328 = vmatpush1.bf16.msra.mxu0 %v3233
        %3329 = vmatprep.subr.bf16.mxu0 %v3236
        %3330 = vmatpush1.bf16.msra.mxu0 %v3235
        %3331 = vmatprep.subr.bf16.mxu0 %v3238
        %3332 = vmatpush1.bf16.msra.mxu0 %v3237
        %3333 = vmatprep.subr.bf16.mxu0 %v3240
        %3334 = vmatpush1.bf16.msra.mxu0 %v3239
        %3335 = vmatprep.subr.bf16.mxu0 %v3242
        %3336 = vmatpush1.bf16.msra.mxu0 %v3241
        %3337 = vmatprep.subr.bf16.mxu0 0
        %3338 = vmatpush1.bf16.msra.mxu0 0
        %3339 = vmatprep.subr.bf16.mxu0 0
        %3340 = vmatpush1.bf16.msra.mxu0 0
        %3341 = vmatprep.subr.bf16.mxu0 0
        %3342 = vmatpush1.bf16.msra.mxu0 0
        %3343 = vmatprep.subr.bf16.mxu0 0
        %3344 = vmatpush1.bf16.msra.mxu0 0
        %3345 = vmatprep.subr.bf16.mxu0 0
        %3346 = vmatpush1.bf16.msra.mxu0 0
        %3347 = vmatprep.subr.bf16.mxu0 0
        %3348 = vmatpush1.bf16.msra.mxu0 0
        %3349 = vmatprep.subr.bf16.mxu0 0
        %3350 = vmatpush1.bf16.msra.mxu0 0
        %3351 = vmatprep.subr.bf16.mxu0 0
        %3352 = vmatpush1.bf16.msra.mxu0 0
        %3353 = vmatprep.mubr.bf16.mxu0 0
        %3354 = vmatmul.mubr.bf16.gmra.mrb[0].mxu0 %v3260
        %v3355 = vpop.f32.mrb[0].mxu0
        %v3356 = vadd.f32 %v3305, %v3355
        %v3357 = vpop.f32.mrb[0].mxu0
        %v3358 = vadd.f32 %v3307, %v3357
        %v3359 = vpop.f32.mrb[0].mxu0
        %v3360 = vadd.f32 %v3309, %v3359
        %v3361 = vpop.f32.mrb[0].mxu0
        %v3362 = vadd.f32 %v3311, %v3361
        %3363 = vmatprep.mubr.bf16.mxu0 0
        %3364 = vmatmul.mubr.bf16.gmra.mrb[0].mxu0 %v3263
        %v3365 = vpop.f32.mrb[0].mxu0
        %v3366 = vadd.f32 %v3315, %v3365
        %v3367 = vpop.f32.mrb[0].mxu0
        %v3368 = vadd.f32 %v3317, %v3367
        %v3369 = vpop.f32.mrb[0].mxu0
        %v3370 = vpop.f32.mrb[0].mxu0
        %3371 = vdwg.mxu0
        %v3372 = vadd.f32 %v2942, %v3356
        %v3373 = vadd.f32 %v2943, %v3358
        %v3374 = vadd.f32 %v2944, %v3360
        %v3375 = vadd.f32 %v2945, %v3362
        %v3376 = vadd.f32 %v2946, %v3366
        %v3377 = vadd.f32 %v2947, %v3368
        %s3378 = scalar_lea.vmem %s4, 144
        %v3379 = vld [vmem:[%s3378] sm:$0xff]
        %v3380 = vld [vmem:[%s3378 + $0x8] sm:$0xf]
        %v3381 = vld [vmem:[%s3378 + $0xc] sm:$0xff]
        %v3382 = vld [vmem:[%s3378 + $0x14] sm:$0xf]
        %v3383 = vld [vmem:[%s3378 + $0x18] sm:$0xff]
        %v3384 = vld [vmem:[%s3378 + $0x20] sm:$0xf]
        %v3391 = vunpack.c.l.b16 %v3379
        %v3392 = vunpack.c.h.b16 %v3379
        %v3393 = vunpack.c.l.b16 %v3380
        %v3394 = vunpack.c.l.b16 %v3381
        %v3395 = vunpack.c.h.b16 %v3381
        %v3396 = vunpack.c.l.b16 %v3382
        %v3397 = vunpack.c.l.b16 %v3383
        %v3398 = vunpack.c.h.b16 %v3383
        %v3399 = vunpack.c.l.b16 %v3384
        %v3400 = vpack.c.b16 %v3394, %v3391
        %v3401 = vpack.c.b16 %v3395, %v3392
        %v3402 = vpack.c.b16 %v3396, %v3393
        %v3403 = vpack.c.b16 %v3397, %v3397
        %v3404 = vpack.c.b16 %v3398, %v3398
        %v3405 = vpack.c.b16 %v3399, %v3399
        %3412 = vmatprep.subr.bf16.mxu0 %v1546
        %3413 = vmatpush1.bf16.msra.mxu0 %v1545
        %3414 = vmatprep.subr.bf16.mxu0 %v1548
        %3415 = vmatpush1.bf16.msra.mxu0 %v1547
        %3416 = vmatprep.subr.bf16.mxu0 %v1550
        %3417 = vmatpush1.bf16.msra.mxu0 %v1549
        %3418 = vmatprep.subr.bf16.mxu0 %v1552
        %3419 = vmatpush1.bf16.msra.mxu0 %v1551
        %3420 = vmatprep.subr.bf16.mxu0 %v1554
        %3421 = vmatpush1.bf16.msra.mxu0 %v1553
        %3422 = vmatprep.subr.bf16.mxu0 %v1556
        %3423 = vmatpush1.bf16.msra.mxu0 %v1555
        %3424 = vmatprep.subr.bf16.mxu0 %v1558
        %3425 = vmatpush1.bf16.msra.mxu0 %v1557
        %3426 = vmatprep.subr.bf16.mxu0 %v1560
        %3427 = vmatpush1.bf16.msra.mxu0 %v1559
        %3428 = vmatprep.subr.bf16.mxu0 %v1562
        %3429 = vmatpush1.bf16.msra.mxu0 %v1561
        %3430 = vmatprep.subr.bf16.mxu0 %v1564
        %3431 = vmatpush1.bf16.msra.mxu0 %v1563
        %3432 = vmatprep.subr.bf16.mxu0 %v1566
        %3433 = vmatpush1.bf16.msra.mxu0 %v1565
        %3434 = vmatprep.subr.bf16.mxu0 %v1568
        %3435 = vmatpush1.bf16.msra.mxu0 %v1567
        %3436 = vmatprep.subr.bf16.mxu0 %v1570
        %3437 = vmatpush1.bf16.msra.mxu0 %v1569
        %3438 = vmatprep.subr.bf16.mxu0 %v1572
        %3439 = vmatpush1.bf16.msra.mxu0 %v1571
        %3440 = vmatprep.subr.bf16.mxu0 %v1574
        %3441 = vmatpush1.bf16.msra.mxu0 %v1573
        %3442 = vmatprep.subr.bf16.mxu0 %v1576
        %3443 = vmatpush1.bf16.msra.mxu0 %v1575
        %3444 = vmatprep.mubr.bf16.mxu0 %v3401
        %3445 = vmatmul.mubr.bf16.gmra.mrb[0].mxu0 %v3400
        %v3446 = vpop.f32.mrb[0].mxu0
        %v3447 = vadd.f32 0.0, %v3446
        %v3448 = vpop.f32.mrb[0].mxu0
        %v3449 = vadd.f32 0.0, %v3448
        %v3450 = vpop.f32.mrb[0].mxu0
        %v3451 = vadd.f32 0.0, %v3450
        %v3452 = vpop.f32.mrb[0].mxu0
        %v3453 = vadd.f32 0.0, %v3452
        %3454 = vmatprep.mubr.bf16.mxu0 %v3404
        %3455 = vmatmul.mubr.bf16.gmra.mrb[0].mxu0 %v3403
        %v3456 = vpop.f32.mrb[0].mxu0
        %v3457 = vadd.f32 0.0, %v3456
        %v3458 = vpop.f32.mrb[0].mxu0
        %v3459 = vadd.f32 0.0, %v3458
        %v3460 = vpop.f32.mrb[0].mxu0
        %v3461 = vpop.f32.mrb[0].mxu0
        %3462 = vdwg.mxu0
        %3463 = vmatprep.subr.bf16.mxu0 %v1578
        %3464 = vmatpush1.bf16.msra.mxu0 %v1577
        %3465 = vmatprep.subr.bf16.mxu0 %v1580
        %3466 = vmatpush1.bf16.msra.mxu0 %v1579
        %3467 = vmatprep.subr.bf16.mxu0 %v1582
        %3468 = vmatpush1.bf16.msra.mxu0 %v1581
        %3469 = vmatprep.subr.bf16.mxu0 %v1584
        %3470 = vmatpush1.bf16.msra.mxu0 %v1583
        %3471 = vmatprep.subr.bf16.mxu0 %v1586
        %3472 = vmatpush1.bf16.msra.mxu0 %v1585
        %3473 = vmatprep.subr.bf16.mxu0 %v1588
        %3474 = vmatpush1.bf16.msra.mxu0 %v1587
        %3475 = vmatprep.subr.bf16.mxu0 %v1590
        %3476 = vmatpush1.bf16.msra.mxu0 %v1589
        %3477 = vmatprep.subr.bf16.mxu0 %v1592
        %3478 = vmatpush1.bf16.msra.mxu0 %v1591
        %3479 = vmatprep.subr.bf16.mxu0 0
        %3480 = vmatpush1.bf16.msra.mxu0 0
        %3481 = vmatprep.subr.bf16.mxu0 0
        %3482 = vmatpush1.bf16.msra.mxu0 0
        %3483 = vmatprep.subr.bf16.mxu0 0
        %3484 = vmatpush1.bf16.msra.mxu0 0
        %3485 = vmatprep.subr.bf16.mxu0 0
        %3486 = vmatpush1.bf16.msra.mxu0 0
        %3487 = vmatprep.subr.bf16.mxu0 0
        %3488 = vmatpush1.bf16.msra.mxu0 0
        %3489 = vmatprep.subr.bf16.mxu0 0
        %3490 = vmatpush1.bf16.msra.mxu0 0
        %3491 = vmatprep.subr.bf16.mxu0 0
        %3492 = vmatpush1.bf16.msra.mxu0 0
        %3493 = vmatprep.subr.bf16.mxu0 0
        %3494 = vmatpush1.bf16.msra.mxu0 0
        %3495 = vmatprep.mubr.bf16.mxu0 0
        %3496 = vmatmul.mubr.bf16.gmra.mrb[0].mxu0 %v3402
        %v3497 = vpop.f32.mrb[0].mxu0
        %v3498 = vadd.f32 %v3447, %v3497
        %v3499 = vpop.f32.mrb[0].mxu0
        %v3500 = vadd.f32 %v3449, %v3499
        %v3501 = vpop.f32.mrb[0].mxu0
        %v3502 = vadd.f32 %v3451, %v3501
        %v3503 = vpop.f32.mrb[0].mxu0
        %v3504 = vadd.f32 %v3453, %v3503
        %3505 = vmatprep.mubr.bf16.mxu0 0
        %3506 = vmatmul.mubr.bf16.gmra.mrb[0].mxu0 %v3405
        %v3507 = vpop.f32.mrb[0].mxu0
        %v3508 = vadd.f32 %v3457, %v3507
        %v3509 = vpop.f32.mrb[0].mxu0
        %v3510 = vadd.f32 %v3459, %v3509
        %v3511 = vpop.f32.mrb[0].mxu0
        %v3512 = vpop.f32.mrb[0].mxu0
        %3513 = vdwg.mxu0
        %v3514 = vadd.f32 %v3372, %v3498
        %v3515 = vadd.f32 %v3373, %v3500
        %v3516 = vadd.f32 %v3374, %v3502
        %v3517 = vadd.f32 %v3375, %v3504
        %v3518 = vadd.f32 %v3376, %v3508
        %v3519 = vadd.f32 %v3377, %v3510
        %s3520 = scalar_lea.vmem %s4, 180
        %v3521 = vld [vmem:[%s3520] sm:$0xff]
        %v3522 = vld [vmem:[%s3520 + $0x8] sm:$0xf]
        %v3523 = vld [vmem:[%s3520 + $0xc] sm:$0xff]
        %v3524 = vld [vmem:[%s3520 + $0x14] sm:$0xf]
        %v3525 = vld [vmem:[%s3520 + $0x18] sm:$0xff]
        %v3526 = vld [vmem:[%s3520 + $0x20] sm:$0xf]
        %3527 = vrot.lane.b32.xlu0 %v1545, 127
        %v3528 = vpop.permute.xlu0 %3527
        %3529 = vrot.lane.b32.xlu0 %v1546, 127
        %v3530 = vpop.permute.xlu0 %3529
        %3531 = vrot.lane.b32.xlu0 %v1547, 127
        %v3532 = vpop.permute.xlu0 %3531
        %3533 = vrot.lane.b32.xlu0 %v1548, 127
        %v3534 = vpop.permute.xlu0 %3533
        %3535 = vrot.lane.b32.xlu0 %v1549, 127
        %v3536 = vpop.permute.xlu0 %3535
        %3537 = vrot.lane.b32.xlu0 %v1550, 127
        %v3538 = vpop.permute.xlu0 %3537
        %3539 = vrot.lane.b32.xlu0 %v1551, 127
        %v3540 = vpop.permute.xlu0 %3539
        %3541 = vrot.lane.b32.xlu0 %v1552, 127
        %v3542 = vpop.permute.xlu0 %3541
        %3543 = vrot.lane.b32.xlu0 %v1553, 127
        %v3544 = vpop.permute.xlu0 %3543
        %3545 = vrot.lane.b32.xlu0 %v1554, 127
        %v3546 = vpop.permute.xlu0 %3545
        %3547 = vrot.lane.b32.xlu0 %v1555, 127
        %v3548 = vpop.permute.xlu0 %3547
        %3549 = vrot.lane.b32.xlu0 %v1556, 127
        %v3550 = vpop.permute.xlu0 %3549
        %3551 = vrot.lane.b32.xlu0 %v1557, 127
        %v3552 = vpop.permute.xlu0 %3551
        %3553 = vrot.lane.b32.xlu0 %v1558, 127
        %v3554 = vpop.permute.xlu0 %3553
        %3555 = vrot.lane.b32.xlu0 %v1559, 127
        %v3556 = vpop.permute.xlu0 %3555
        %3557 = vrot.lane.b32.xlu0 %v1560, 127
        %v3558 = vpop.permute.xlu0 %3557
        %3559 = vrot.lane.b32.xlu0 %v1561, 127
        %v3560 = vpop.permute.xlu0 %3559
        %3561 = vrot.lane.b32.xlu0 %v1562, 127
        %v3562 = vpop.permute.xlu0 %3561
        %3563 = vrot.lane.b32.xlu0 %v1563, 127
        %v3564 = vpop.permute.xlu0 %3563
        %3565 = vrot.lane.b32.xlu0 %v1564, 127
        %v3566 = vpop.permute.xlu0 %3565
        %3567 = vrot.lane.b32.xlu0 %v1565, 127
        %v3568 = vpop.permute.xlu0 %3567
        %3569 = vrot.lane.b32.xlu0 %v1566, 127
        %v3570 = vpop.permute.xlu0 %3569
        %3571 = vrot.lane.b32.xlu0 %v1567, 127
        %v3572 = vpop.permute.xlu0 %3571
        %3573 = vrot.lane.b32.xlu0 %v1568, 127
        %v3574 = vpop.permute.xlu0 %3573
        %3575 = vrot.lane.b32.xlu0 %v1569, 127
        %v3576 = vpop.permute.xlu0 %3575
        %3577 = vrot.lane.b32.xlu0 %v1570, 127
        %v3578 = vpop.permute.xlu0 %3577
        %3579 = vrot.lane.b32.xlu0 %v1571, 127
        %v3580 = vpop.permute.xlu0 %3579
        %3581 = vrot.lane.b32.xlu0 %v1572, 127
        %v3582 = vpop.permute.xlu0 %3581
        %3583 = vrot.lane.b32.xlu0 %v1573, 127
        %v3584 = vpop.permute.xlu0 %3583
        %3585 = vrot.lane.b32.xlu0 %v1574, 127
        %v3586 = vpop.permute.xlu0 %3585
        %3587 = vrot.lane.b32.xlu0 %v1575, 127
        %v3588 = vpop.permute.xlu0 %3587
        %3589 = vrot.lane.b32.xlu0 %v1576, 127
        %v3590 = vpop.permute.xlu0 %3589
        %3591 = vrot.lane.b32.xlu0 %v1577, 127
        %v3592 = vpop.permute.xlu0 %3591
        %3593 = vrot.lane.b32.xlu0 %v1578, 127
        %v3594 = vpop.permute.xlu0 %3593
        %3595 = vrot.lane.b32.xlu0 %v1579, 127
        %v3596 = vpop.permute.xlu0 %3595
        %3597 = vrot.lane.b32.xlu0 %v1580, 127
        %v3598 = vpop.permute.xlu0 %3597
        %3599 = vrot.lane.b32.xlu0 %v1581, 127
        %v3600 = vpop.permute.xlu0 %3599
        %3601 = vrot.lane.b32.xlu0 %v1582, 127
        %v3602 = vpop.permute.xlu0 %3601
        %3603 = vrot.lane.b32.xlu0 %v1583, 127
        %v3604 = vpop.permute.xlu0 %3603
        %3605 = vrot.lane.b32.xlu0 %v1584, 127
        %v3606 = vpop.permute.xlu0 %3605
        %3607 = vrot.lane.b32.xlu0 %v1585, 127
        %v3608 = vpop.permute.xlu0 %3607
        %3609 = vrot.lane.b32.xlu0 %v1586, 127
        %v3610 = vpop.permute.xlu0 %3609
        %3611 = vrot.lane.b32.xlu0 %v1587, 127
        %v3612 = vpop.permute.xlu0 %3611
        %3613 = vrot.lane.b32.xlu0 %v1588, 127
        %v3614 = vpop.permute.xlu0 %3613
        %3615 = vrot.lane.b32.xlu0 %v1589, 127
        %v3616 = vpop.permute.xlu0 %3615
        %3617 = vrot.lane.b32.xlu0 %v1590, 127
        %v3618 = vpop.permute.xlu0 %3617
        %3619 = vrot.lane.b32.xlu0 %v1591, 127
        %v3620 = vpop.permute.xlu0 %3619
        %3621 = vrot.lane.b32.xlu0 %v1592, 127
        %v3622 = vpop.permute.xlu0 %3621
        %v3623 = vsel %vm576, %v3528, %v3530
        %v3624 = vsel %vm576, %v3532, %v3534
        %v3625 = vsel %vm576, %v3536, %v3538
        %v3626 = vsel %vm576, %v3540, %v3542
        %v3627 = vsel %vm576, %v3544, %v3546
        %v3628 = vsel %vm576, %v3548, %v3550
        %v3629 = vsel %vm576, %v3552, %v3554
        %v3630 = vsel %vm576, %v3556, %v3558
        %v3631 = vsel %vm576, %v3560, %v3562
        %v3632 = vsel %vm576, %v3564, %v3566
        %v3633 = vsel %vm576, %v3568, %v3570
        %v3634 = vsel %vm576, %v3572, %v3574
        %v3635 = vsel %vm576, %v3576, %v3578
        %v3636 = vsel %vm576, %v3580, %v3582
        %v3637 = vsel %vm576, %v3584, %v3586
        %v3638 = vsel %vm576, %v3588, %v3590
        %v3639 = vsel %vm576, %v3592, %v3594
        %v3640 = vsel %vm576, %v3596, %v3598
        %v3641 = vsel %vm576, %v3600, %v3602
        %v3642 = vsel %vm576, %v3604, %v3606
        %v3643 = vsel %vm576, %v3608, %v3610
        %v3644 = vsel %vm576, %v3612, %v3614
        %v3645 = vsel %vm576, %v3616, %v3618
        %v3646 = vsel %vm576, %v3620, %v3622
        %v3673 = vsel %vm579, %v3530, %v3528
        %v3677 = vsel %vm579, %v3534, %v3532
        %v3681 = vsel %vm579, %v3538, %v3536
        %v3685 = vsel %vm579, %v3542, %v3540
        %v3689 = vsel %vm579, %v3546, %v3544
        %v3693 = vsel %vm579, %v3550, %v3548
        %v3697 = vsel %vm579, %v3554, %v3552
        %v3701 = vsel %vm579, %v3558, %v3556
        %v3705 = vsel %vm579, %v3562, %v3560
        %v3709 = vsel %vm579, %v3566, %v3564
        %v3713 = vsel %vm579, %v3570, %v3568
        %v3717 = vsel %vm579, %v3574, %v3572
        %v3721 = vsel %vm579, %v3578, %v3576
        %v3725 = vsel %vm579, %v3582, %v3580
        %v3729 = vsel %vm579, %v3586, %v3584
        %v3733 = vsel %vm579, %v3590, %v3588
        %v3737 = vsel %vm579, %v3594, %v3592
        %v3741 = vsel %vm579, %v3598, %v3596
        %v3745 = vsel %vm579, %v3602, %v3600
        %v3749 = vsel %vm579, %v3606, %v3604
        %v3753 = vsel %vm579, %v3610, %v3608
        %v3757 = vsel %vm579, %v3614, %v3612
        %v3761 = vsel %vm579, %v3618, %v3616
        %v3765 = vsel %vm579, %v3622, %v3620
        %v3767 = vmul.bf16 %v3623, %v615
        %v3768 = vmul.bf16 %v3673, %v622
        %v3769 = vmul.bf16 %v3624, %v615
        %v3770 = vmul.bf16 %v3677, %v622
        %v3771 = vmul.bf16 %v3625, %v615
        %v3772 = vmul.bf16 %v3681, %v622
        %v3773 = vmul.bf16 %v3626, %v615
        %v3774 = vmul.bf16 %v3685, %v622
        %v3775 = vmul.bf16 %v3627, %v615
        %v3776 = vmul.bf16 %v3689, %v622
        %v3777 = vmul.bf16 %v3628, %v615
        %v3778 = vmul.bf16 %v3693, %v622
        %v3779 = vmul.bf16 %v3629, %v615
        %v3780 = vmul.bf16 %v3697, %v622
        %v3781 = vmul.bf16 %v3630, %v615
        %v3782 = vmul.bf16 %v3701, %v622
        %v3783 = vmul.bf16 %v3631, %v615
        %v3784 = vmul.bf16 %v3705, %v622
        %v3785 = vmul.bf16 %v3632, %v615
        %v3786 = vmul.bf16 %v3709, %v622
        %v3787 = vmul.bf16 %v3633, %v615
        %v3788 = vmul.bf16 %v3713, %v622
        %v3789 = vmul.bf16 %v3634, %v615
        %v3790 = vmul.bf16 %v3717, %v622
        %v3791 = vmul.bf16 %v3635, %v615
        %v3792 = vmul.bf16 %v3721, %v622
        %v3793 = vmul.bf16 %v3636, %v615
        %v3794 = vmul.bf16 %v3725, %v622
        %v3795 = vmul.bf16 %v3637, %v615
        %v3796 = vmul.bf16 %v3729, %v622
        %v3797 = vmul.bf16 %v3638, %v615
        %v3798 = vmul.bf16 %v3733, %v622
        %v3799 = vmul.bf16 %v3639, %v615
        %v3800 = vmul.bf16 %v3737, %v622
        %v3801 = vmul.bf16 %v3640, %v615
        %v3802 = vmul.bf16 %v3741, %v622
        %v3803 = vmul.bf16 %v3641, %v615
        %v3804 = vmul.bf16 %v3745, %v622
        %v3805 = vmul.bf16 %v3642, %v615
        %v3806 = vmul.bf16 %v3749, %v622
        %v3807 = vmul.bf16 %v3643, %v615
        %v3808 = vmul.bf16 %v3753, %v622
        %v3809 = vmul.bf16 %v3644, %v615
        %v3810 = vmul.bf16 %v3757, %v622
        %v3811 = vmul.bf16 %v3645, %v615
        %v3812 = vmul.bf16 %v3761, %v622
        %v3813 = vmul.bf16 %v3646, %v615
        %v3814 = vmul.bf16 %v3765, %v622
        %v3821 = vunpack.c.l.b16 %v3521
        %v3822 = vunpack.c.h.b16 %v3521
        %v3823 = vunpack.c.l.b16 %v3522
        %v3824 = vunpack.c.l.b16 %v3523
        %v3825 = vunpack.c.h.b16 %v3523
        %v3826 = vunpack.c.l.b16 %v3524
        %v3827 = vunpack.c.l.b16 %v3525
        %v3828 = vunpack.c.h.b16 %v3525
        %v3829 = vunpack.c.l.b16 %v3526
        %v3830 = vpack.c.b16 %v3824, %v3821
        %v3831 = vpack.c.b16 %v3825, %v3822
        %v3832 = vpack.c.b16 %v3826, %v3823
        %v3833 = vpack.c.b16 %v3827, %v3827
        %v3834 = vpack.c.b16 %v3828, %v3828
        %v3835 = vpack.c.b16 %v3829, %v3829
        %3842 = vmatprep.subr.bf16.mxu0 %v3768
        %3843 = vmatpush1.bf16.msra.mxu0 %v3767
        %3844 = vmatprep.subr.bf16.mxu0 %v3770
        %3845 = vmatpush1.bf16.msra.mxu0 %v3769
        %3846 = vmatprep.subr.bf16.mxu0 %v3772
        %3847 = vmatpush1.bf16.msra.mxu0 %v3771
        %3848 = vmatprep.subr.bf16.mxu0 %v3774
        %3849 = vmatpush1.bf16.msra.mxu0 %v3773
        %3850 = vmatprep.subr.bf16.mxu0 %v3776
        %3851 = vmatpush1.bf16.msra.mxu0 %v3775
        %3852 = vmatprep.subr.bf16.mxu0 %v3778
        %3853 = vmatpush1.bf16.msra.mxu0 %v3777
        %3854 = vmatprep.subr.bf16.mxu0 %v3780
        %3855 = vmatpush1.bf16.msra.mxu0 %v3779
        %3856 = vmatprep.subr.bf16.mxu0 %v3782
        %3857 = vmatpush1.bf16.msra.mxu0 %v3781
        %3858 = vmatprep.subr.bf16.mxu0 %v3784
        %3859 = vmatpush1.bf16.msra.mxu0 %v3783
        %3860 = vmatprep.subr.bf16.mxu0 %v3786
        %3861 = vmatpush1.bf16.msra.mxu0 %v3785
        %3862 = vmatprep.subr.bf16.mxu0 %v3788
        %3863 = vmatpush1.bf16.msra.mxu0 %v3787
        %3864 = vmatprep.subr.bf16.mxu0 %v3790
        %3865 = vmatpush1.bf16.msra.mxu0 %v3789
        %3866 = vmatprep.subr.bf16.mxu0 %v3792
        %3867 = vmatpush1.bf16.msra.mxu0 %v3791
        %3868 = vmatprep.subr.bf16.mxu0 %v3794
        %3869 = vmatpush1.bf16.msra.mxu0 %v3793
        %3870 = vmatprep.subr.bf16.mxu0 %v3796
        %3871 = vmatpush1.bf16.msra.mxu0 %v3795
        %3872 = vmatprep.subr.bf16.mxu0 %v3798
        %3873 = vmatpush1.bf16.msra.mxu0 %v3797
        %3874 = vmatprep.mubr.bf16.mxu0 %v3831
        %3875 = vmatmul.mubr.bf16.gmra.mrb[0].mxu0 %v3830
        %v3876 = vpop.f32.mrb[0].mxu0
        %v3877 = vadd.f32 0.0, %v3876
        %v3878 = vpop.f32.mrb[0].mxu0
        %v3879 = vadd.f32 0.0, %v3878
        %v3880 = vpop.f32.mrb[0].mxu0
        %v3881 = vadd.f32 0.0, %v3880
        %v3882 = vpop.f32.mrb[0].mxu0
        %v3883 = vadd.f32 0.0, %v3882
        %3884 = vmatprep.mubr.bf16.mxu0 %v3834
        %3885 = vmatmul.mubr.bf16.gmra.mrb[0].mxu0 %v3833
        %v3886 = vpop.f32.mrb[0].mxu0
        %v3887 = vadd.f32 0.0, %v3886
        %v3888 = vpop.f32.mrb[0].mxu0
        %v3889 = vadd.f32 0.0, %v3888
        %v3890 = vpop.f32.mrb[0].mxu0
        %v3891 = vpop.f32.mrb[0].mxu0
        %3892 = vdwg.mxu0
        %3893 = vmatprep.subr.bf16.mxu0 %v3800
        %3894 = vmatpush1.bf16.msra.mxu0 %v3799
        %3895 = vmatprep.subr.bf16.mxu0 %v3802
        %3896 = vmatpush1.bf16.msra.mxu0 %v3801
        %3897 = vmatprep.subr.bf16.mxu0 %v3804
        %3898 = vmatpush1.bf16.msra.mxu0 %v3803
        %3899 = vmatprep.subr.bf16.mxu0 %v3806
        %3900 = vmatpush1.bf16.msra.mxu0 %v3805
        %3901 = vmatprep.subr.bf16.mxu0 %v3808
        %3902 = vmatpush1.bf16.msra.mxu0 %v3807
        %3903 = vmatprep.subr.bf16.mxu0 %v3810
        %3904 = vmatpush1.bf16.msra.mxu0 %v3809
        %3905 = vmatprep.subr.bf16.mxu0 %v3812
        %3906 = vmatpush1.bf16.msra.mxu0 %v3811
        %3907 = vmatprep.subr.bf16.mxu0 %v3814
        %3908 = vmatpush1.bf16.msra.mxu0 %v3813
        %3909 = vmatprep.subr.bf16.mxu0 0
        %3910 = vmatpush1.bf16.msra.mxu0 0
        %3911 = vmatprep.subr.bf16.mxu0 0
        %3912 = vmatpush1.bf16.msra.mxu0 0
        %3913 = vmatprep.subr.bf16.mxu0 0
        %3914 = vmatpush1.bf16.msra.mxu0 0
        %3915 = vmatprep.subr.bf16.mxu0 0
        %3916 = vmatpush1.bf16.msra.mxu0 0
        %3917 = vmatprep.subr.bf16.mxu0 0
        %3918 = vmatpush1.bf16.msra.mxu0 0
        %3919 = vmatprep.subr.bf16.mxu0 0
        %3920 = vmatpush1.bf16.msra.mxu0 0
        %3921 = vmatprep.subr.bf16.mxu0 0
        %3922 = vmatpush1.bf16.msra.mxu0 0
        %3923 = vmatprep.subr.bf16.mxu0 0
        %3924 = vmatpush1.bf16.msra.mxu0 0
        %3925 = vmatprep.mubr.bf16.mxu0 0
        %3926 = vmatmul.mubr.bf16.gmra.mrb[0].mxu0 %v3832
        %v3927 = vpop.f32.mrb[0].mxu0
        %v3928 = vadd.f32 %v3877, %v3927
        %v3929 = vpop.f32.mrb[0].mxu0
        %v3930 = vadd.f32 %v3879, %v3929
        %v3931 = vpop.f32.mrb[0].mxu0
        %v3932 = vadd.f32 %v3881, %v3931
        %v3933 = vpop.f32.mrb[0].mxu0
        %v3934 = vadd.f32 %v3883, %v3933
        %3935 = vmatprep.mubr.bf16.mxu0 0
        %3936 = vmatmul.mubr.bf16.gmra.mrb[0].mxu0 %v3835
        %v3937 = vpop.f32.mrb[0].mxu0
        %v3938 = vadd.f32 %v3887, %v3937
        %v3939 = vpop.f32.mrb[0].mxu0
        %v3940 = vadd.f32 %v3889, %v3939
        %v3941 = vpop.f32.mrb[0].mxu0
        %v3942 = vpop.f32.mrb[0].mxu0
        %3943 = vdwg.mxu0
        %v3944 = vadd.f32 %v3514, %v3928
        %v3945 = vadd.f32 %v3515, %v3930
        %v3946 = vadd.f32 %v3516, %v3932
        %v3947 = vadd.f32 %v3517, %v3934
        %v3948 = vadd.f32 %v3518, %v3938
        %v3949 = vadd.f32 %v3519, %v3940
        %s3950 = scalar_lea.vmem %s4, 216
        %v3951 = vld [vmem:[%s3950] sm:$0xff]
        %v3952 = vld [vmem:[%s3950 + $0x8] sm:$0xf]
        %v3953 = vld [vmem:[%s3950 + $0xc] sm:$0xff]
        %v3954 = vld [vmem:[%s3950 + $0x14] sm:$0xf]
        %v3955 = vld [vmem:[%s3950 + $0x18] sm:$0xff]
        %v3956 = vld [vmem:[%s3950 + $0x20] sm:$0xf]
        %3957 = vrot.lane.b32.xlu0 %v1545, 113
        %v3958 = vpop.permute.xlu0 %3957
        %3959 = vrot.lane.b32.xlu0 %v1546, 113
        %v3960 = vpop.permute.xlu0 %3959
        %3961 = vrot.lane.b32.xlu0 %v1547, 113
        %v3962 = vpop.permute.xlu0 %3961
        %3963 = vrot.lane.b32.xlu0 %v1548, 113
        %v3964 = vpop.permute.xlu0 %3963
        %3965 = vrot.lane.b32.xlu0 %v1549, 113
        %v3966 = vpop.permute.xlu0 %3965
        %3967 = vrot.lane.b32.xlu0 %v1550, 113
        %v3968 = vpop.permute.xlu0 %3967
        %3969 = vrot.lane.b32.xlu0 %v1551, 113
        %v3970 = vpop.permute.xlu0 %3969
        %3971 = vrot.lane.b32.xlu0 %v1552, 113
        %v3972 = vpop.permute.xlu0 %3971
        %3973 = vrot.lane.b32.xlu0 %v1553, 113
        %v3974 = vpop.permute.xlu0 %3973
        %3975 = vrot.lane.b32.xlu0 %v1554, 113
        %v3976 = vpop.permute.xlu0 %3975
        %3977 = vrot.lane.b32.xlu0 %v1555, 113
        %v3978 = vpop.permute.xlu0 %3977
        %3979 = vrot.lane.b32.xlu0 %v1556, 113
        %v3980 = vpop.permute.xlu0 %3979
        %3981 = vrot.lane.b32.xlu0 %v1557, 113
        %v3982 = vpop.permute.xlu0 %3981
        %3983 = vrot.lane.b32.xlu0 %v1558, 113
        %v3984 = vpop.permute.xlu0 %3983
        %3985 = vrot.lane.b32.xlu0 %v1559, 113
        %v3986 = vpop.permute.xlu0 %3985
        %3987 = vrot.lane.b32.xlu0 %v1560, 113
        %v3988 = vpop.permute.xlu0 %3987
        %3989 = vrot.lane.b32.xlu0 %v1561, 113
        %v3990 = vpop.permute.xlu0 %3989
        %3991 = vrot.lane.b32.xlu0 %v1562, 113
        %v3992 = vpop.permute.xlu0 %3991
        %3993 = vrot.lane.b32.xlu0 %v1563, 113
        %v3994 = vpop.permute.xlu0 %3993
        %3995 = vrot.lane.b32.xlu0 %v1564, 113
        %v3996 = vpop.permute.xlu0 %3995
        %3997 = vrot.lane.b32.xlu0 %v1565, 113
        %v3998 = vpop.permute.xlu0 %3997
        %3999 = vrot.lane.b32.xlu0 %v1566, 113
        %v4000 = vpop.permute.xlu0 %3999
        %4001 = vrot.lane.b32.xlu0 %v1567, 113
        %v4002 = vpop.permute.xlu0 %4001
        %4003 = vrot.lane.b32.xlu0 %v1568, 113
        %v4004 = vpop.permute.xlu0 %4003
        %4005 = vrot.lane.b32.xlu0 %v1569, 113
        %v4006 = vpop.permute.xlu0 %4005
        %4007 = vrot.lane.b32.xlu0 %v1570, 113
        %v4008 = vpop.permute.xlu0 %4007
        %4009 = vrot.lane.b32.xlu0 %v1571, 113
        %v4010 = vpop.permute.xlu0 %4009
        %4011 = vrot.lane.b32.xlu0 %v1572, 113
        %v4012 = vpop.permute.xlu0 %4011
        %4013 = vrot.lane.b32.xlu0 %v1573, 113
        %v4014 = vpop.permute.xlu0 %4013
        %4015 = vrot.lane.b32.xlu0 %v1574, 113
        %v4016 = vpop.permute.xlu0 %4015
        %4017 = vrot.lane.b32.xlu0 %v1575, 113
        %v4018 = vpop.permute.xlu0 %4017
        %4019 = vrot.lane.b32.xlu0 %v1576, 113
        %v4020 = vpop.permute.xlu0 %4019
        %4021 = vrot.lane.b32.xlu0 %v1577, 113
        %v4022 = vpop.permute.xlu0 %4021
        %4023 = vrot.lane.b32.xlu0 %v1578, 113
        %v4024 = vpop.permute.xlu0 %4023
        %4025 = vrot.lane.b32.xlu0 %v1579, 113
        %v4026 = vpop.permute.xlu0 %4025
        %4027 = vrot.lane.b32.xlu0 %v1580, 113
        %v4028 = vpop.permute.xlu0 %4027
        %4029 = vrot.lane.b32.xlu0 %v1581, 113
        %v4030 = vpop.permute.xlu0 %4029
        %4031 = vrot.lane.b32.xlu0 %v1582, 113
        %v4032 = vpop.permute.xlu0 %4031
        %4033 = vrot.lane.b32.xlu0 %v1583, 113
        %v4034 = vpop.permute.xlu0 %4033
        %4035 = vrot.lane.b32.xlu0 %v1584, 113
        %v4036 = vpop.permute.xlu0 %4035
        %4037 = vrot.lane.b32.xlu0 %v1585, 113
        %v4038 = vpop.permute.xlu0 %4037
        %4039 = vrot.lane.b32.xlu0 %v1586, 113
        %v4040 = vpop.permute.xlu0 %4039
        %4041 = vrot.lane.b32.xlu0 %v1587, 113
        %v4042 = vpop.permute.xlu0 %4041
        %4043 = vrot.lane.b32.xlu0 %v1588, 113
        %v4044 = vpop.permute.xlu0 %4043
        %4045 = vrot.lane.b32.xlu0 %v1589, 113
        %v4046 = vpop.permute.xlu0 %4045
        %4047 = vrot.lane.b32.xlu0 %v1590, 113
        %v4048 = vpop.permute.xlu0 %4047
        %4049 = vrot.lane.b32.xlu0 %v1591, 113
        %v4050 = vpop.permute.xlu0 %4049
        %4051 = vrot.lane.b32.xlu0 %v1592, 113
        %v4052 = vpop.permute.xlu0 %4051
        %v4053 = vsel %vm629, %v3958, %v3960
        %v4054 = vsel %vm629, %v3962, %v3964
        %v4055 = vsel %vm629, %v3966, %v3968
        %v4056 = vsel %vm629, %v3970, %v3972
        %v4057 = vsel %vm629, %v3974, %v3976
        %v4058 = vsel %vm629, %v3978, %v3980
        %v4059 = vsel %vm629, %v3982, %v3984
        %v4060 = vsel %vm629, %v3986, %v3988
        %v4061 = vsel %vm629, %v3990, %v3992
        %v4062 = vsel %vm629, %v3994, %v3996
        %v4063 = vsel %vm629, %v3998, %v4000
        %v4064 = vsel %vm629, %v4002, %v4004
        %v4065 = vsel %vm629, %v4006, %v4008
        %v4066 = vsel %vm629, %v4010, %v4012
        %v4067 = vsel %vm629, %v4014, %v4016
        %v4068 = vsel %vm629, %v4018, %v4020
        %v4069 = vsel %vm629, %v4022, %v4024
        %v4070 = vsel %vm629, %v4026, %v4028
        %v4071 = vsel %vm629, %v4030, %v4032
        %v4072 = vsel %vm629, %v4034, %v4036
        %v4073 = vsel %vm629, %v4038, %v4040
        %v4074 = vsel %vm629, %v4042, %v4044
        %v4075 = vsel %vm629, %v4046, %v4048
        %v4076 = vsel %vm629, %v4050, %v4052
        %v4103 = vsel %vm632, %v3960, %v3958
        %v4107 = vsel %vm632, %v3964, %v3962
        %v4111 = vsel %vm632, %v3968, %v3966
        %v4115 = vsel %vm632, %v3972, %v3970
        %v4119 = vsel %vm632, %v3976, %v3974
        %v4123 = vsel %vm632, %v3980, %v3978
        %v4127 = vsel %vm632, %v3984, %v3982
        %v4131 = vsel %vm632, %v3988, %v3986
        %v4135 = vsel %vm632, %v3992, %v3990
        %v4139 = vsel %vm632, %v3996, %v3994
        %v4143 = vsel %vm632, %v4000, %v3998
        %v4147 = vsel %vm632, %v4004, %v4002
        %v4151 = vsel %vm632, %v4008, %v4006
        %v4155 = vsel %vm632, %v4012, %v4010
        %v4159 = vsel %vm632, %v4016, %v4014
        %v4163 = vsel %vm632, %v4020, %v4018
        %v4167 = vsel %vm632, %v4024, %v4022
        %v4171 = vsel %vm632, %v4028, %v4026
        %v4175 = vsel %vm632, %v4032, %v4030
        %v4179 = vsel %vm632, %v4036, %v4034
        %v4183 = vsel %vm632, %v4040, %v4038
        %v4187 = vsel %vm632, %v4044, %v4042
        %v4191 = vsel %vm632, %v4048, %v4046
        %v4195 = vsel %vm632, %v4052, %v4050
        %v4197 = vmul.bf16 %v4053, %v668
        %v4198 = vmul.bf16 %v4103, %v675
        %v4199 = vmul.bf16 %v4054, %v668
        %v4200 = vmul.bf16 %v4107, %v675
        %v4201 = vmul.bf16 %v4055, %v668
        %v4202 = vmul.bf16 %v4111, %v675
        %v4203 = vmul.bf16 %v4056, %v668
        %v4204 = vmul.bf16 %v4115, %v675
        %v4205 = vmul.bf16 %v4057, %v668
        %v4206 = vmul.bf16 %v4119, %v675
        %v4207 = vmul.bf16 %v4058, %v668
        %v4208 = vmul.bf16 %v4123, %v675
        %v4209 = vmul.bf16 %v4059, %v668
        %v4210 = vmul.bf16 %v4127, %v675
        %v4211 = vmul.bf16 %v4060, %v668
        %v4212 = vmul.bf16 %v4131, %v675
        %v4213 = vmul.bf16 %v4061, %v668
        %v4214 = vmul.bf16 %v4135, %v675
        %v4215 = vmul.bf16 %v4062, %v668
        %v4216 = vmul.bf16 %v4139, %v675
        %v4217 = vmul.bf16 %v4063, %v668
        %v4218 = vmul.bf16 %v4143, %v675
        %v4219 = vmul.bf16 %v4064, %v668
        %v4220 = vmul.bf16 %v4147, %v675
        %v4221 = vmul.bf16 %v4065, %v668
        %v4222 = vmul.bf16 %v4151, %v675
        %v4223 = vmul.bf16 %v4066, %v668
        %v4224 = vmul.bf16 %v4155, %v675
        %v4225 = vmul.bf16 %v4067, %v668
        %v4226 = vmul.bf16 %v4159, %v675
        %v4227 = vmul.bf16 %v4068, %v668
        %v4228 = vmul.bf16 %v4163, %v675
        %v4229 = vmul.bf16 %v4069, %v668
        %v4230 = vmul.bf16 %v4167, %v675
        %v4231 = vmul.bf16 %v4070, %v668
        %v4232 = vmul.bf16 %v4171, %v675
        %v4233 = vmul.bf16 %v4071, %v668
        %v4234 = vmul.bf16 %v4175, %v675
        %v4235 = vmul.bf16 %v4072, %v668
        %v4236 = vmul.bf16 %v4179, %v675
        %v4237 = vmul.bf16 %v4073, %v668
        %v4238 = vmul.bf16 %v4183, %v675
        %v4239 = vmul.bf16 %v4074, %v668
        %v4240 = vmul.bf16 %v4187, %v675
        %v4241 = vmul.bf16 %v4075, %v668
        %v4242 = vmul.bf16 %v4191, %v675
        %v4243 = vmul.bf16 %v4076, %v668
        %v4244 = vmul.bf16 %v4195, %v675
        %v4251 = vunpack.c.l.b16 %v3951
        %v4252 = vunpack.c.h.b16 %v3951
        %v4253 = vunpack.c.l.b16 %v3952
        %v4254 = vunpack.c.l.b16 %v3953
        %v4255 = vunpack.c.h.b16 %v3953
        %v4256 = vunpack.c.l.b16 %v3954
        %v4257 = vunpack.c.l.b16 %v3955
        %v4258 = vunpack.c.h.b16 %v3955
        %v4259 = vunpack.c.l.b16 %v3956
        %v4260 = vpack.c.b16 %v4254, %v4251
        %v4261 = vpack.c.b16 %v4255, %v4252
        %v4262 = vpack.c.b16 %v4256, %v4253
        %v4263 = vpack.c.b16 %v4257, %v4257
        %v4264 = vpack.c.b16 %v4258, %v4258
        %v4265 = vpack.c.b16 %v4259, %v4259
        %4272 = vmatprep.subr.bf16.mxu0 %v4198
        %4273 = vmatpush1.bf16.msra.mxu0 %v4197
        %4274 = vmatprep.subr.bf16.mxu0 %v4200
        %4275 = vmatpush1.bf16.msra.mxu0 %v4199
        %4276 = vmatprep.subr.bf16.mxu0 %v4202
        %4277 = vmatpush1.bf16.msra.mxu0 %v4201
        %4278 = vmatprep.subr.bf16.mxu0 %v4204
        %4279 = vmatpush1.bf16.msra.mxu0 %v4203
        %4280 = vmatprep.subr.bf16.mxu0 %v4206
        %4281 = vmatpush1.bf16.msra.mxu0 %v4205
        %4282 = vmatprep.subr.bf16.mxu0 %v4208
        %4283 = vmatpush1.bf16.msra.mxu0 %v4207
        %4284 = vmatprep.subr.bf16.mxu0 %v4210
        %4285 = vmatpush1.bf16.msra.mxu0 %v4209
        %4286 = vmatprep.subr.bf16.mxu0 %v4212
        %4287 = vmatpush1.bf16.msra.mxu0 %v4211
        %4288 = vmatprep.subr.bf16.mxu0 %v4214
        %4289 = vmatpush1.bf16.msra.mxu0 %v4213
        %4290 = vmatprep.subr.bf16.mxu0 %v4216
        %4291 = vmatpush1.bf16.msra.mxu0 %v4215
        %4292 = vmatprep.subr.bf16.mxu0 %v4218
        %4293 = vmatpush1.bf16.msra.mxu0 %v4217
        %4294 = vmatprep.subr.bf16.mxu0 %v4220
        %4295 = vmatpush1.bf16.msra.mxu0 %v4219
        %4296 = vmatprep.subr.bf16.mxu0 %v4222
        %4297 = vmatpush1.bf16.msra.mxu0 %v4221
        %4298 = vmatprep.subr.bf16.mxu0 %v4224
        %4299 = vmatpush1.bf16.msra.mxu0 %v4223
        %4300 = vmatprep.subr.bf16.mxu0 %v4226
        %4301 = vmatpush1.bf16.msra.mxu0 %v4225
        %4302 = vmatprep.subr.bf16.mxu0 %v4228
        %4303 = vmatpush1.bf16.msra.mxu0 %v4227
        %4304 = vmatprep.mubr.bf16.mxu0 %v4261
        %4305 = vmatmul.mubr.bf16.gmra.mrb[0].mxu0 %v4260
        %v4306 = vpop.f32.mrb[0].mxu0
        %v4307 = vadd.f32 0.0, %v4306
        %v4308 = vpop.f32.mrb[0].mxu0
        %v4309 = vadd.f32 0.0, %v4308
        %v4310 = vpop.f32.mrb[0].mxu0
        %v4311 = vadd.f32 0.0, %v4310
        %v4312 = vpop.f32.mrb[0].mxu0
        %v4313 = vadd.f32 0.0, %v4312
        %4314 = vmatprep.mubr.bf16.mxu0 %v4264
        %4315 = vmatmul.mubr.bf16.gmra.mrb[0].mxu0 %v4263
        %v4316 = vpop.f32.mrb[0].mxu0
        %v4317 = vadd.f32 0.0, %v4316
        %v4318 = vpop.f32.mrb[0].mxu0
        %v4319 = vadd.f32 0.0, %v4318
        %v4320 = vpop.f32.mrb[0].mxu0
        %v4321 = vpop.f32.mrb[0].mxu0
        %4322 = vdwg.mxu0
        %4323 = vmatprep.subr.bf16.mxu0 %v4230
        %4324 = vmatpush1.bf16.msra.mxu0 %v4229
        %4325 = vmatprep.subr.bf16.mxu0 %v4232
        %4326 = vmatpush1.bf16.msra.mxu0 %v4231
        %4327 = vmatprep.subr.bf16.mxu0 %v4234
        %4328 = vmatpush1.bf16.msra.mxu0 %v4233
        %4329 = vmatprep.subr.bf16.mxu0 %v4236
        %4330 = vmatpush1.bf16.msra.mxu0 %v4235
        %4331 = vmatprep.subr.bf16.mxu0 %v4238
        %4332 = vmatpush1.bf16.msra.mxu0 %v4237
        %4333 = vmatprep.subr.bf16.mxu0 %v4240
        %4334 = vmatpush1.bf16.msra.mxu0 %v4239
        %4335 = vmatprep.subr.bf16.mxu0 %v4242
        %4336 = vmatpush1.bf16.msra.mxu0 %v4241
        %4337 = vmatprep.subr.bf16.mxu0 %v4244
        %4338 = vmatpush1.bf16.msra.mxu0 %v4243
        %4339 = vmatprep.subr.bf16.mxu0 0
        %4340 = vmatpush1.bf16.msra.mxu0 0
        %4341 = vmatprep.subr.bf16.mxu0 0
        %4342 = vmatpush1.bf16.msra.mxu0 0
        %4343 = vmatprep.subr.bf16.mxu0 0
        %4344 = vmatpush1.bf16.msra.mxu0 0
        %4345 = vmatprep.subr.bf16.mxu0 0
        %4346 = vmatpush1.bf16.msra.mxu0 0
        %4347 = vmatprep.subr.bf16.mxu0 0
        %4348 = vmatpush1.bf16.msra.mxu0 0
        %4349 = vmatprep.subr.bf16.mxu0 0
        %4350 = vmatpush1.bf16.msra.mxu0 0
        %4351 = vmatprep.subr.bf16.mxu0 0
        %4352 = vmatpush1.bf16.msra.mxu0 0
        %4353 = vmatprep.subr.bf16.mxu0 0
        %4354 = vmatpush1.bf16.msra.mxu0 0
        %4355 = vmatprep.mubr.bf16.mxu0 0
        %4356 = vmatmul.mubr.bf16.gmra.mrb[0].mxu0 %v4262
        %v4357 = vpop.f32.mrb[0].mxu0
        %v4358 = vadd.f32 %v4307, %v4357
        %v4359 = vpop.f32.mrb[0].mxu0
        %v4360 = vadd.f32 %v4309, %v4359
        %v4361 = vpop.f32.mrb[0].mxu0
        %v4362 = vadd.f32 %v4311, %v4361
        %v4363 = vpop.f32.mrb[0].mxu0
        %v4364 = vadd.f32 %v4313, %v4363
        %4365 = vmatprep.mubr.bf16.mxu0 0
        %4366 = vmatmul.mubr.bf16.gmra.mrb[0].mxu0 %v4265
        %v4367 = vpop.f32.mrb[0].mxu0
        %v4368 = vadd.f32 %v4317, %v4367
        %v4369 = vpop.f32.mrb[0].mxu0
        %v4370 = vadd.f32 %v4319, %v4369
        %v4371 = vpop.f32.mrb[0].mxu0
        %v4372 = vpop.f32.mrb[0].mxu0
        %4373 = vdwg.mxu0
        %v4374 = vadd.f32 %v3944, %v4358
        %v4375 = vadd.f32 %v3945, %v4360
        %v4376 = vadd.f32 %v3946, %v4362
        %v4377 = vadd.f32 %v3947, %v4364
        %v4378 = vadd.f32 %v3948, %v4368
        %v4379 = vadd.f32 %v3949, %v4370
        %s4380 = scalar_lea.vmem %s4, 252
        %v4381 = vld [vmem:[%s4380] sm:$0xff]
        %v4382 = vld [vmem:[%s4380 + $0x8] sm:$0xf]
        %v4383 = vld [vmem:[%s4380 + $0xc] sm:$0xff]
        %v4384 = vld [vmem:[%s4380 + $0x14] sm:$0xf]
        %v4385 = vld [vmem:[%s4380 + $0x18] sm:$0xff]
        %v4386 = vld [vmem:[%s4380 + $0x20] sm:$0xf]
        %4387 = vrot.lane.b32.xlu0 %v1545, 112
        %v4388 = vpop.permute.xlu0 %4387
        %4389 = vrot.lane.b32.xlu0 %v1546, 112
        %v4390 = vpop.permute.xlu0 %4389
        %4391 = vrot.lane.b32.xlu0 %v1547, 112
        %v4392 = vpop.permute.xlu0 %4391
        %4393 = vrot.lane.b32.xlu0 %v1548, 112
        %v4394 = vpop.permute.xlu0 %4393
        %4395 = vrot.lane.b32.xlu0 %v1549, 112
        %v4396 = vpop.permute.xlu0 %4395
        %4397 = vrot.lane.b32.xlu0 %v1550, 112
        %v4398 = vpop.permute.xlu0 %4397
        %4399 = vrot.lane.b32.xlu0 %v1551, 112
        %v4400 = vpop.permute.xlu0 %4399
        %4401 = vrot.lane.b32.xlu0 %v1552, 112
        %v4402 = vpop.permute.xlu0 %4401
        %4403 = vrot.lane.b32.xlu0 %v1553, 112
        %v4404 = vpop.permute.xlu0 %4403
        %4405 = vrot.lane.b32.xlu0 %v1554, 112
        %v4406 = vpop.permute.xlu0 %4405
        %4407 = vrot.lane.b32.xlu0 %v1555, 112
        %v4408 = vpop.permute.xlu0 %4407
        %4409 = vrot.lane.b32.xlu0 %v1556, 112
        %v4410 = vpop.permute.xlu0 %4409
        %4411 = vrot.lane.b32.xlu0 %v1557, 112
        %v4412 = vpop.permute.xlu0 %4411
        %4413 = vrot.lane.b32.xlu0 %v1558, 112
        %v4414 = vpop.permute.xlu0 %4413
        %4415 = vrot.lane.b32.xlu0 %v1559, 112
        %v4416 = vpop.permute.xlu0 %4415
        %4417 = vrot.lane.b32.xlu0 %v1560, 112
        %v4418 = vpop.permute.xlu0 %4417
        %4419 = vrot.lane.b32.xlu0 %v1561, 112
        %v4420 = vpop.permute.xlu0 %4419
        %4421 = vrot.lane.b32.xlu0 %v1562, 112
        %v4422 = vpop.permute.xlu0 %4421
        %4423 = vrot.lane.b32.xlu0 %v1563, 112
        %v4424 = vpop.permute.xlu0 %4423
        %4425 = vrot.lane.b32.xlu0 %v1564, 112
        %v4426 = vpop.permute.xlu0 %4425
        %4427 = vrot.lane.b32.xlu0 %v1565, 112
        %v4428 = vpop.permute.xlu0 %4427
        %4429 = vrot.lane.b32.xlu0 %v1566, 112
        %v4430 = vpop.permute.xlu0 %4429
        %4431 = vrot.lane.b32.xlu0 %v1567, 112
        %v4432 = vpop.permute.xlu0 %4431
        %4433 = vrot.lane.b32.xlu0 %v1568, 112
        %v4434 = vpop.permute.xlu0 %4433
        %4435 = vrot.lane.b32.xlu0 %v1569, 112
        %v4436 = vpop.permute.xlu0 %4435
        %4437 = vrot.lane.b32.xlu0 %v1570, 112
        %v4438 = vpop.permute.xlu0 %4437
        %4439 = vrot.lane.b32.xlu0 %v1571, 112
        %v4440 = vpop.permute.xlu0 %4439
        %4441 = vrot.lane.b32.xlu0 %v1572, 112
        %v4442 = vpop.permute.xlu0 %4441
        %4443 = vrot.lane.b32.xlu0 %v1573, 112
        %v4444 = vpop.permute.xlu0 %4443
        %4445 = vrot.lane.b32.xlu0 %v1574, 112
        %v4446 = vpop.permute.xlu0 %4445
        %4447 = vrot.lane.b32.xlu0 %v1575, 112
        %v4448 = vpop.permute.xlu0 %4447
        %4449 = vrot.lane.b32.xlu0 %v1576, 112
        %v4450 = vpop.permute.xlu0 %4449
        %4451 = vrot.lane.b32.xlu0 %v1577, 112
        %v4452 = vpop.permute.xlu0 %4451
        %4453 = vrot.lane.b32.xlu0 %v1578, 112
        %v4454 = vpop.permute.xlu0 %4453
        %4455 = vrot.lane.b32.xlu0 %v1579, 112
        %v4456 = vpop.permute.xlu0 %4455
        %4457 = vrot.lane.b32.xlu0 %v1580, 112
        %v4458 = vpop.permute.xlu0 %4457
        %4459 = vrot.lane.b32.xlu0 %v1581, 112
        %v4460 = vpop.permute.xlu0 %4459
        %4461 = vrot.lane.b32.xlu0 %v1582, 112
        %v4462 = vpop.permute.xlu0 %4461
        %4463 = vrot.lane.b32.xlu0 %v1583, 112
        %v4464 = vpop.permute.xlu0 %4463
        %4465 = vrot.lane.b32.xlu0 %v1584, 112
        %v4466 = vpop.permute.xlu0 %4465
        %4467 = vrot.lane.b32.xlu0 %v1585, 112
        %v4468 = vpop.permute.xlu0 %4467
        %4469 = vrot.lane.b32.xlu0 %v1586, 112
        %v4470 = vpop.permute.xlu0 %4469
        %4471 = vrot.lane.b32.xlu0 %v1587, 112
        %v4472 = vpop.permute.xlu0 %4471
        %4473 = vrot.lane.b32.xlu0 %v1588, 112
        %v4474 = vpop.permute.xlu0 %4473
        %4475 = vrot.lane.b32.xlu0 %v1589, 112
        %v4476 = vpop.permute.xlu0 %4475
        %4477 = vrot.lane.b32.xlu0 %v1590, 112
        %v4478 = vpop.permute.xlu0 %4477
        %4479 = vrot.lane.b32.xlu0 %v1591, 112
        %v4480 = vpop.permute.xlu0 %4479
        %4481 = vrot.lane.b32.xlu0 %v1592, 112
        %v4482 = vpop.permute.xlu0 %4481
        %v4483 = vsel %vm682, %v4388, %v4390
        %v4484 = vsel %vm682, %v4392, %v4394
        %v4485 = vsel %vm682, %v4396, %v4398
        %v4486 = vsel %vm682, %v4400, %v4402
        %v4487 = vsel %vm682, %v4404, %v4406
        %v4488 = vsel %vm682, %v4408, %v4410
        %v4489 = vsel %vm682, %v4412, %v4414
        %v4490 = vsel %vm682, %v4416, %v4418
        %v4491 = vsel %vm682, %v4420, %v4422
        %v4492 = vsel %vm682, %v4424, %v4426
        %v4493 = vsel %vm682, %v4428, %v4430
        %v4494 = vsel %vm682, %v4432, %v4434
        %v4495 = vsel %vm682, %v4436, %v4438
        %v4496 = vsel %vm682, %v4440, %v4442
        %v4497 = vsel %vm682, %v4444, %v4446
        %v4498 = vsel %vm682, %v4448, %v4450
        %v4499 = vsel %vm682, %v4452, %v4454
        %v4500 = vsel %vm682, %v4456, %v4458
        %v4501 = vsel %vm682, %v4460, %v4462
        %v4502 = vsel %vm682, %v4464, %v4466
        %v4503 = vsel %vm682, %v4468, %v4470
        %v4504 = vsel %vm682, %v4472, %v4474
        %v4505 = vsel %vm682, %v4476, %v4478
        %v4506 = vsel %vm682, %v4480, %v4482
        %v4533 = vsel %vm685, %v4390, %v4388
        %v4537 = vsel %vm685, %v4394, %v4392
        %v4541 = vsel %vm685, %v4398, %v4396
        %v4545 = vsel %vm685, %v4402, %v4400
        %v4549 = vsel %vm685, %v4406, %v4404
        %v4553 = vsel %vm685, %v4410, %v4408
        %v4557 = vsel %vm685, %v4414, %v4412
        %v4561 = vsel %vm685, %v4418, %v4416
        %v4565 = vsel %vm685, %v4422, %v4420
        %v4569 = vsel %vm685, %v4426, %v4424
        %v4573 = vsel %vm685, %v4430, %v4428
        %v4577 = vsel %vm685, %v4434, %v4432
        %v4581 = vsel %vm685, %v4438, %v4436
        %v4585 = vsel %vm685, %v4442, %v4440
        %v4589 = vsel %vm685, %v4446, %v4444
        %v4593 = vsel %vm685, %v4450, %v4448
        %v4597 = vsel %vm685, %v4454, %v4452
        %v4601 = vsel %vm685, %v4458, %v4456
        %v4605 = vsel %vm685, %v4462, %v4460
        %v4609 = vsel %vm685, %v4466, %v4464
        %v4613 = vsel %vm685, %v4470, %v4468
        %v4617 = vsel %vm685, %v4474, %v4472
        %v4621 = vsel %vm685, %v4478, %v4476
        %v4625 = vsel %vm685, %v4482, %v4480
        %v4627 = vmul.bf16 %v4483, %v721
        %v4628 = vmul.bf16 %v4533, %v728
        %v4629 = vmul.bf16 %v4484, %v721
        %v4630 = vmul.bf16 %v4537, %v728
        %v4631 = vmul.bf16 %v4485, %v721
        %v4632 = vmul.bf16 %v4541, %v728
        %v4633 = vmul.bf16 %v4486, %v721
        %v4634 = vmul.bf16 %v4545, %v728
        %v4635 = vmul.bf16 %v4487, %v721
        %v4636 = vmul.bf16 %v4549, %v728
        %v4637 = vmul.bf16 %v4488, %v721
        %v4638 = vmul.bf16 %v4553, %v728
        %v4639 = vmul.bf16 %v4489, %v721
        %v4640 = vmul.bf16 %v4557, %v728
        %v4641 = vmul.bf16 %v4490, %v721
        %v4642 = vmul.bf16 %v4561, %v728
        %v4643 = vmul.bf16 %v4491, %v721
        %v4644 = vmul.bf16 %v4565, %v728
        %v4645 = vmul.bf16 %v4492, %v721
        %v4646 = vmul.bf16 %v4569, %v728
        %v4647 = vmul.bf16 %v4493, %v721
        %v4648 = vmul.bf16 %v4573, %v728
        %v4649 = vmul.bf16 %v4494, %v721
        %v4650 = vmul.bf16 %v4577, %v728
        %v4651 = vmul.bf16 %v4495, %v721
        %v4652 = vmul.bf16 %v4581, %v728
        %v4653 = vmul.bf16 %v4496, %v721
        %v4654 = vmul.bf16 %v4585, %v728
        %v4655 = vmul.bf16 %v4497, %v721
        %v4656 = vmul.bf16 %v4589, %v728
        %v4657 = vmul.bf16 %v4498, %v721
        %v4658 = vmul.bf16 %v4593, %v728
        %v4659 = vmul.bf16 %v4499, %v721
        %v4660 = vmul.bf16 %v4597, %v728
        %v4661 = vmul.bf16 %v4500, %v721
        %v4662 = vmul.bf16 %v4601, %v728
        %v4663 = vmul.bf16 %v4501, %v721
        %v4664 = vmul.bf16 %v4605, %v728
        %v4665 = vmul.bf16 %v4502, %v721
        %v4666 = vmul.bf16 %v4609, %v728
        %v4667 = vmul.bf16 %v4503, %v721
        %v4668 = vmul.bf16 %v4613, %v728
        %v4669 = vmul.bf16 %v4504, %v721
        %v4670 = vmul.bf16 %v4617, %v728
        %v4671 = vmul.bf16 %v4505, %v721
        %v4672 = vmul.bf16 %v4621, %v728
        %v4673 = vmul.bf16 %v4506, %v721
        %v4674 = vmul.bf16 %v4625, %v728
        %v4681 = vunpack.c.l.b16 %v4381
        %v4682 = vunpack.c.h.b16 %v4381
        %v4683 = vunpack.c.l.b16 %v4382
        %v4684 = vunpack.c.l.b16 %v4383
        %v4685 = vunpack.c.h.b16 %v4383
        %v4686 = vunpack.c.l.b16 %v4384
        %v4687 = vunpack.c.l.b16 %v4385
        %v4688 = vunpack.c.h.b16 %v4385
        %v4689 = vunpack.c.l.b16 %v4386
        %v4690 = vpack.c.b16 %v4684, %v4681
        %v4691 = vpack.c.b16 %v4685, %v4682
        %v4692 = vpack.c.b16 %v4686, %v4683
        %v4693 = vpack.c.b16 %v4687, %v4687
        %v4694 = vpack.c.b16 %v4688, %v4688
        %v4695 = vpack.c.b16 %v4689, %v4689
        %4702 = vmatprep.subr.bf16.mxu0 %v4628
        %4703 = vmatpush1.bf16.msra.mxu0 %v4627
        %4704 = vmatprep.subr.bf16.mxu0 %v4630
        %4705 = vmatpush1.bf16.msra.mxu0 %v4629
        %4706 = vmatprep.subr.bf16.mxu0 %v4632
        %4707 = vmatpush1.bf16.msra.mxu0 %v4631
        %4708 = vmatprep.subr.bf16.mxu0 %v4634
        %4709 = vmatpush1.bf16.msra.mxu0 %v4633
        %4710 = vmatprep.subr.bf16.mxu0 %v4636
        %4711 = vmatpush1.bf16.msra.mxu0 %v4635
        %4712 = vmatprep.subr.bf16.mxu0 %v4638
        %4713 = vmatpush1.bf16.msra.mxu0 %v4637
        %4714 = vmatprep.subr.bf16.mxu0 %v4640
        %4715 = vmatpush1.bf16.msra.mxu0 %v4639
        %4716 = vmatprep.subr.bf16.mxu0 %v4642
        %4717 = vmatpush1.bf16.msra.mxu0 %v4641
        %4718 = vmatprep.subr.bf16.mxu0 %v4644
        %4719 = vmatpush1.bf16.msra.mxu0 %v4643
        %4720 = vmatprep.subr.bf16.mxu0 %v4646
        %4721 = vmatpush1.bf16.msra.mxu0 %v4645
        %4722 = vmatprep.subr.bf16.mxu0 %v4648
        %4723 = vmatpush1.bf16.msra.mxu0 %v4647
        %4724 = vmatprep.subr.bf16.mxu0 %v4650
        %4725 = vmatpush1.bf16.msra.mxu0 %v4649
        %4726 = vmatprep.subr.bf16.mxu0 %v4652
        %4727 = vmatpush1.bf16.msra.mxu0 %v4651
        %4728 = vmatprep.subr.bf16.mxu0 %v4654
        %4729 = vmatpush1.bf16.msra.mxu0 %v4653
        %4730 = vmatprep.subr.bf16.mxu0 %v4656
        %4731 = vmatpush1.bf16.msra.mxu0 %v4655
        %4732 = vmatprep.subr.bf16.mxu0 %v4658
        %4733 = vmatpush1.bf16.msra.mxu0 %v4657
        %4734 = vmatprep.mubr.bf16.mxu0 %v4691
        %4735 = vmatmul.mubr.bf16.gmra.mrb[0].mxu0 %v4690
        %v4736 = vpop.f32.mrb[0].mxu0
        %v4737 = vadd.f32 0.0, %v4736
        %v4738 = vpop.f32.mrb[0].mxu0
        %v4739 = vadd.f32 0.0, %v4738
        %v4740 = vpop.f32.mrb[0].mxu0
        %v4741 = vadd.f32 0.0, %v4740
        %v4742 = vpop.f32.mrb[0].mxu0
        %v4743 = vadd.f32 0.0, %v4742
        %4744 = vmatprep.mubr.bf16.mxu0 %v4694
        %4745 = vmatmul.mubr.bf16.gmra.mrb[0].mxu0 %v4693
        %v4746 = vpop.f32.mrb[0].mxu0
        %v4747 = vadd.f32 0.0, %v4746
        %v4748 = vpop.f32.mrb[0].mxu0
        %v4749 = vadd.f32 0.0, %v4748
        %v4750 = vpop.f32.mrb[0].mxu0
        %v4751 = vpop.f32.mrb[0].mxu0
        %4752 = vdwg.mxu0
        %4753 = vmatprep.subr.bf16.mxu0 %v4660
        %4754 = vmatpush1.bf16.msra.mxu0 %v4659
        %4755 = vmatprep.subr.bf16.mxu0 %v4662
        %4756 = vmatpush1.bf16.msra.mxu0 %v4661
        %4757 = vmatprep.subr.bf16.mxu0 %v4664
        %4758 = vmatpush1.bf16.msra.mxu0 %v4663
        %4759 = vmatprep.subr.bf16.mxu0 %v4666
        %4760 = vmatpush1.bf16.msra.mxu0 %v4665
        %4761 = vmatprep.subr.bf16.mxu0 %v4668
        %4762 = vmatpush1.bf16.msra.mxu0 %v4667
        %4763 = vmatprep.subr.bf16.mxu0 %v4670
        %4764 = vmatpush1.bf16.msra.mxu0 %v4669
        %4765 = vmatprep.subr.bf16.mxu0 %v4672
        %4766 = vmatpush1.bf16.msra.mxu0 %v4671
        %4767 = vmatprep.subr.bf16.mxu0 %v4674
        %4768 = vmatpush1.bf16.msra.mxu0 %v4673
        %4769 = vmatprep.subr.bf16.mxu0 0
        %4770 = vmatpush1.bf16.msra.mxu0 0
        %4771 = vmatprep.subr.bf16.mxu0 0
        %4772 = vmatpush1.bf16.msra.mxu0 0
        %4773 = vmatprep.subr.bf16.mxu0 0
        %4774 = vmatpush1.bf16.msra.mxu0 0
        %4775 = vmatprep.subr.bf16.mxu0 0
        %4776 = vmatpush1.bf16.msra.mxu0 0
        %4777 = vmatprep.subr.bf16.mxu0 0
        %4778 = vmatpush1.bf16.msra.mxu0 0
        %4779 = vmatprep.subr.bf16.mxu0 0
        %4780 = vmatpush1.bf16.msra.mxu0 0
        %4781 = vmatprep.subr.bf16.mxu0 0
        %4782 = vmatpush1.bf16.msra.mxu0 0
        %4783 = vmatprep.subr.bf16.mxu0 0
        %4784 = vmatpush1.bf16.msra.mxu0 0
        %4785 = vmatprep.mubr.bf16.mxu0 0
        %4786 = vmatmul.mubr.bf16.gmra.mrb[0].mxu0 %v4692
        %v4787 = vpop.f32.mrb[0].mxu0
        %v4788 = vadd.f32 %v4737, %v4787
        %v4789 = vpop.f32.mrb[0].mxu0
        %v4790 = vadd.f32 %v4739, %v4789
        %v4791 = vpop.f32.mrb[0].mxu0
        %v4792 = vadd.f32 %v4741, %v4791
        %v4793 = vpop.f32.mrb[0].mxu0
        %v4794 = vadd.f32 %v4743, %v4793
        %4795 = vmatprep.mubr.bf16.mxu0 0
        %4796 = vmatmul.mubr.bf16.gmra.mrb[0].mxu0 %v4695
        %v4797 = vpop.f32.mrb[0].mxu0
        %v4798 = vadd.f32 %v4747, %v4797
        %v4799 = vpop.f32.mrb[0].mxu0
        %v4800 = vadd.f32 %v4749, %v4799
        %v4801 = vpop.f32.mrb[0].mxu0
        %v4802 = vpop.f32.mrb[0].mxu0
        %4803 = vdwg.mxu0
        %v4804 = vadd.f32 %v4374, %v4788
        %v4805 = vadd.f32 %v4375, %v4790
        %v4806 = vadd.f32 %v4376, %v4792
        %v4807 = vadd.f32 %v4377, %v4794
        %v4808 = vadd.f32 %v4378, %v4798
        %v4809 = vadd.f32 %v4379, %v4800
        %s4810 = scalar_lea.vmem %s4, 288
        %v4811 = vld [vmem:[%s4810] sm:$0xff]
        %v4812 = vld [vmem:[%s4810 + $0x8] sm:$0xf]
        %v4813 = vld [vmem:[%s4810 + $0xc] sm:$0xff]
        %v4814 = vld [vmem:[%s4810 + $0x14] sm:$0xf]
        %v4815 = vld [vmem:[%s4810 + $0x18] sm:$0xff]
        %v4816 = vld [vmem:[%s4810 + $0x20] sm:$0xf]
        %4817 = vrot.lane.b32.xlu0 %v1545, 111
        %v4818 = vpop.permute.xlu0 %4817
        %4819 = vrot.lane.b32.xlu0 %v1546, 111
        %v4820 = vpop.permute.xlu0 %4819
        %4821 = vrot.lane.b32.xlu0 %v1547, 111
        %v4822 = vpop.permute.xlu0 %4821
        %4823 = vrot.lane.b32.xlu0 %v1548, 111
        %v4824 = vpop.permute.xlu0 %4823
        %4825 = vrot.lane.b32.xlu0 %v1549, 111
        %v4826 = vpop.permute.xlu0 %4825
        %4827 = vrot.lane.b32.xlu0 %v1550, 111
        %v4828 = vpop.permute.xlu0 %4827
        %4829 = vrot.lane.b32.xlu0 %v1551, 111
        %v4830 = vpop.permute.xlu0 %4829
        %4831 = vrot.lane.b32.xlu0 %v1552, 111
        %v4832 = vpop.permute.xlu0 %4831
        %4833 = vrot.lane.b32.xlu0 %v1553, 111
        %v4834 = vpop.permute.xlu0 %4833
        %4835 = vrot.lane.b32.xlu0 %v1554, 111
        %v4836 = vpop.permute.xlu0 %4835
        %4837 = vrot.lane.b32.xlu0 %v1555, 111
        %v4838 = vpop.permute.xlu0 %4837
        %4839 = vrot.lane.b32.xlu0 %v1556, 111
        %v4840 = vpop.permute.xlu0 %4839
        %4841 = vrot.lane.b32.xlu0 %v1557, 111
        %v4842 = vpop.permute.xlu0 %4841
        %4843 = vrot.lane.b32.xlu0 %v1558, 111
        %v4844 = vpop.permute.xlu0 %4843
        %4845 = vrot.lane.b32.xlu0 %v1559, 111
        %v4846 = vpop.permute.xlu0 %4845
        %4847 = vrot.lane.b32.xlu0 %v1560, 111
        %v4848 = vpop.permute.xlu0 %4847
        %4849 = vrot.lane.b32.xlu0 %v1561, 111
        %v4850 = vpop.permute.xlu0 %4849
        %4851 = vrot.lane.b32.xlu0 %v1562, 111
        %v4852 = vpop.permute.xlu0 %4851
        %4853 = vrot.lane.b32.xlu0 %v1563, 111
        %v4854 = vpop.permute.xlu0 %4853
        %4855 = vrot.lane.b32.xlu0 %v1564, 111
        %v4856 = vpop.permute.xlu0 %4855
        %4857 = vrot.lane.b32.xlu0 %v1565, 111
        %v4858 = vpop.permute.xlu0 %4857
        %4859 = vrot.lane.b32.xlu0 %v1566, 111
        %v4860 = vpop.permute.xlu0 %4859
        %4861 = vrot.lane.b32.xlu0 %v1567, 111
        %v4862 = vpop.permute.xlu0 %4861
        %4863 = vrot.lane.b32.xlu0 %v1568, 111
        %v4864 = vpop.permute.xlu0 %4863
        %4865 = vrot.lane.b32.xlu0 %v1569, 111
        %v4866 = vpop.permute.xlu0 %4865
        %4867 = vrot.lane.b32.xlu0 %v1570, 111
        %v4868 = vpop.permute.xlu0 %4867
        %4869 = vrot.lane.b32.xlu0 %v1571, 111
        %v4870 = vpop.permute.xlu0 %4869
        %4871 = vrot.lane.b32.xlu0 %v1572, 111
        %v4872 = vpop.permute.xlu0 %4871
        %4873 = vrot.lane.b32.xlu0 %v1573, 111
        %v4874 = vpop.permute.xlu0 %4873
        %4875 = vrot.lane.b32.xlu0 %v1574, 111
        %v4876 = vpop.permute.xlu0 %4875
        %4877 = vrot.lane.b32.xlu0 %v1575, 111
        %v4878 = vpop.permute.xlu0 %4877
        %4879 = vrot.lane.b32.xlu0 %v1576, 111
        %v4880 = vpop.permute.xlu0 %4879
        %4881 = vrot.lane.b32.xlu0 %v1577, 111
        %v4882 = vpop.permute.xlu0 %4881
        %4883 = vrot.lane.b32.xlu0 %v1578, 111
        %v4884 = vpop.permute.xlu0 %4883
        %4885 = vrot.lane.b32.xlu0 %v1579, 111
        %v4886 = vpop.permute.xlu0 %4885
        %4887 = vrot.lane.b32.xlu0 %v1580, 111
        %v4888 = vpop.permute.xlu0 %4887
        %4889 = vrot.lane.b32.xlu0 %v1581, 111
        %v4890 = vpop.permute.xlu0 %4889
        %4891 = vrot.lane.b32.xlu0 %v1582, 111
        %v4892 = vpop.permute.xlu0 %4891
        %4893 = vrot.lane.b32.xlu0 %v1583, 111
        %v4894 = vpop.permute.xlu0 %4893
        %4895 = vrot.lane.b32.xlu0 %v1584, 111
        %v4896 = vpop.permute.xlu0 %4895
        %4897 = vrot.lane.b32.xlu0 %v1585, 111
        %v4898 = vpop.permute.xlu0 %4897
        %4899 = vrot.lane.b32.xlu0 %v1586, 111
        %v4900 = vpop.permute.xlu0 %4899
        %4901 = vrot.lane.b32.xlu0 %v1587, 111
        %v4902 = vpop.permute.xlu0 %4901
        %4903 = vrot.lane.b32.xlu0 %v1588, 111
        %v4904 = vpop.permute.xlu0 %4903
        %4905 = vrot.lane.b32.xlu0 %v1589, 111
        %v4906 = vpop.permute.xlu0 %4905
        %4907 = vrot.lane.b32.xlu0 %v1590, 111
        %v4908 = vpop.permute.xlu0 %4907
        %4909 = vrot.lane.b32.xlu0 %v1591, 111
        %v4910 = vpop.permute.xlu0 %4909
        %4911 = vrot.lane.b32.xlu0 %v1592, 111
        %v4912 = vpop.permute.xlu0 %4911
        %v4913 = vsel %vm735, %v4818, %v4820
        %v4914 = vsel %vm735, %v4822, %v4824
        %v4915 = vsel %vm735, %v4826, %v4828
        %v4916 = vsel %vm735, %v4830, %v4832
        %v4917 = vsel %vm735, %v4834, %v4836
        %v4918 = vsel %vm735, %v4838, %v4840
        %v4919 = vsel %vm735, %v4842, %v4844
        %v4920 = vsel %vm735, %v4846, %v4848
        %v4921 = vsel %vm735, %v4850, %v4852
        %v4922 = vsel %vm735, %v4854, %v4856
        %v4923 = vsel %vm735, %v4858, %v4860
        %v4924 = vsel %vm735, %v4862, %v4864
        %v4925 = vsel %vm735, %v4866, %v4868
        %v4926 = vsel %vm735, %v4870, %v4872
        %v4927 = vsel %vm735, %v4874, %v4876
        %v4928 = vsel %vm735, %v4878, %v4880
        %v4929 = vsel %vm735, %v4882, %v4884
        %v4930 = vsel %vm735, %v4886, %v4888
        %v4931 = vsel %vm735, %v4890, %v4892
        %v4932 = vsel %vm735, %v4894, %v4896
        %v4933 = vsel %vm735, %v4898, %v4900
        %v4934 = vsel %vm735, %v4902, %v4904
        %v4935 = vsel %vm735, %v4906, %v4908
        %v4936 = vsel %vm735, %v4910, %v4912
        %v4963 = vsel %vm738, %v4820, %v4818
        %v4967 = vsel %vm738, %v4824, %v4822
        %v4971 = vsel %vm738, %v4828, %v4826
        %v4975 = vsel %vm738, %v4832, %v4830
        %v4979 = vsel %vm738, %v4836, %v4834
        %v4983 = vsel %vm738, %v4840, %v4838
        %v4987 = vsel %vm738, %v4844, %v4842
        %v4991 = vsel %vm738, %v4848, %v4846
        %v4995 = vsel %vm738, %v4852, %v4850
        %v4999 = vsel %vm738, %v4856, %v4854
        %v5003 = vsel %vm738, %v4860, %v4858
        %v5007 = vsel %vm738, %v4864, %v4862
        %v5011 = vsel %vm738, %v4868, %v4866
        %v5015 = vsel %vm738, %v4872, %v4870
        %v5019 = vsel %vm738, %v4876, %v4874
        %v5023 = vsel %vm738, %v4880, %v4878
        %v5027 = vsel %vm738, %v4884, %v4882
        %v5031 = vsel %vm738, %v4888, %v4886
        %v5035 = vsel %vm738, %v4892, %v4890
        %v5039 = vsel %vm738, %v4896, %v4894
        %v5043 = vsel %vm738, %v4900, %v4898
        %v5047 = vsel %vm738, %v4904, %v4902
        %v5051 = vsel %vm738, %v4908, %v4906
        %v5055 = vsel %vm738, %v4912, %v4910
        %v5057 = vmul.bf16 %v4913, %v774
        %v5058 = vmul.bf16 %v4963, %v781
        %v5059 = vmul.bf16 %v4914, %v774
        %v5060 = vmul.bf16 %v4967, %v781
        %v5061 = vmul.bf16 %v4915, %v774
        %v5062 = vmul.bf16 %v4971, %v781
        %v5063 = vmul.bf16 %v4916, %v774
        %v5064 = vmul.bf16 %v4975, %v781
        %v5065 = vmul.bf16 %v4917, %v774
        %v5066 = vmul.bf16 %v4979, %v781
        %v5067 = vmul.bf16 %v4918, %v774
        %v5068 = vmul.bf16 %v4983, %v781
        %v5069 = vmul.bf16 %v4919, %v774
        %v5070 = vmul.bf16 %v4987, %v781
        %v5071 = vmul.bf16 %v4920, %v774
        %v5072 = vmul.bf16 %v4991, %v781
        %v5073 = vmul.bf16 %v4921, %v774
        %v5074 = vmul.bf16 %v4995, %v781
        %v5075 = vmul.bf16 %v4922, %v774
        %v5076 = vmul.bf16 %v4999, %v781
        %v5077 = vmul.bf16 %v4923, %v774
        %v5078 = vmul.bf16 %v5003, %v781
        %v5079 = vmul.bf16 %v4924, %v774
        %v5080 = vmul.bf16 %v5007, %v781
        %v5081 = vmul.bf16 %v4925, %v774
        %v5082 = vmul.bf16 %v5011, %v781
        %v5083 = vmul.bf16 %v4926, %v774
        %v5084 = vmul.bf16 %v5015, %v781
        %v5085 = vmul.bf16 %v4927, %v774
        %v5086 = vmul.bf16 %v5019, %v781
        %v5087 = vmul.bf16 %v4928, %v774
        %v5088 = vmul.bf16 %v5023, %v781
        %v5089 = vmul.bf16 %v4929, %v774
        %v5090 = vmul.bf16 %v5027, %v781
        %v5091 = vmul.bf16 %v4930, %v774
        %v5092 = vmul.bf16 %v5031, %v781
        %v5093 = vmul.bf16 %v4931, %v774
        %v5094 = vmul.bf16 %v5035, %v781
        %v5095 = vmul.bf16 %v4932, %v774
        %v5096 = vmul.bf16 %v5039, %v781
        %v5097 = vmul.bf16 %v4933, %v774
        %v5098 = vmul.bf16 %v5043, %v781
        %v5099 = vmul.bf16 %v4934, %v774
        %v5100 = vmul.bf16 %v5047, %v781
        %v5101 = vmul.bf16 %v4935, %v774
        %v5102 = vmul.bf16 %v5051, %v781
        %v5103 = vmul.bf16 %v4936, %v774
        %v5104 = vmul.bf16 %v5055, %v781
        %v5111 = vunpack.c.l.b16 %v4811
        %v5112 = vunpack.c.h.b16 %v4811
        %v5113 = vunpack.c.l.b16 %v4812
        %v5114 = vunpack.c.l.b16 %v4813
        %v5115 = vunpack.c.h.b16 %v4813
        %v5116 = vunpack.c.l.b16 %v4814
        %v5117 = vunpack.c.l.b16 %v4815
        %v5118 = vunpack.c.h.b16 %v4815
        %v5119 = vunpack.c.l.b16 %v4816
        %v5120 = vpack.c.b16 %v5114, %v5111
        %v5121 = vpack.c.b16 %v5115, %v5112
        %v5122 = vpack.c.b16 %v5116, %v5113
        %v5123 = vpack.c.b16 %v5117, %v5117
        %v5124 = vpack.c.b16 %v5118, %v5118
        %v5125 = vpack.c.b16 %v5119, %v5119
        %5132 = vmatprep.subr.bf16.mxu0 %v5058
        %5133 = vmatpush1.bf16.msra.mxu0 %v5057
        %5134 = vmatprep.subr.bf16.mxu0 %v5060
        %5135 = vmatpush1.bf16.msra.mxu0 %v5059
        %5136 = vmatprep.subr.bf16.mxu0 %v5062
        %5137 = vmatpush1.bf16.msra.mxu0 %v5061
        %5138 = vmatprep.subr.bf16.mxu0 %v5064
        %5139 = vmatpush1.bf16.msra.mxu0 %v5063
        %5140 = vmatprep.subr.bf16.mxu0 %v5066
        %5141 = vmatpush1.bf16.msra.mxu0 %v5065
        %5142 = vmatprep.subr.bf16.mxu0 %v5068
        %5143 = vmatpush1.bf16.msra.mxu0 %v5067
        %5144 = vmatprep.subr.bf16.mxu0 %v5070
        %5145 = vmatpush1.bf16.msra.mxu0 %v5069
        %5146 = vmatprep.subr.bf16.mxu0 %v5072
        %5147 = vmatpush1.bf16.msra.mxu0 %v5071
        %5148 = vmatprep.subr.bf16.mxu0 %v5074
        %5149 = vmatpush1.bf16.msra.mxu0 %v5073
        %5150 = vmatprep.subr.bf16.mxu0 %v5076
        %5151 = vmatpush1.bf16.msra.mxu0 %v5075
        %5152 = vmatprep.subr.bf16.mxu0 %v5078
        %5153 = vmatpush1.bf16.msra.mxu0 %v5077
        %5154 = vmatprep.subr.bf16.mxu0 %v5080
        %5155 = vmatpush1.bf16.msra.mxu0 %v5079
        %5156 = vmatprep.subr.bf16.mxu0 %v5082
        %5157 = vmatpush1.bf16.msra.mxu0 %v5081
        %5158 = vmatprep.subr.bf16.mxu0 %v5084
        %5159 = vmatpush1.bf16.msra.mxu0 %v5083
        %5160 = vmatprep.subr.bf16.mxu0 %v5086
        %5161 = vmatpush1.bf16.msra.mxu0 %v5085
        %5162 = vmatprep.subr.bf16.mxu0 %v5088
        %5163 = vmatpush1.bf16.msra.mxu0 %v5087
        %5164 = vmatprep.mubr.bf16.mxu0 %v5121
        %5165 = vmatmul.mubr.bf16.gmra.mrb[0].mxu0 %v5120
        %v5166 = vpop.f32.mrb[0].mxu0
        %v5167 = vadd.f32 0.0, %v5166
        %v5168 = vpop.f32.mrb[0].mxu0
        %v5169 = vadd.f32 0.0, %v5168
        %v5170 = vpop.f32.mrb[0].mxu0
        %v5171 = vadd.f32 0.0, %v5170
        %v5172 = vpop.f32.mrb[0].mxu0
        %v5173 = vadd.f32 0.0, %v5172
        %5174 = vmatprep.mubr.bf16.mxu0 %v5124
        %5175 = vmatmul.mubr.bf16.gmra.mrb[0].mxu0 %v5123
        %v5176 = vpop.f32.mrb[0].mxu0
        %v5177 = vadd.f32 0.0, %v5176
        %v5178 = vpop.f32.mrb[0].mxu0
        %v5179 = vadd.f32 0.0, %v5178
        %v5180 = vpop.f32.mrb[0].mxu0
        %v5181 = vpop.f32.mrb[0].mxu0
        %5182 = vdwg.mxu0
        %5183 = vmatprep.subr.bf16.mxu0 %v5090
        %5184 = vmatpush1.bf16.msra.mxu0 %v5089
        %5185 = vmatprep.subr.bf16.mxu0 %v5092
        %5186 = vmatpush1.bf16.msra.mxu0 %v5091
        %5187 = vmatprep.subr.bf16.mxu0 %v5094
        %5188 = vmatpush1.bf16.msra.mxu0 %v5093
        %5189 = vmatprep.subr.bf16.mxu0 %v5096
        %5190 = vmatpush1.bf16.msra.mxu0 %v5095
        %5191 = vmatprep.subr.bf16.mxu0 %v5098
        %5192 = vmatpush1.bf16.msra.mxu0 %v5097
        %5193 = vmatprep.subr.bf16.mxu0 %v5100
        %5194 = vmatpush1.bf16.msra.mxu0 %v5099
        %5195 = vmatprep.subr.bf16.mxu0 %v5102
        %5196 = vmatpush1.bf16.msra.mxu0 %v5101
        %5197 = vmatprep.subr.bf16.mxu0 %v5104
        %5198 = vmatpush1.bf16.msra.mxu0 %v5103
        %5199 = vmatprep.subr.bf16.mxu0 0
        %5200 = vmatpush1.bf16.msra.mxu0 0
        %5201 = vmatprep.subr.bf16.mxu0 0
        %5202 = vmatpush1.bf16.msra.mxu0 0
        %5203 = vmatprep.subr.bf16.mxu0 0
        %5204 = vmatpush1.bf16.msra.mxu0 0
        %5205 = vmatprep.subr.bf16.mxu0 0
        %5206 = vmatpush1.bf16.msra.mxu0 0
        %5207 = vmatprep.subr.bf16.mxu0 0
        %5208 = vmatpush1.bf16.msra.mxu0 0
        %5209 = vmatprep.subr.bf16.mxu0 0
        %5210 = vmatpush1.bf16.msra.mxu0 0
        %5211 = vmatprep.subr.bf16.mxu0 0
        %5212 = vmatpush1.bf16.msra.mxu0 0
        %5213 = vmatprep.subr.bf16.mxu0 0
        %5214 = vmatpush1.bf16.msra.mxu0 0
        %5215 = vmatprep.mubr.bf16.mxu0 0
        %5216 = vmatmul.mubr.bf16.gmra.mrb[0].mxu0 %v5122
        %v5217 = vpop.f32.mrb[0].mxu0
        %v5218 = vadd.f32 %v5167, %v5217
        %v5219 = vpop.f32.mrb[0].mxu0
        %v5220 = vadd.f32 %v5169, %v5219
        %v5221 = vpop.f32.mrb[0].mxu0
        %v5222 = vadd.f32 %v5171, %v5221
        %v5223 = vpop.f32.mrb[0].mxu0
        %v5224 = vadd.f32 %v5173, %v5223
        %5225 = vmatprep.mubr.bf16.mxu0 0
        %5226 = vmatmul.mubr.bf16.gmra.mrb[0].mxu0 %v5125
        %v5227 = vpop.f32.mrb[0].mxu0
        %v5228 = vadd.f32 %v5177, %v5227
        %v5229 = vpop.f32.mrb[0].mxu0
        %v5230 = vadd.f32 %v5179, %v5229
        %v5231 = vpop.f32.mrb[0].mxu0
        %v5232 = vpop.f32.mrb[0].mxu0
        %5233 = vdwg.mxu0
        %v5234 = vadd.f32 %v4804, %v5218
        %v5235 = vadd.f32 %v4805, %v5220
        %v5236 = vadd.f32 %v4806, %v5222
        %v5237 = vadd.f32 %v4807, %v5224
        %v5238 = vadd.f32 %v4808, %v5228
        %v5239 = vadd.f32 %v4809, %v5230
        %v5240 = vld [vmem:[%s345] sm:$0xff]
        %v5242 = vcombine.high %v5240, %v5240
        %v5244 = vsel %vm915, %v5240, 0.0
        %v5245 = vsel %vm915, %v5242, 0.0
        %v5246 = vadd.f32 %v5244, %v5245
        %5247 = vadd.xlane.f32.xlu0 %v5246
        %v5248 = vpop.xlane.xlu0 %5247
        %v5249 = vrcp.pop 256.0
        %v5250 = vmul.f32 %v5248, %v5249
        %v5253 = vunpack.c.l.s4 839922192
        %v5254 = vunpack.c.0.s8 %v5253
        %v5255 = vlaneseq
        %v5256 = vshrl.u32 %v5255, 7
        %v5257 = vsub.s32 %v5254, %v5256
        %v5258 = vrot.slane %v5250, %v5257
        %v5260 = vsub.f32 %v5240, %v5258
        %v5261 = vmul.f32 %v5260, %v5260
        %v5263 = vcombine.high %v5261, %v5261
        %v5265 = vsel %vm915, %v5261, 0.0
        %v5266 = vsel %vm915, %v5263, 0.0
        %v5267 = vadd.f32 %v5265, %v5266
        %5268 = vadd.xlane.f32.xlu0 %v5267
        %v5269 = vpop.xlane.xlu0 %5268
        %v5270 = vmul.f32 %v5269, %v5249
        %v5271 = vadd.f32 %v5270, 1e-05
        %v5272 = vrsqrt.pop %v5271
        %v5275 = vunpack.c.l.s4 839922192
        %v5276 = vunpack.c.0.s8 %v5275
        %v5277 = vlaneseq
        %v5278 = vshrl.u32 %v5277, 7
        %v5279 = vsub.s32 %v5276, %v5278
        %v5280 = vrot.slane %v5272, %v5279
        %v5282 = vmul.f32 %v5260, %v5280
        %v5283 = vadd.f32 %v5234, 1.0
        %v5284 = vadd.f32 %v5235, 1.0
        %v5287 = vcombine.low %v5283, %v5284
        %v5289 = vmul.f32 %v5282, %v5287
        %v5292 = vcombine.high %v5234, %v5235
        %v5294 = vadd.f32 %v5289, %v5292
        %vm5295 = vcmp.ge.f32.partialorder %v5294, 0.0
        %v5296 = vmul.f32 %v5294, 0.2
        %v5297 = vsel %vm5295, %v5294, %v5296
        %v5299 = vcombine.high %v5297, %v5297
        %v5301 = vpack.c.bf16 %v5297, %v5297
        %v5302 = vpack.c.bf16 %v5299, %v5299
        %5304 = vrot.lane.b32.xlu0 %v5302, 17
        %v5305 = vpop.permute.xlu0 %5304
        %5307 = vrot.lane.b32.xlu0 %v5301, 17
        %v5308 = vpop.permute.xlu0 %5307
        %v5309 = vsel %vm365, %v5308, %v5305
        %v5313 = vsel %vm368, %v5305, %v5308
        %v5315 = vmul.bf16 %v5313, %v403
        %v5316 = vmul.bf16 %v5309, %v410
        %5317 = vrot.lane.b32.xlu0 %v5302, 16
        %v5318 = vpop.permute.xlu0 %5317
        %5319 = vrot.lane.b32.xlu0 %v5301, 16
        %v5320 = vpop.permute.xlu0 %5319
        %v5321 = vsel %vm417, %v5320, %v5318
        %v5325 = vsel %vm420, %v5318, %v5320
        %v5327 = vmul.bf16 %v5325, %v456
        %v5328 = vmul.bf16 %v5321, %v463
        %5329 = vrot.lane.b32.xlu0 %v5302, 15
        %v5330 = vpop.permute.xlu0 %5329
        %5331 = vrot.lane.b32.xlu0 %v5301, 15
        %v5332 = vpop.permute.xlu0 %5331
        %v5333 = vsel %vm470, %v5332, %v5330
        %v5337 = vsel %vm473, %v5330, %v5332
        %v5339 = vmul.bf16 %v5337, %v509
        %v5340 = vmul.bf16 %v5333, %v516
        %5341 = vrot.lane.b32.xlu0 %v5302, 1
        %v5342 = vpop.permute.xlu0 %5341
        %5343 = vrot.lane.b32.xlu0 %v5301, 1
        %v5344 = vpop.permute.xlu0 %5343
        %v5345 = vsel %vm523, %v5344, %v5342
        %v5349 = vsel %vm526, %v5342, %v5344
        %v5351 = vmul.bf16 %v5349, %v562
        %v5352 = vmul.bf16 %v5345, %v569
        %5353 = vrot.lane.b32.xlu0 %v5301, 127
        %v5354 = vpop.permute.xlu0 %5353
        %5355 = vrot.lane.b32.xlu0 %v5302, 127
        %v5356 = vpop.permute.xlu0 %5355
        %v5357 = vsel %vm576, %v5354, %v5356
        %v5361 = vsel %vm579, %v5356, %v5354
        %v5363 = vmul.bf16 %v5357, %v615
        %v5364 = vmul.bf16 %v5361, %v622
        %5365 = vrot.lane.b32.xlu0 %v5301, 113
        %v5366 = vpop.permute.xlu0 %5365
        %5367 = vrot.lane.b32.xlu0 %v5302, 113
        %v5368 = vpop.permute.xlu0 %5367
        %v5369 = vsel %vm629, %v5366, %v5368
        %v5373 = vsel %vm632, %v5368, %v5366
        %v5375 = vmul.bf16 %v5369, %v668
        %v5376 = vmul.bf16 %v5373, %v675
        %5377 = vrot.lane.b32.xlu0 %v5301, 112
        %v5378 = vpop.permute.xlu0 %5377
        %5379 = vrot.lane.b32.xlu0 %v5302, 112
        %v5380 = vpop.permute.xlu0 %5379
        %v5381 = vsel %vm682, %v5378, %v5380
        %v5385 = vsel %vm685, %v5380, %v5378
        %v5387 = vmul.bf16 %v5381, %v721
        %v5388 = vmul.bf16 %v5385, %v728
        %5389 = vrot.lane.b32.xlu0 %v5301, 111
        %v5390 = vpop.permute.xlu0 %5389
        %5391 = vrot.lane.b32.xlu0 %v5302, 111
        %v5392 = vpop.permute.xlu0 %5391
        %v5393 = vsel %vm735, %v5390, %v5392
        %v5397 = vsel %vm738, %v5392, %v5390
        %v5399 = vmul.bf16 %v5393, %v774
        %v5400 = vmul.bf16 %v5397, %v781
        %v5403 = vrot.slane %v5327, 6
        %v5404 = vrot.slane %v5328, 6
        %v5407 = vrot.slane %v5339, 4
        %v5408 = vrot.slane %v5340, 4
        %v5411 = vrot.slane %v5351, 2
        %v5412 = vrot.slane %v5352, 2
        %v5415 = vrot.slane %v5363, 6
        %v5416 = vrot.slane %v5364, 6
        %v5419 = vrot.slane %v5375, 4
        %v5420 = vrot.slane %v5376, 4
        %v5423 = vrot.slane %v5387, 2
        %v5424 = vrot.slane %v5388, 2
        %vm5425 = vcmask 1041408
        %v5428 = vsel %vm5425, %v5315, %v5403
        %v5431 = vsel %vm5425, %v5316, %v5404
        %v5433 = vsel %vm915, %v5428, %v5407
        %v5435 = vsel %vm915, %v5431, %v5408
        %v5437 = vsel %vm887, %v5433, %v5411
        %v5440 = vsel %vm887, %v5435, %v5412
        %v5444 = vsel %vm5425, %v5301, %v5415
        %v5447 = vsel %vm5425, %v5302, %v5416
        %v5449 = vsel %vm915, %v5444, %v5419
        %v5451 = vsel %vm915, %v5447, %v5420
        %v5453 = vsel %vm887, %v5449, %v5423
        %v5456 = vsel %vm887, %v5451, %v5424
        %v5460 = vsel %vm5425, %v5399, 1065369472
        %v5462 = vsel %vm5425, %v5400, 1065369472
        %v5463 = vld [vmem:[%s6] sm:$0x3]
        %vm5464 = vcmask 302080
        %v5466 = vsel %vm5464, %v5463, 0
        %v5468 = vsel %vm5425, 4294967295, 65535
        %v5469 = vsel %vm873, %v5468, 0
        %v5470 = vand.u32 %v5460, %v5469
        %v5472 = vand.u32 %v5462, %v5469
        %5474 = vmatprep.subr.bf16.mxu0 %v5440
        %5475 = vmatpush1.bf16.msra.mxu0 %v5437
        %5476 = vmatprep.subr.bf16.mxu0 %v5456
        %5477 = vmatpush1.bf16.msra.mxu0 %v5453
        %5478 = vmatprep.subr.bf16.mxu0 %v5472
        %5479 = vmatpush1.bf16.msra.mxu0 %v5470
        %5480 = vmatprep.subr.bf16.mxu0 0
        %5481 = vmatpush1.bf16.msra.mxu0 0
        %5482 = vmatprep.subr.bf16.mxu0 0
        %5483 = vmatpush1.bf16.msra.mxu0 0
        %5484 = vmatprep.subr.bf16.mxu0 0
        %5485 = vmatpush1.bf16.msra.mxu0 0
        %5486 = vmatprep.subr.bf16.mxu0 0
        %5487 = vmatpush1.bf16.msra.mxu0 0
        %5488 = vmatprep.subr.bf16.mxu0 0
        %5489 = vmatpush1.bf16.msra.mxu0 0
        %5490 = vmatprep.subr.bf16.mxu0 0
        %5491 = vmatpush1.bf16.msra.mxu0 0
        %5492 = vmatprep.subr.bf16.mxu0 0
        %5493 = vmatpush1.bf16.msra.mxu0 0
        %5494 = vmatprep.subr.bf16.mxu0 0
        %5495 = vmatpush1.bf16.msra.mxu0 0
        %5496 = vmatprep.subr.bf16.mxu0 0
        %5497 = vmatpush1.bf16.msra.mxu0 0
        %5498 = vmatprep.subr.bf16.mxu0 0
        %5499 = vmatpush1.bf16.msra.mxu0 0
        %5500 = vmatprep.subr.bf16.mxu0 0
        %5501 = vmatpush1.bf16.msra.mxu0 0
        %5502 = vmatprep.subr.bf16.mxu0 0
        %5503 = vmatpush1.bf16.msra.mxu0 0
        %5504 = vmatprep.subr.bf16.mxu0 0
        %5505 = vmatpush1.bf16.msra.mxu0 0
        %5506 = vmatprep.mubr.bf16.mxu0 0
        %5507 = vmatmul.mubr.bf16.gmra.mrb[0].mxu0 %v5466
        %v5508 = vpop.f32.mrb[0].mxu0
        %v5509 = vadd.f32 0.0, %v5508
        %v5510 = vpop.f32.mrb[0].mxu0
        %v5511 = vadd.f32 0.0, %v5510
        %v5512 = vpop.f32.mrb[0].mxu0
        %v5513 = vpop.f32.mrb[0].mxu0
        %5514 = vdwg.mxu0
        %v5515 = vsel %vm915, %v5509, 0.0
        %v5516 = vsel %vm915, %v5511, 0.0
        %v5517 = vadd.f32 %v5515, %v5516
        %5518 = vadd.xlane.f32.xlu0 %v5517
        %v5519 = vpop.xlane.xlu0 %5518
        %v5520 = vmul.f32 %v5519, %v5249
        %v5521 = vsub.f32 %v5509, %v5520
        %v5522 = vsub.f32 %v5511, %v5520
        %v5523 = vmul.f32 %v5521, %v5521
        %v5524 = vmul.f32 %v5522, %v5522
        %v5525 = vsel %vm915, %v5523, 0.0
        %v5526 = vsel %vm915, %v5524, 0.0
        %v5527 = vadd.f32 %v5525, %v5526
        %5528 = vadd.xlane.f32.xlu0 %v5527
        %v5529 = vpop.xlane.xlu0 %5528
        %v5530 = vmul.f32 %v5529, %v5249
        %v5531 = vadd.f32 %v5530, 1e-05
        %v5532 = vrsqrt.pop %v5531
        %v5533 = vmul.f32 %v5521, %v5532
        %v5534 = vmul.f32 %v5522, %v5532
        %v5535 = vadd.f32 %v5236, 1.0
        %v5536 = vadd.f32 %v5237, 1.0
        %v5537 = vmul.f32 %v5533, %v5535
        %v5538 = vmul.f32 %v5534, %v5536
        %v5541 = vrot.slane %v5236, 4
        %v5542 = vrot.slane %v5237, 4
        %v5545 = vadd.f32 %v5537, %v5541
        %v5546 = vadd.f32 %v5538, %v5542
        %vm5547 = vcmp.ge.f32.partialorder %v5545, 0.0
        %vm5548 = vcmp.ge.f32.partialorder %v5546, 0.0
        %v5549 = vmul.f32 %v5545, 0.2
        %v5550 = vmul.f32 %v5546, 0.2
        %v5551 = vsel %vm5547, %v5545, %v5549
        %v5552 = vsel %vm5548, %v5546, %v5550
        %v5553 = vpack.c.bf16 %v5551, %v5551
        %v5554 = vpack.c.bf16 %v5552, %v5552
        %5556 = vrot.lane.b32.xlu0 %v5554, 17
        %v5557 = vpop.permute.xlu0 %5556
        %5559 = vrot.lane.b32.xlu0 %v5553, 17
        %v5560 = vpop.permute.xlu0 %5559
        %v5561 = vsel %vm365, %v5560, %v5557
        %v5565 = vsel %vm368, %v5557, %v5560
        %v5567 = vmul.bf16 %v5565, %v403
        %v5568 = vmul.bf16 %v5561, %v410
        %5569 = vrot.lane.b32.xlu0 %v5554, 16
        %v5570 = vpop.permute.xlu0 %5569
        %5571 = vrot.lane.b32.xlu0 %v5553, 16
        %v5572 = vpop.permute.xlu0 %5571
        %v5573 = vsel %vm417, %v5572, %v5570
        %v5577 = vsel %vm420, %v5570, %v5572
        %v5579 = vmul.bf16 %v5577, %v456
        %v5580 = vmul.bf16 %v5573, %v463
        %5581 = vrot.lane.b32.xlu0 %v5554, 15
        %v5582 = vpop.permute.xlu0 %5581
        %5583 = vrot.lane.b32.xlu0 %v5553, 15
        %v5584 = vpop.permute.xlu0 %5583
        %v5585 = vsel %vm470, %v5584, %v5582
        %v5589 = vsel %vm473, %v5582, %v5584
        %v5591 = vmul.bf16 %v5589, %v509
        %v5592 = vmul.bf16 %v5585, %v516
        %5593 = vrot.lane.b32.xlu0 %v5554, 1
        %v5594 = vpop.permute.xlu0 %5593
        %5595 = vrot.lane.b32.xlu0 %v5553, 1
        %v5596 = vpop.permute.xlu0 %5595
        %v5597 = vsel %vm523, %v5596, %v5594
        %v5601 = vsel %vm526, %v5594, %v5596
        %v5603 = vmul.bf16 %v5601, %v562
        %v5604 = vmul.bf16 %v5597, %v569
        %5605 = vrot.lane.b32.xlu0 %v5553, 127
        %v5606 = vpop.permute.xlu0 %5605
        %5607 = vrot.lane.b32.xlu0 %v5554, 127
        %v5608 = vpop.permute.xlu0 %5607
        %v5609 = vsel %vm576, %v5606, %v5608
        %v5613 = vsel %vm579, %v5608, %v5606
        %v5615 = vmul.bf16 %v5609, %v615
        %v5616 = vmul.bf16 %v5613, %v622
        %5617 = vrot.lane.b32.xlu0 %v5553, 113
        %v5618 = vpop.permute.xlu0 %5617
        %5619 = vrot.lane.b32.xlu0 %v5554, 113
        %v5620 = vpop.permute.xlu0 %5619
        %v5621 = vsel %vm629, %v5618, %v5620
        %v5625 = vsel %vm632, %v5620, %v5618
        %v5627 = vmul.bf16 %v5621, %v668
        %v5628 = vmul.bf16 %v5625, %v675
        %5629 = vrot.lane.b32.xlu0 %v5553, 112
        %v5630 = vpop.permute.xlu0 %5629
        %5631 = vrot.lane.b32.xlu0 %v5554, 112
        %v5632 = vpop.permute.xlu0 %5631
        %v5633 = vsel %vm682, %v5630, %v5632
        %v5637 = vsel %vm685, %v5632, %v5630
        %v5639 = vmul.bf16 %v5633, %v721
        %v5640 = vmul.bf16 %v5637, %v728
        %5641 = vrot.lane.b32.xlu0 %v5553, 111
        %v5642 = vpop.permute.xlu0 %5641
        %5643 = vrot.lane.b32.xlu0 %v5554, 111
        %v5644 = vpop.permute.xlu0 %5643
        %v5645 = vsel %vm735, %v5642, %v5644
        %v5649 = vsel %vm738, %v5644, %v5642
        %v5651 = vmul.bf16 %v5645, %v774
        %v5652 = vmul.bf16 %v5649, %v781
        %v5655 = vrot.slane %v5579, 6
        %v5656 = vrot.slane %v5580, 6
        %v5659 = vrot.slane %v5591, 4
        %v5660 = vrot.slane %v5592, 4
        %v5663 = vrot.slane %v5603, 2
        %v5664 = vrot.slane %v5604, 2
        %v5667 = vrot.slane %v5615, 6
        %v5668 = vrot.slane %v5616, 6
        %v5671 = vrot.slane %v5627, 4
        %v5672 = vrot.slane %v5628, 4
        %v5675 = vrot.slane %v5639, 2
        %v5676 = vrot.slane %v5640, 2
        %v5679 = vsel %vm5425, %v5567, %v5655
        %v5682 = vsel %vm5425, %v5568, %v5656
        %v5684 = vsel %vm915, %v5679, %v5659
        %v5686 = vsel %vm915, %v5682, %v5660
        %v5688 = vsel %vm887, %v5684, %v5663
        %v5691 = vsel %vm887, %v5686, %v5664
        %v5695 = vsel %vm5425, %v5553, %v5667
        %v5698 = vsel %vm5425, %v5554, %v5668
        %v5700 = vsel %vm915, %v5695, %v5671
        %v5702 = vsel %vm915, %v5698, %v5672
        %v5704 = vsel %vm887, %v5700, %v5675
        %v5707 = vsel %vm887, %v5702, %v5676
        %v5710 = vsel %vm5425, %v5651, 1065369472
        %v5712 = vsel %vm5425, %v5652, 1065369472
        %v5713 = vld [vmem:[%s7] sm:$0xf]
        %v5715 = vsel %vm5464, %v5713, 0
        %v5717 = vand.u32 %v5710, %v5469
        %v5719 = vand.u32 %v5712, %v5469
        %5721 = vmatprep.subr.bf16.mxu0 %v5691
        %5722 = vmatpush1.bf16.msra.mxu0 %v5688
        %5723 = vmatprep.subr.bf16.mxu0 %v5707
        %5724 = vmatpush1.bf16.msra.mxu0 %v5704
        %5725 = vmatprep.subr.bf16.mxu0 %v5719
        %5726 = vmatpush1.bf16.msra.mxu0 %v5717
        %5727 = vmatprep.subr.bf16.mxu0 0
        %5728 = vmatpush1.bf16.msra.mxu0 0
        %5729 = vmatprep.subr.bf16.mxu0 0
        %5730 = vmatpush1.bf16.msra.mxu0 0
        %5731 = vmatprep.subr.bf16.mxu0 0
        %5732 = vmatpush1.bf16.msra.mxu0 0
        %5733 = vmatprep.subr.bf16.mxu0 0
        %5734 = vmatpush1.bf16.msra.mxu0 0
        %5735 = vmatprep.subr.bf16.mxu0 0
        %5736 = vmatpush1.bf16.msra.mxu0 0
        %5737 = vmatprep.subr.bf16.mxu0 0
        %5738 = vmatpush1.bf16.msra.mxu0 0
        %5739 = vmatprep.subr.bf16.mxu0 0
        %5740 = vmatpush1.bf16.msra.mxu0 0
        %5741 = vmatprep.subr.bf16.mxu0 0
        %5742 = vmatpush1.bf16.msra.mxu0 0
        %5743 = vmatprep.subr.bf16.mxu0 0
        %5744 = vmatpush1.bf16.msra.mxu0 0
        %5745 = vmatprep.subr.bf16.mxu0 0
        %5746 = vmatpush1.bf16.msra.mxu0 0
        %5747 = vmatprep.subr.bf16.mxu0 0
        %5748 = vmatpush1.bf16.msra.mxu0 0
        %5749 = vmatprep.subr.bf16.mxu0 0
        %5750 = vmatpush1.bf16.msra.mxu0 0
        %5751 = vmatprep.subr.bf16.mxu0 0
        %5752 = vmatpush1.bf16.msra.mxu0 0
        %5753 = vmatprep.mubr.bf16.mxu0 0
        %5754 = vmatmul.mubr.bf16.gmra.mrb[0].mxu0 %v5715
        %v5755 = vpop.f32.mrb[0].mxu0
        %v5756 = vadd.f32 0.0, %v5755
        %v5757 = vpop.f32.mrb[0].mxu0
        %v5758 = vadd.f32 0.0, %v5757
        %v5759 = vpop.f32.mrb[0].mxu0
        %v5760 = vpop.f32.mrb[0].mxu0
        %5761 = vdwg.mxu0
        %v5762 = vadd.f32 %v5238, 1.0
        %v5763 = vadd.f32 %v5239, 1.0
        %v5766 = vcombine.low %v5762, %v5763
        %v5768 = vmul.f32 %v5282, %v5766
        %v5771 = vcombine.high %v5238, %v5239
        %v5773 = vadd.f32 %v5768, %v5771
        %v5774 = vld [vmem:[%s8] sm:$0xf]
        %v5776 = vcombine.high %v5773, %v5773
        %v5778 = vpack.c.bf16 %v5773, %v5773
        %v5779 = vpack.c.bf16 %v5776, %v5776
        %vm5780 = vcmask 31744
        %v5782 = vsel %vm5780, %v5774, 0
        %v5785 = vsel %vm5425, %v5778, 0
        %v5788 = vsel %vm5425, %v5779, 0
        %5790 = vmatprep.subr.bf16.mxu0 %v5788
        %5791 = vmatpush1.bf16.msra.mxu0 %v5785
        %5792 = vmatprep.subr.bf16.mxu0 0
        %5793 = vmatpush1.bf16.msra.mxu0 0
        %5794 = vmatprep.subr.bf16.mxu0 0
        %5795 = vmatpush1.bf16.msra.mxu0 0
        %5796 = vmatprep.subr.bf16.mxu0 0
        %5797 = vmatpush1.bf16.msra.mxu0 0
        %5798 = vmatprep.subr.bf16.mxu0 0
        %5799 = vmatpush1.bf16.msra.mxu0 0
        %5800 = vmatprep.subr.bf16.mxu0 0
        %5801 = vmatpush1.bf16.msra.mxu0 0
        %5802 = vmatprep.subr.bf16.mxu0 0
        %5803 = vmatpush1.bf16.msra.mxu0 0
        %5804 = vmatprep.subr.bf16.mxu0 0
        %5805 = vmatpush1.bf16.msra.mxu0 0
        %5806 = vmatprep.subr.bf16.mxu0 0
        %5807 = vmatpush1.bf16.msra.mxu0 0
        %5808 = vmatprep.subr.bf16.mxu0 0
        %5809 = vmatpush1.bf16.msra.mxu0 0
        %5810 = vmatprep.subr.bf16.mxu0 0
        %5811 = vmatpush1.bf16.msra.mxu0 0
        %5812 = vmatprep.subr.bf16.mxu0 0
        %5813 = vmatpush1.bf16.msra.mxu0 0
        %5814 = vmatprep.subr.bf16.mxu0 0
        %5815 = vmatpush1.bf16.msra.mxu0 0
        %5816 = vmatprep.subr.bf16.mxu0 0
        %5817 = vmatpush1.bf16.msra.mxu0 0
        %5818 = vmatprep.subr.bf16.mxu0 0
        %5819 = vmatpush1.bf16.msra.mxu0 0
        %5820 = vmatprep.subr.bf16.mxu0 0
        %5821 = vmatpush1.bf16.msra.mxu0 0
        %5822 = vmatprep.mubr.bf16.mxu0 0
        %5823 = vmatmul.mubr.bf16.gmra.mrb[0].mxu0 %v5782
        %v5824 = vpop.f32.mrb[0].mxu0
        %v5825 = vadd.f32 %v5756, %v5824
        %v5826 = vpop.f32.mrb[0].mxu0
        %v5827 = vadd.f32 %v5758, %v5826
        %v5828 = vpop.f32.mrb[0].mxu0
        %v5829 = vpop.f32.mrb[0].mxu0
        %5830 = vdwg.mxu0
        %5831 = vst [vmem:[%s340] sm:$0xff] %v5825
        %5832 = vst [vmem:[%s340 + $0x8] sm:$0xff] %v5827
        %s5833 = sand.u32 %s230, 1
        %s5834 = scalar_lea.sflag [#allocation3], %s5833
        %s5835 = sand.u32 %s230, 1
        %s5836 = smul.addr %s5835, 16
        %s5837 = scalar_lea.vmem [#allocation2], %s5836
        // Predicated region
        $region57: #{tpu_custom_call.1} parent=55 // pred_check
          %p5838 = pneg %p240
        $region58: #{tpu_custom_call.1} parent=55 // pred_check_branch
          %5840 = sbr.rel (%p5838) target = $region60
        $region59: #{tpu_custom_call.1} parent=55 // pred_region
          %s5842 = ssub.s32 256, 256
          %5843 = vsyncadd %s5834, %s5842
          %s5844 = smul.addr %s23, 2
          %s5845 = smul.addr %s5844, 128
          %s5846 = scalar_lea.hbm %s9, %s5845
          %s5848 = sshll.u32 %s5837, 4
          %s5849 = int_to_ptr.vmem [resolvable:$true] %s5848
          %5851 = dma.vmem_to_hbm [thread:$0]  %s5849, 256, %s5846, %s5834
        $region60: #{tpu_custom_call.1} parent=55 // pred_fallthru
          _
      $region56: #{tpu_custom_call.1} parent=5 // pred_fallthru
        _
      %p5852 = scmp.le.s32.totalorder 2, %s18
      // Predicated region
      $region61: #{tpu_custom_call.1} parent=5 // pred_check
        %p5853 = pneg %p5852
      $region62: #{tpu_custom_call.1} parent=5 // pred_check_branch
        %5855 = sbr.rel (%p5853) target = $region64
      $region63: #{tpu_custom_call.1} parent=5 // pred_region
        %s5856 = ssub.s32 %s18, 2
        // Predicated region
        $region65: #{tpu_custom_call.1} parent=63 // pred_check
          %p5857 = pneg %p246
        $region66: #{tpu_custom_call.1} parent=63 // pred_check_branch
          %5859 = sbr.rel (%p5857) target = $region68
        $region67: #{tpu_custom_call.1} parent=63 // pred_region
          %s5860 = sand.u32 %s231, 1
          %s5861 = scalar_lea.sflag [#allocation3], %s5860
          %s5862 = sand.u32 %s231, 1
          %s5863 = smul.addr %s5862, 16
          %s5864 = scalar_lea.vmem [#allocation2], %s5863
          %5865 = dma.done %s5861, 256
        $region68: #{tpu_custom_call.1} parent=63 // pred_fallthru
          _
      $region64: #{tpu_custom_call.1} parent=5 // pred_fallthru
        _
    $region6: #{tpu_custom_call.1} parent=1 // loop_footer
      %s22 = sadd.s32 1, %s18
    $region7: #{tpu_custom_call.1} parent=1 // loop_footer_branch
      %17 = sbr.rel target = $region3
    $region8: #{tpu_custom_call.1} parent=1 // loop_exit
      _
    %5866 = vsyncpa [#allocation3], 1
    %s5867 = scalar_lea.sflag [#allocation3], 1
    %5868 = vsyncpa %s5867, 1

</llo_original>
